<compile_context>
chip_gen: v5e
topology: v5e:2x2
jax: 0.10.0
libtpu: 0.0.40
codegen_flags: <defaults>
</compile_context>

<pallas_src>
import jax
import jax.numpy as jnp
from jax.experimental import pallas as pl
from jax.experimental.pallas import tpu as pltpu


def _softplus(x):
    # numerically stable softplus: max(x,0) + log1p(exp(-|x|))
    return jnp.maximum(x, 0.0) + jnp.log1p(jnp.exp(-jnp.abs(x)))


def bow_encoder_kernel(x_ref, w1_ref, b1_ref, w2_ref, b2_ref, o_ref, acc_ref):
    k = pl.program_id(1)

    @pl.when(k == 0)
    def _():
        acc_ref[...] = jnp.zeros_like(acc_ref)

    # fc1 partial product: cast the x tile to the compute dtype IN-KERNEL
    # (no wrapper pre-pass over x); bf16 MXU operands, f32 accumulation.
    acc_ref[...] += jnp.dot(x_ref[...].astype(w1_ref.dtype), w1_ref[...],
                            preferred_element_type=jnp.float32)

    @pl.when(k == pl.num_programs(1) - 1)
    def _():
        h = _softplus(acc_ref[...] + b1_ref[...])
        h2 = jnp.dot(h.astype(w2_ref.dtype), w2_ref[...],
                     preferred_element_type=jnp.float32)
        # dropout (eval mode) == identity
        o_ref[...] = _softplus(h2 + b2_ref[...]).astype(o_ref.dtype)


def _round_up(n, m):
    return ((n + m - 1) // m) * m


def _default_tile_b(batch):
    # <=128 rows: a single tile equal to the full batch (always a legal block).
    if batch <= 128:
        return batch
    # Otherwise at least two tiles (keeps both v7x TensorCores fed through the
    # "parallel" batch axis), capped at 512 rows; multiple of 8 (sublane).
    return min(512, _round_up((batch + 1) // 2, 8))


def _default_tile_k(input_dim, enc_dim, itemsize, budget_bytes=16 * 1024 * 1024):
    # Keep W1 fully resident when it comfortably fits VMEM; otherwise stream
    # the vocab axis in even 128-multiple slices so no ragged K tile can leak
    # garbage into the accumulator.
    if input_dim * enc_dim * itemsize <= budget_bytes:
        return input_dim
    for tk in (2048, 1024, 512, 256, 128):
        if input_dim % tk == 0:
            return tk
    return input_dim


def bow_encoder(x, w1, b1, w2, b2, *, tile_b=None, tile_k=None,
                compute_dtype=jnp.bfloat16, out_dtype=jnp.bfloat16):
    """x: [B, input_dim]; w1: [input_dim, enc_dim]; b1: [enc_dim] or [1, enc_dim];
       w2: [enc_dim, dec_dim]; b2: [dec_dim] or [1, dec_dim]  ->  [B, dec_dim]."""
    B, input_dim = x.shape
    enc_dim = w1.shape[1]
    dec_dim = w2.shape[1]

    # Weights should already be in compute_dtype (converted once at init);
    # cast here only as a fallback for stray callers.
    if w1.dtype != compute_dtype:
        w1 = w1.astype(compute_dtype)
    if w2.dtype != compute_dtype:
        w2 = w2.astype(compute_dtype)
    b1 = jnp.asarray(b1, jnp.float32).reshape(1, enc_dim)
    b2 = jnp.asarray(b2, jnp.float32).reshape(1, dec_dim)

    itemsize = jnp.dtype(compute_dtype).itemsize
    if tile_b is None:
        tile_b = _default_tile_b(B)
    if tile_k is None:
        tile_k = _default_tile_k(input_dim, enc_dim, itemsize)
    assert input_dim % tile_k == 0, "tile_k must evenly divide input_dim"

    num_b = pl.cdiv(B, tile_b)
    num_k = input_dim // tile_k

    def resident(shape):
        # Constant index_map -> single-buffered resident operand.
        return pl.BlockSpec(shape, lambda i, k: (0, 0),
                            pipeline_mode=pl.Buffered(1))

    if num_k == 1:
        w1_spec = resident((tile_k, enc_dim))
    else:
        w1_spec = pl.BlockSpec((tile_k, enc_dim), lambda i, k: (k, 0))

    # Explicit VMEM budget with headroom (v7x physical VMEM is only 64 MiB).
    vmem_est = (2 * tile_b * tile_k * jnp.dtype(x.dtype).itemsize      # x tile (2x buffered)
                + (1 if num_k == 1 else 2) * tile_k * enc_dim * itemsize  # W1
                + enc_dim * dec_dim * itemsize                          # W2 resident
                + (enc_dim + dec_dim) * 4                               # biases
                + 2 * tile_b * dec_dim * jnp.dtype(out_dtype).itemsize  # out tile
                + tile_b * enc_dim * 4)                                 # acc scratch
    vmem_limit = int(min(100 * 1024 * 1024,
                         max(32 * 1024 * 1024, int(1.5 * vmem_est))))

    return pl.pallas_call(
        bow_encoder_kernel,
        out_shape=jax.ShapeDtypeStruct((B, dec_dim), out_dtype),
        grid_spec=pltpu.PrefetchScalarGridSpec(
            num_scalar_prefetch=0,
            grid=(num_b, num_k),
            in_specs=[
                pl.BlockSpec((tile_b, tile_k), lambda i, k: (i, k)),  # x tile
                w1_spec,                                              # W1
                resident((1, enc_dim)),                               # b1
                resident((enc_dim, dec_dim)),                         # W2
                resident((1, dec_dim)),                               # b2
            ],
            out_specs=pl.BlockSpec((tile_b, dec_dim), lambda i, k: (i, 0)),
            scratch_shapes=[pltpu.VMEM((tile_b, enc_dim), jnp.float32)],
        ),
        compiler_params=pltpu.CompilerParams(
            dimension_semantics=("parallel", "arbitrary"),
            vmem_limit_bytes=vmem_limit),
    )(x, w1, b1, w2, b2)


if __name__ == "__main__":
    # Small shapes consistent with the module: vocab (input_dim)=512, enc=256, dec=128.
    # batch=500 is deliberately NOT a multiple of the auto-chosen tile_b=256:
    # exercises the ragged-tail masked store and yields a 2-step batch grid
    # (keeps both v7x TensorCores busy).
    batch, input_dim, enc_dim, dec_dim = 500, 512, 256, 128

    key = jax.random.PRNGKey(0)
    kx, k1, k2, k3, k4 = jax.random.split(key, 5)

    x = jax.random.normal(kx, (batch, input_dim), dtype=jnp.float32)

    # Parameter init (PyTorch Linear shapes: weight [out,in], bias [out]).
    # Weights are pre-transposed to [in, out] and converted to bf16 ONCE here,
    # so the kernel call does no per-call weight conversion.
    w1 = (jax.random.normal(k1, (enc_dim, input_dim), dtype=jnp.float32)
          * (1.0 / jnp.sqrt(input_dim))).T
    b1 = jax.random.normal(k2, (enc_dim,), dtype=jnp.float32) * 0.01
    w2 = (jax.random.normal(k3, (dec_dim, enc_dim), dtype=jnp.float32)
          * (1.0 / jnp.sqrt(enc_dim))).T
    b2 = jax.random.normal(k4, (dec_dim,), dtype=jnp.float32) * 0.01
    w1_bf16 = w1.astype(jnp.bfloat16)
    w2_bf16 = w2.astype(jnp.bfloat16)

    out = bow_encoder(x, w1_bf16, b1, w2_bf16, b2)
    out = jax.block_until_ready(out)
    assert out.shape == (batch, dec_dim)
    assert out.dtype == jnp.bfloat16

    # Pure-JAX reference on the same bf16-operand / f32-accumulate path.
    h = jax.nn.softplus(
        jnp.dot(x.astype(jnp.bfloat16), w1_bf16,
                preferred_element_type=jnp.float32) + b1[None, :])
    ref = jax.nn.softplus(
        jnp.dot(h.astype(jnp.bfloat16), w2_bf16,
                preferred_element_type=jnp.float32) + b2[None, :])
    out_f32 = out.astype(jnp.float32)
    max_err = float(jnp.max(jnp.abs(out_f32 - ref)))
    assert jnp.allclose(out_f32, ref, atol=2e-2, rtol=2e-2), max_err

    # Loose sanity check against the full-f32 reference (bf16 rounding only).
    ref_f32 = jax.nn.softplus(
        jax.nn.softplus(x @ w1 + b1[None, :]) @ w2 + b2[None, :])
    assert jnp.allclose(out_f32, ref_f32, atol=0.25, rtol=0.25)

    print("KERNEL_OK")
</pallas_src>

<mosaic_0001>
module attributes {stable_mosaic.version = 11 : i64} {
  func.func @bow_encoder_kernel(%arg0: i32, %arg1: i32, %arg2: memref<256x512xf32, #tpu.memory_space<vmem>>, %arg3: memref<512x256xbf16, #tpu.memory_space<vmem>>, %arg4: memref<1x256xf32, #tpu.memory_space<vmem>>, %arg5: memref<256x128xbf16, #tpu.memory_space<vmem>>, %arg6: memref<1x128xf32, #tpu.memory_space<vmem>>, %arg7: memref<256x128xbf16, #tpu.memory_space<vmem>>, %arg8: memref<256x256xf32, #tpu.memory_space<vmem>>) attributes {dimension_semantics = [#tpu.dimension_semantics<parallel>, #tpu.dimension_semantics<arbitrary>], iteration_bounds = array<i64: 2, 1>, scalar_prefetch = 0 : i64, scratch_operands = 1 : i64, tpu.core_type = #tpu.core_type<tc>, window_params = [{transform_indices = @transform_0, window_bounds = array<i64: 256, 512>}, {pipeline_mode = #tpu.pipeline_mode<synchronous>, transform_indices = @transform_1, window_bounds = array<i64: 512, 256>}, {pipeline_mode = #tpu.pipeline_mode<synchronous>, transform_indices = @transform_2, window_bounds = array<i64: 1, 256>}, {pipeline_mode = #tpu.pipeline_mode<synchronous>, transform_indices = @transform_3, window_bounds = array<i64: 256, 128>}, {pipeline_mode = #tpu.pipeline_mode<synchronous>, transform_indices = @transform_4, window_bounds = array<i64: 1, 128>}, {transform_indices = @transform_5, window_bounds = array<i64: 256, 128>}]} {
    %c0_i32 = arith.constant 0 : i32
    %0 = arith.cmpi eq, %arg1, %c0_i32 : i32
    %1 = arith.extui %0 : i1 to i32
    %c0_i32_0 = arith.constant 0 : i32
    %2 = arith.cmpi ne, %1, %c0_i32_0 : i32
    scf.if %2 {
      %cst_10 = arith.constant 0.000000e+00 : f32
      %13 = vector.broadcast %cst_10 : f32 to vector<256x256xf32>
      %c0_11 = arith.constant 0 : index
      %c0_12 = arith.constant 0 : index
      %14 = vector.load %arg8[%c0_11, %c0_12] : memref<256x256xf32, #tpu.memory_space<vmem>>, vector<256x256xf32>
      tpu.vector_store %arg8[%c0_11, %c0_12], %13 {strides = array<i32>} : memref<256x256xf32, #tpu.memory_space<vmem>>, vector<256x256xf32>,
    } else {
    }
    %c0 = arith.constant 0 : index
    %c0_1 = arith.constant 0 : index
    %3 = vector.load %arg8[%c0, %c0_1] : memref<256x256xf32, #tpu.memory_space<vmem>>, vector<256x256xf32>
    %c0_2 = arith.constant 0 : index
    %c0_3 = arith.constant 0 : index
    %4 = vector.load %arg2[%c0_2, %c0_3] : memref<256x512xf32, #tpu.memory_space<vmem>>, vector<256x512xf32>
    %5 = arith.truncf %4 : vector<256x512xf32> to vector<256x512xbf16>
    %c0_4 = arith.constant 0 : index
    %c0_5 = arith.constant 0 : index
    %6 = vector.load %arg3[%c0_4, %c0_5] : memref<512x256xbf16, #tpu.memory_space<vmem>>, vector<512x256xbf16>
    %cst = arith.constant dense<0.000000e+00> : vector<256x256xf32>
    %7 = tpu.matmul %5, %6, %cst {dimension_numbers = #tpu.dot_dimension_numbers<[1], [0], [0], [1], [0, 0, 1, 1], [], []>} : vector<256x512xbf16>, vector<512x256xbf16>, vector<256x256xf32> -> vector<256x256xf32>
    %8 = arith.addf %3, %7 : vector<256x256xf32>
    %c0_6 = arith.constant 0 : index
    %c0_7 = arith.constant 0 : index
    %9 = vector.load %arg8[%c0_6, %c0_7] : memref<256x256xf32, #tpu.memory_space<vmem>>, vector<256x256xf32>
    tpu.vector_store %arg8[%c0_6, %c0_7], %8 {strides = array<i32>} : memref<256x256xf32, #tpu.memory_space<vmem>>, vector<256x256xf32>,
    %c0_i32_8 = arith.constant 0 : i32
    %10 = arith.cmpi eq, %arg1, %c0_i32_8 : i32
    %11 = arith.extui %10 : i1 to i32
    %c0_i32_9 = arith.constant 0 : i32
    %12 = arith.cmpi ne, %11, %c0_i32_9 : i32
    scf.if %12 {
      %c0_10 = arith.constant 0 : index
      %c0_11 = arith.constant 0 : index
      %13 = vector.load %arg8[%c0_10, %c0_11] : memref<256x256xf32, #tpu.memory_space<vmem>>, vector<256x256xf32>
      %c0_12 = arith.constant 0 : index
      %c0_13 = arith.constant 0 : index
      %14 = vector.load %arg4[%c0_12, %c0_13] : memref<1x256xf32, #tpu.memory_space<vmem>>, vector<1x256xf32>
      %15 = vector.broadcast %14 : vector<1x256xf32> to vector<256x256xf32>
      %16 = arith.addf %13, %15 : vector<256x256xf32>
      %cst_14 = arith.constant 0.000000e+00 : f32
      %17 = vector.broadcast %cst_14 : f32 to vector<256x256xf32>
      %18 = arith.maximumf %16, %17 : vector<256x256xf32>
      %19 = math.absf %16 : vector<256x256xf32>
      %cst_15 = arith.constant 0.000000e+00 : f32
      %20 = vector.broadcast %cst_15 : f32 to vector<256x256xf32>
      %21 = arith.subf %20, %19 : vector<256x256xf32>
      %22 = math.exp %21 : vector<256x256xf32>
      %23 = math.log1p %22 : vector<256x256xf32>
      %24 = arith.addf %18, %23 : vector<256x256xf32>
      %25 = arith.truncf %24 : vector<256x256xf32> to vector<256x256xbf16>
      %c0_16 = arith.constant 0 : index
      %c0_17 = arith.constant 0 : index
      %26 = vector.load %arg5[%c0_16, %c0_17] : memref<256x128xbf16, #tpu.memory_space<vmem>>, vector<256x128xbf16>
      %cst_18 = arith.constant dense<0.000000e+00> : vector<256x128xf32>
      %27 = tpu.matmul %25, %26, %cst_18 {dimension_numbers = #tpu.dot_dimension_numbers<[1], [0], [0], [1], [0, 0, 1, 1], [], []>} : vector<256x256xbf16>, vector<256x128xbf16>, vector<256x128xf32> -> vector<256x128xf32>
      %c0_19 = arith.constant 0 : index
      %c0_20 = arith.constant 0 : index
      %28 = vector.load %arg6[%c0_19, %c0_20] : memref<1x128xf32, #tpu.memory_space<vmem>>, vector<1x128xf32>
      %29 = vector.broadcast %28 : vector<1x128xf32> to vector<256x128xf32>
      %30 = arith.addf %27, %29 : vector<256x128xf32>
      %cst_21 = arith.constant 0.000000e+00 : f32
      %31 = vector.broadcast %cst_21 : f32 to vector<256x128xf32>
      %32 = arith.maximumf %30, %31 : vector<256x128xf32>
      %33 = math.absf %30 : vector<256x128xf32>
      %cst_22 = arith.constant 0.000000e+00 : f32
      %34 = vector.broadcast %cst_22 : f32 to vector<256x128xf32>
      %35 = arith.subf %34, %33 : vector<256x128xf32>
      %36 = math.exp %35 : vector<256x128xf32>
      %37 = math.log1p %36 : vector<256x128xf32>
      %38 = arith.addf %32, %37 : vector<256x128xf32>
      %39 = arith.truncf %38 : vector<256x128xf32> to vector<256x128xbf16>
      %c0_23 = arith.constant 0 : index
      %c0_24 = arith.constant 0 : index
      %40 = vector.load %arg7[%c0_23, %c0_24] : memref<256x128xbf16, #tpu.memory_space<vmem>>, vector<256x128xbf16>
      tpu.vector_store %arg7[%c0_23, %c0_24], %39 {strides = array<i32>} : memref<256x128xbf16, #tpu.memory_space<vmem>>, vector<256x128xbf16>,
    } else {
    }
    return
  }
  func.func @transform_0(%arg0: i32, %arg1: i32) -> (i32, i32) {
    %c0_i32 = arith.constant 0 : i32
    return %arg0, %arg1 : i32, i32
  }
  func.func @transform_1(%arg0: i32, %arg1: i32) -> (i32, i32) {
    %c0_i32 = arith.constant 0 : i32
    %c0_i32_0 = arith.constant 0 : i32
    %c0_i32_1 = arith.constant 0 : i32
    return %c0_i32, %c0_i32_0 : i32, i32
  }
  func.func @transform_2(%arg0: i32, %arg1: i32) -> (i32, i32) {
    %c0_i32 = arith.constant 0 : i32
    %c0_i32_0 = arith.constant 0 : i32
    %c0_i32_1 = arith.constant 0 : i32
    return %c0_i32, %c0_i32_0 : i32, i32
  }
  func.func @transform_3(%arg0: i32, %arg1: i32) -> (i32, i32) {
    %c0_i32 = arith.constant 0 : i32
    %c0_i32_0 = arith.constant 0 : i32
    %c0_i32_1 = arith.constant 0 : i32
    return %c0_i32, %c0_i32_0 : i32, i32
  }
  func.func @transform_4(%arg0: i32, %arg1: i32) -> (i32, i32) {
    %c0_i32 = arith.constant 0 : i32
    %c0_i32_0 = arith.constant 0 : i32
    %c0_i32_1 = arith.constant 0 : i32
    return %c0_i32, %c0_i32_0 : i32, i32
  }
  func.func @transform_5(%arg0: i32, %arg1: i32) -> (i32, i32) {
    %c0_i32 = arith.constant 0 : i32
    %c0_i32_0 = arith.constant 0 : i32
    return %arg0, %c0_i32 : i32, i32
  }
}

</mosaic_0001>

<llo_original>
// kernel: tpu_custom_call.1
$region0: #{tpu_custom_call.1}
  #allocation0 [shape = 'u32[]', space=smem, size = 0x4, offset = 0x4, fixed_abs, tag = 'smem constant byte address 0x4 - core index']
  #allocation1 [shape = 'u32[72,128]{1,0:T(1,128)}', space=vmem, size = 0x9000, scoped, tag = 'internal scratch']
  #allocation2 [shape = 'f32[256,256]{1,0:T(8,128)}', space=vmem, size = 0x40000, scoped, tag = 'scratch operand']
  %s0 = inlined_call_operand.hbm [shape: f32[500,512], index: 0, kind: input, shape index: {}]
  %s1 = inlined_call_operand.hbm [shape: bf16[512,256], index: 1, kind: input, shape index: {}]
  %s2 = inlined_call_operand.hbm [shape: f32[1,256], index: 2, kind: input, shape index: {}]
  %s3 = inlined_call_operand.hbm [shape: bf16[256,128], index: 3, kind: input, shape index: {}]
  %s4 = inlined_call_operand.vmem [shape: f32[1,128], index: 4, kind: input, shape index: {}]
  %s5 = inlined_call_operand.hbm [shape: bf16[500,128], index: 5, kind: output, shape index: {}]
  %s6 = sld [smem:[#allocation0]]
  $region77: #{tpu_custom_call.1} parent=0
    _
  %s8 = ssub.s32 1, %s6
  %s9 = scalar_select 0, %s8, %s6
  $region1: #{tpu_custom_call.1} parent=0
    #allocation3 [shape = 'u8[1048576]{0}', space=vmem, size = 0x100000, scoped, tag = 'input window, operand 0']
    #allocation4 [shape = 's32[2]{0}', space=sflag, size = 0x8, scoped, tag = 'scoped memory for tpu_custom_call.1']
    #allocation5 [shape = 's32[2]{0}', space=sflag, size = 0x8, scoped, tag = 'scoped memory for tpu_custom_call.1']
    #allocation6 [shape = 'u8[262144]{0}', space=vmem, size = 0x40000, scoped, tag = 'input window, operand 1, single buffered']
    #allocation7 [shape = 's32[1]{0}', space=sflag, size = 0x4, scoped, tag = 'scoped memory for tpu_custom_call.1']
    #allocation8 [shape = 'u8[1024]{0}', space=vmem, size = 0x400, scoped, tag = 'input window, operand 2, single buffered']
    #allocation9 [shape = 'u8[65536]{0}', space=vmem, size = 0x10000, scoped, tag = 'input window, operand 3, single buffered']
    #allocation10 [shape = 's32[1]{0}', space=sflag, size = 0x4, scoped, tag = 'scoped memory for tpu_custom_call.1']
    #allocation11 [shape = 'u8[131072]{0}', space=vmem, size = 0x20000, scoped, tag = 'output window, operand 0']
    %10 = vsyncpa [#allocation4], 0
    %s11 = scalar_lea.sflag [#allocation4], 1
    %12 = vsyncpa %s11, 0
    %13 = vsyncpa [#allocation7], 0
    %14 = vsyncpa [#allocation10], 0
    %15 = vsyncpa [#allocation5], 0
    %s16 = scalar_lea.sflag [#allocation5], 1
    %17 = vsyncpa %s16, 0
    loop: start=0, step=1, limit=4
    $region2: #{tpu_custom_call.1} parent=1 // loop_pre_header
      _
    $region3: #{tpu_custom_call.1} parent=1 // loop_header
      %s19 = sphi 0, %s23
      %p20 = scmp.ge.s32.totalorder %s19, 4
      %s26 = sphi 0, %s38
      %s27 = sphi 0, %s34
      %s28 = sphi 0, %s26
      %s29 = sphi 0, %s27
      %s30 = sphi 0, %s28
      %s31 = sphi 0, %s29
      %s43 = sphi 0, %s45
      %s46 = sphi 0, %s43
      %s47 = sphi 0, %s46
      %s63 = sphi 0, %s47
      %s67 = sphi 0, %s67
      %s69 = sphi 0, %s67
      %s70 = sphi 0, %s69
      %s84 = sphi 0, %s70
      %s88 = sphi 0, %s88
      %s90 = sphi 0, %s88
      %s91 = sphi 0, %s90
      %s105 = sphi 0, %s91
      %s109 = sphi 0, %s109
      %s111 = sphi 0, %s109
      %s112 = sphi 0, %s111
      %s126 = sphi 0, %s112
      %s130 = sphi 0, %s130
      %s132 = sphi 0, %s130
      %s133 = sphi 0, %s132
      %s147 = sphi 0, %s133
      %s153 = sphi 0, %s155
      %s156 = sphi 0, %s153
      %s157 = sphi 0, %s156
      %s173 = sphi 0, %s157
    $region4: #{tpu_custom_call.1} parent=1 // loop_header_branch
      %22 = sbr.rel (%p20) target = $region8
    $region5: #{tpu_custom_call.1} parent=1 // loop_body
      %s24 = ssub.s32 %s19, 1
      %s25 = ssub.s32 %s19, 2
      %s32 = sadd.s32 1, %s27
      %p33 = scmp.ge.s32.totalorder %s32, 1
      %s34 = scalar_select %p33, 0, %s32
      %s35 = sadd.s32 1, %s26
      %s36 = scalar_select %p33, %s35, %s26
      %p37 = scmp.ge.s32.totalorder %s36, 2
      %s38 = scalar_select %p37, 0, %s36
      %s39 = ssub.s32 %s26, %s38
      %s40 = ssub.s32 %s27, %s34
      %s41 = sor.u32 %s39, %s40
      %p42 = scmp.eq.s32.totalorder %s41, 0
      %s44 = sadd.s32 %s43, 1
      %s45 = scalar_select %p42, %s43, %s44
      %p48 = pneg %p42
      %p49 = scmp.eq.s32.totalorder %s19, 1
      %p50 = por %p48, %p49
      %p51 = scmp.ne.s32.totalorder %s43, %s46
      %p52 = scmp.eq.s32.totalorder %s19, 0
      %p53 = por %p51, %p52
      %p54 = scmp.ne.s32.totalorder %s43, %s46
      %p55 = scmp.eq.s32.totalorder %s24, 1
      %p56 = por %p54, %p55
      %p57 = scmp.ne.s32.totalorder %s46, %s47
      %p58 = scmp.eq.s32.totalorder %s24, 0
      %p59 = por %p57, %p58
      %p60 = scmp.ne.s32.totalorder %s46, %s47
      %p61 = scmp.eq.s32.totalorder %s25, 1
      %p62 = por %p60, %p61
      %p64 = scmp.ne.s32.totalorder %s47, %s63
      %p65 = scmp.eq.s32.totalorder %s25, 0
      %p66 = por %p64, %p65
      %s68 = sadd.s32 %s67, 1
      %p71 = scmp.eq.s32.totalorder %s19, 1
      %p72 = scmp.ne.s32.totalorder %s67, %s69
      %p73 = scmp.eq.s32.totalorder %s19, 0
      %p74 = por %p72, %p73
      %p75 = scmp.ne.s32.totalorder %s67, %s69
      %p76 = scmp.eq.s32.totalorder %s24, 1
      %p77 = por %p75, %p76
      %p78 = scmp.ne.s32.totalorder %s69, %s70
      %p79 = scmp.eq.s32.totalorder %s24, 0
      %p80 = por %p78, %p79
      %p81 = scmp.ne.s32.totalorder %s69, %s70
      %p82 = scmp.eq.s32.totalorder %s25, 1
      %p83 = por %p81, %p82
      %p85 = scmp.ne.s32.totalorder %s70, %s84
      %p86 = scmp.eq.s32.totalorder %s25, 0
      %p87 = por %p85, %p86
      %s89 = sadd.s32 %s88, 1
      %p92 = scmp.eq.s32.totalorder %s19, 1
      %p93 = scmp.ne.s32.totalorder %s88, %s90
      %p94 = scmp.eq.s32.totalorder %s19, 0
      %p95 = por %p93, %p94
      %p96 = scmp.ne.s32.totalorder %s88, %s90
      %p97 = scmp.eq.s32.totalorder %s24, 1
      %p98 = por %p96, %p97
      %p99 = scmp.ne.s32.totalorder %s90, %s91
      %p100 = scmp.eq.s32.totalorder %s24, 0
      %p101 = por %p99, %p100
      %p102 = scmp.ne.s32.totalorder %s90, %s91
      %p103 = scmp.eq.s32.totalorder %s25, 1
      %p104 = por %p102, %p103
      %p106 = scmp.ne.s32.totalorder %s91, %s105
      %p107 = scmp.eq.s32.totalorder %s25, 0
      %p108 = por %p106, %p107
      %s110 = sadd.s32 %s109, 1
      %p113 = scmp.eq.s32.totalorder %s19, 1
      %p114 = scmp.ne.s32.totalorder %s109, %s111
      %p115 = scmp.eq.s32.totalorder %s19, 0
      %p116 = por %p114, %p115
      %p117 = scmp.ne.s32.totalorder %s109, %s111
      %p118 = scmp.eq.s32.totalorder %s24, 1
      %p119 = por %p117, %p118
      %p120 = scmp.ne.s32.totalorder %s111, %s112
      %p121 = scmp.eq.s32.totalorder %s24, 0
      %p122 = por %p120, %p121
      %p123 = scmp.ne.s32.totalorder %s111, %s112
      %p124 = scmp.eq.s32.totalorder %s25, 1
      %p125 = por %p123, %p124
      %p127 = scmp.ne.s32.totalorder %s112, %s126
      %p128 = scmp.eq.s32.totalorder %s25, 0
      %p129 = por %p127, %p128
      %s131 = sadd.s32 %s130, 1
      %p134 = scmp.eq.s32.totalorder %s19, 1
      %p135 = scmp.ne.s32.totalorder %s130, %s132
      %p136 = scmp.eq.s32.totalorder %s19, 0
      %p137 = por %p135, %p136
      %p138 = scmp.ne.s32.totalorder %s130, %s132
      %p139 = scmp.eq.s32.totalorder %s24, 1
      %p140 = por %p138, %p139
      %p141 = scmp.ne.s32.totalorder %s132, %s133
      %p142 = scmp.eq.s32.totalorder %s24, 0
      %p143 = por %p141, %p142
      %p144 = scmp.ne.s32.totalorder %s132, %s133
      %p145 = scmp.eq.s32.totalorder %s25, 1
      %p146 = por %p144, %p145
      %p148 = scmp.ne.s32.totalorder %s133, %s147
      %p149 = scmp.eq.s32.totalorder %s25, 0
      %p150 = por %p148, %p149
      %s151 = ssub.s32 %s26, %s38
      %p152 = scmp.eq.s32.totalorder %s151, 0
      %s154 = sadd.s32 %s153, 1
      %s155 = scalar_select %p152, %s153, %s154
      %p158 = pneg %p152
      %p159 = scmp.eq.s32.totalorder %s19, 1
      %p160 = por %p158, %p159
      %p161 = scmp.ne.s32.totalorder %s153, %s156
      %p162 = scmp.eq.s32.totalorder %s19, 0
      %p163 = por %p161, %p162
      %p164 = scmp.ne.s32.totalorder %s153, %s156
      %p165 = scmp.eq.s32.totalorder %s24, 1
      %p166 = por %p164, %p165
      %p167 = scmp.ne.s32.totalorder %s156, %s157
      %p168 = scmp.eq.s32.totalorder %s24, 0
      %p169 = por %p167, %p168
      %p170 = scmp.ne.s32.totalorder %s156, %s157
      %p171 = scmp.eq.s32.totalorder %s25, 1
      %p172 = por %p170, %p171
      %p174 = scmp.ne.s32.totalorder %s157, %s173
      %p175 = scmp.eq.s32.totalorder %s25, 0
      %p176 = por %p174, %p175
      %p177 = scmp.le.s32.totalorder 1, %s19
      %p178 = scmp.lt.s32.totalorder %s19, 3
      %p179 = pnand %p177, %p178
      %p180 = pneg %p179
      // Predicated region
      $region9: #{tpu_custom_call.1} parent=5 // pred_check
        _
      $region10: #{tpu_custom_call.1} parent=5 // pred_check_branch
        %182 = sbr.rel (%p179) target = $region12
      $region11: #{tpu_custom_call.1} parent=5 // pred_region
        %s183 = ssub.s32 %s19, 1
        // Predicated region
        $region13: #{tpu_custom_call.1} parent=11 // pred_check
          %p184 = pneg %p80
        $region14: #{tpu_custom_call.1} parent=11 // pred_check_branch
          %186 = sbr.rel (%p184) target = $region16
        $region15: #{tpu_custom_call.1} parent=11 // pred_region
          %188 = vsyncadd [#allocation7], 0
          %s189 = sshll.u32 %s1, 4
          %s190 = int_to_ptr.hbm [resolvable:$true] %s189
          %s191 = sshll.u32 [#allocation6], 4
          %s192 = int_to_ptr.vmem [resolvable:$true] %s191
          %197 = dma.hbm_to_vmem [thread:$0]  %s190, 8192, %s192, [#allocation7], 128, 128, 8
        $region16: #{tpu_custom_call.1} parent=11 // pred_fallthru
          _
        // Predicated region
        $region17: #{tpu_custom_call.1} parent=11 // pred_check
          %p198 = pneg %p101
        $region18: #{tpu_custom_call.1} parent=11 // pred_check_branch
          %200 = sbr.rel (%p198) target = $region20
        $region19: #{tpu_custom_call.1} parent=11 // pred_region
          %202 = vsyncadd [#allocation7], 0
          %s204 = sshll.u32 %s2, 4
          %s205 = int_to_ptr.hbm [resolvable:$true] %s204
          %s206 = sshll.u32 [#allocation8], 4
          %s207 = int_to_ptr.vmem [resolvable:$true] %s206
          %209 = dma.hbm_to_vmem [thread:$0]  %s205, 32, %s207, [#allocation7]
        $region20: #{tpu_custom_call.1} parent=11 // pred_fallthru
          _
        // Predicated region
        $region21: #{tpu_custom_call.1} parent=11 // pred_check
          %p210 = pneg %p122
        $region22: #{tpu_custom_call.1} parent=11 // pred_check_branch
          %212 = sbr.rel (%p210) target = $region24
        $region23: #{tpu_custom_call.1} parent=11 // pred_region
          %214 = vsyncadd [#allocation10], 0
          %s215 = sshll.u32 %s3, 4
          %s216 = int_to_ptr.hbm [resolvable:$true] %s215
          %s217 = sshll.u32 [#allocation9], 4
          %s218 = int_to_ptr.vmem [resolvable:$true] %s217
          %223 = dma.hbm_to_vmem [thread:$0]  %s216, 2048, %s218, [#allocation10], 64, 64, 4
        $region24: #{tpu_custom_call.1} parent=11 // pred_fallthru
          _
        // Predicated region
        $region25: #{tpu_custom_call.1} parent=11 // pred_check
          %p224 = pneg %p143
        $region26: #{tpu_custom_call.1} parent=11 // pred_check_branch
          %226 = sbr.rel (%p224) target = $region28
        $region27: #{tpu_custom_call.1} parent=11 // pred_region
          _
        $region28: #{tpu_custom_call.1} parent=11 // pred_fallthru
          _
      $region12: #{tpu_custom_call.1} parent=5 // pred_fallthru
        _
      %p227 = scmp.lt.s32.totalorder %s19, 2
      // Predicated region
      $region29: #{tpu_custom_call.1} parent=5 // pred_check
        %p228 = pneg %p227
      $region30: #{tpu_custom_call.1} parent=5 // pred_check_branch
        %230 = sbr.rel (%p228) target = $region32
      $region31: #{tpu_custom_call.1} parent=5 // pred_region
        // Predicated region
        $region33: #{tpu_custom_call.1} parent=31 // pred_check
          %p231 = pneg %p53
        $region34: #{tpu_custom_call.1} parent=31 // pred_check_branch
          %233 = sbr.rel (%p231) target = $region36
        $region35: #{tpu_custom_call.1} parent=31 // pred_region
          %s234 = sand.u32 %s43, 1
          %s235 = scalar_lea.sflag [#allocation4], %s234
          %s236 = sand.u32 %s43, 1
          %s237 = smul.addr %s236, 1024
          %s238 = scalar_lea.vmem [#allocation3], %s237
          %s239 = smul.u32 32, %s26
          %s240 = smul.u32 4, %s27
          %s241 = ssub.s32 63, %s239
          %p242 = scmp.lt.s32.totalorder %s241, 32
          %s243 = scalar_select %p242, %s241, 32
          %s244 = smul.u32 8, %s243
          %s245 = smul.u32 %s244, 4
          %s246 = ssub.s32 1024, %s245
          %s247 = sshll.u32 %s246, 4
          %248 = vsyncadd %s235, %s247
          %p249 = scmp.ne.s32.totalorder 0, %s245
          %s250 = smul.addr %s239, 4
          %s251 = sadd.s32 %s240, %s250
          %s252 = smul.addr %s251, 8
          %s253 = scalar_lea.hbm %s0, %s252
          %s254 = smul.u32 32, %s243
          %s255 = sshll.u32 %s253, 4
          %s256 = int_to_ptr.hbm [resolvable:$true] %s255
          %s257 = sshll.u32 %s238, 4
          %s258 = int_to_ptr.vmem [resolvable:$true] %s257
          %s259 = sshll.u32 %s254, 4
          %263 = dma.hbm_to_vmem [thread:$0]  (%p249), %s256, %s259, %s258, %s235, 512, 512, 32
        $region36: #{tpu_custom_call.1} parent=31 // pred_fallthru
          _
      $region32: #{tpu_custom_call.1} parent=5 // pred_fallthru
        _
      %p264 = scmp.le.s32.totalorder 1, %s19
      %p265 = scmp.lt.s32.totalorder %s19, 3
      %p266 = pnand %p264, %p265
      %p267 = pneg %p266
      // Predicated region
      $region37: #{tpu_custom_call.1} parent=5 // pred_check
        _
      $region38: #{tpu_custom_call.1} parent=5 // pred_check_branch
        %269 = sbr.rel (%p266) target = $region40
      $region39: #{tpu_custom_call.1} parent=5 // pred_region
        %s270 = ssub.s32 %s19, 1
        %s271 = sand.u32 %s46, 1
        %s272 = scalar_lea.sflag [#allocation4], %s271
        %s273 = sand.u32 %s46, 1
        %s274 = smul.addr %s273, 1024
        %s275 = scalar_lea.vmem [#allocation3], %s274
        // Predicated region
        $region41: #{tpu_custom_call.1} parent=39 // pred_check
          %p276 = pneg %p59
        $region42: #{tpu_custom_call.1} parent=39 // pred_check_branch
          %278 = sbr.rel (%p276) target = $region44
        $region43: #{tpu_custom_call.1} parent=39 // pred_region
          %280 = dma.done %s272, 16384
        $region44: #{tpu_custom_call.1} parent=39 // pred_fallthru
          _
        // Predicated region
        $region45: #{tpu_custom_call.1} parent=39 // pred_check
          %p281 = pneg %p80
        $region46: #{tpu_custom_call.1} parent=39 // pred_check_branch
          %283 = sbr.rel (%p281) target = $region48
        $region47: #{tpu_custom_call.1} parent=39 // pred_region
          %285 = dma.done [#allocation7], 8192
        $region48: #{tpu_custom_call.1} parent=39 // pred_fallthru
          _
        // Predicated region
        $region49: #{tpu_custom_call.1} parent=39 // pred_check
          %p286 = pneg %p101
        $region50: #{tpu_custom_call.1} parent=39 // pred_check_branch
          %288 = sbr.rel (%p286) target = $region52
        $region51: #{tpu_custom_call.1} parent=39 // pred_region
          %290 = dma.done [#allocation7], 32
        $region52: #{tpu_custom_call.1} parent=39 // pred_fallthru
          _
        // Predicated region
        $region53: #{tpu_custom_call.1} parent=39 // pred_check
          %p291 = pneg %p122
        $region54: #{tpu_custom_call.1} parent=39 // pred_check_branch
          %293 = sbr.rel (%p291) target = $region56
        $region55: #{tpu_custom_call.1} parent=39 // pred_region
          %295 = dma.done [#allocation10], 2048
        $region56: #{tpu_custom_call.1} parent=39 // pred_fallthru
          _
        %s296 = sand.u32 %s46, 1
        %s297 = scalar_lea.sflag [#allocation4], %s296
        %s298 = sand.u32 %s46, 1
        %s299 = smul.addr %s298, 1024
        %s300 = scalar_lea.vmem [#allocation3], %s299
        %p301 = pneg %p59
        %p302 = pneg %p56
        %p303 = pneg %p80
        %p304 = pneg %p77
        %p305 = pneg %p101
        %p306 = pneg %p98
        %p307 = pneg %p122
        %p308 = pneg %p119
        %p309 = pneg %p143
        %p310 = pneg %p140
        %p311 = pneg %p169
        %p312 = pneg %p166
        %s313 = sand.u32 %s156, 1
        %s314 = scalar_lea.sflag [#allocation5], %s313
        %s315 = sand.u32 %s156, 1
        %s316 = smul.addr %s315, 128
        %s317 = scalar_lea.vmem [#allocation11], %s316
        %s318 = smul.u32 32, %s28
        %s319 = smul.u32 4, %s29
        %s320 = ssub.s32 63, %s318
        %p321 = scmp.lt.s32.totalorder %s320, 32
        %s322 = scalar_select %p321, %s320, 32
        %s323 = smul.u32 8, %s322
        %s324 = smul.u32 %s323, 4
        %s325 = smul.u32 32, %s28
        %s326 = ssub.s32 63, %s325
        %p327 = scmp.lt.s32.totalorder %s326, 32
        %s328 = scalar_select %p327, %s326, 32
        %s329 = smul.u32 4, %s328
        %p330 = scmp.eq.s32.totalorder %s29, 0
        // Predicated region
        $region57: #{tpu_custom_call.1} parent=39 // pred_check
          %p331 = pneg %p330
        $region58: #{tpu_custom_call.1} parent=39 // pred_check_branch
          %333 = sbr.rel (%p331) target = $region60
        $region59: #{tpu_custom_call.1} parent=39 // pred_region
          %334 = vst [vmem:[#allocation2] sm:$0xff] 0.0
          %335 = vst [vmem:[#allocation2 + $0x8] sm:$0xff] 0.0
          %336 = vst [vmem:[#allocation2 + $0x10] sm:$0xff] 0.0
          %337 = vst [vmem:[#allocation2 + $0x18] sm:$0xff] 0.0
          %338 = vst [vmem:[#allocation2 + $0x20] sm:$0xff] 0.0
          %339 = vst [vmem:[#allocation2 + $0x28] sm:$0xff] 0.0
          %340 = vst [vmem:[#allocation2 + $0x30] sm:$0xff] 0.0
          %341 = vst [vmem:[#allocation2 + $0x38] sm:$0xff] 0.0
          %342 = vst [vmem:[#allocation2 + $0x40] sm:$0xff] 0.0
          %343 = vst [vmem:[#allocation2 + $0x48] sm:$0xff] 0.0
          %344 = vst [vmem:[#allocation2 + $0x50] sm:$0xff] 0.0
          %345 = vst [vmem:[#allocation2 + $0x58] sm:$0xff] 0.0
          %346 = vst [vmem:[#allocation2 + $0x60] sm:$0xff] 0.0
          %347 = vst [vmem:[#allocation2 + $0x68] sm:$0xff] 0.0
          %348 = vst [vmem:[#allocation2 + $0x70] sm:$0xff] 0.0
          %349 = vst [vmem:[#allocation2 + $0x78] sm:$0xff] 0.0
          %350 = vst [vmem:[#allocation2 + $0x80] sm:$0xff] 0.0
          %351 = vst [vmem:[#allocation2 + $0x88] sm:$0xff] 0.0
          %352 = vst [vmem:[#allocation2 + $0x90] sm:$0xff] 0.0
          %353 = vst [vmem:[#allocation2 + $0x98] sm:$0xff] 0.0
          %354 = vst [vmem:[#allocation2 + $0xa0] sm:$0xff] 0.0
          %355 = vst [vmem:[#allocation2 + $0xa8] sm:$0xff] 0.0
          %356 = vst [vmem:[#allocation2 + $0xb0] sm:$0xff] 0.0
          %357 = vst [vmem:[#allocation2 + $0xb8] sm:$0xff] 0.0
          %358 = vst [vmem:[#allocation2 + $0xc0] sm:$0xff] 0.0
          %359 = vst [vmem:[#allocation2 + $0xc8] sm:$0xff] 0.0
          %360 = vst [vmem:[#allocation2 + $0xd0] sm:$0xff] 0.0
          %361 = vst [vmem:[#allocation2 + $0xd8] sm:$0xff] 0.0
          %362 = vst [vmem:[#allocation2 + $0xe0] sm:$0xff] 0.0
          %363 = vst [vmem:[#allocation2 + $0xe8] sm:$0xff] 0.0
          %364 = vst [vmem:[#allocation2 + $0xf0] sm:$0xff] 0.0
          %365 = vst [vmem:[#allocation2 + $0xf8] sm:$0xff] 0.0
          %366 = vst [vmem:[#allocation2 + $0x100] sm:$0xff] 0.0
          %367 = vst [vmem:[#allocation2 + $0x108] sm:$0xff] 0.0
          %368 = vst [vmem:[#allocation2 + $0x110] sm:$0xff] 0.0
          %369 = vst [vmem:[#allocation2 + $0x118] sm:$0xff] 0.0
          %370 = vst [vmem:[#allocation2 + $0x120] sm:$0xff] 0.0
          %371 = vst [vmem:[#allocation2 + $0x128] sm:$0xff] 0.0
          %372 = vst [vmem:[#allocation2 + $0x130] sm:$0xff] 0.0
          %373 = vst [vmem:[#allocation2 + $0x138] sm:$0xff] 0.0
          %374 = vst [vmem:[#allocation2 + $0x140] sm:$0xff] 0.0
          %375 = vst [vmem:[#allocation2 + $0x148] sm:$0xff] 0.0
          %376 = vst [vmem:[#allocation2 + $0x150] sm:$0xff] 0.0
          %377 = vst [vmem:[#allocation2 + $0x158] sm:$0xff] 0.0
          %378 = vst [vmem:[#allocation2 + $0x160] sm:$0xff] 0.0
          %379 = vst [vmem:[#allocation2 + $0x168] sm:$0xff] 0.0
          %380 = vst [vmem:[#allocation2 + $0x170] sm:$0xff] 0.0
          %381 = vst [vmem:[#allocation2 + $0x178] sm:$0xff] 0.0
          %382 = vst [vmem:[#allocation2 + $0x180] sm:$0xff] 0.0
          %383 = vst [vmem:[#allocation2 + $0x188] sm:$0xff] 0.0
          %384 = vst [vmem:[#allocation2 + $0x190] sm:$0xff] 0.0
          %385 = vst [vmem:[#allocation2 + $0x198] sm:$0xff] 0.0
          %386 = vst [vmem:[#allocation2 + $0x1a0] sm:$0xff] 0.0
          %387 = vst [vmem:[#allocation2 + $0x1a8] sm:$0xff] 0.0
          %388 = vst [vmem:[#allocation2 + $0x1b0] sm:$0xff] 0.0
          %389 = vst [vmem:[#allocation2 + $0x1b8] sm:$0xff] 0.0
          %390 = vst [vmem:[#allocation2 + $0x1c0] sm:$0xff] 0.0
          %391 = vst [vmem:[#allocation2 + $0x1c8] sm:$0xff] 0.0
          %392 = vst [vmem:[#allocation2 + $0x1d0] sm:$0xff] 0.0
          %393 = vst [vmem:[#allocation2 + $0x1d8] sm:$0xff] 0.0
          %394 = vst [vmem:[#allocation2 + $0x1e0] sm:$0xff] 0.0
          %395 = vst [vmem:[#allocation2 + $0x1e8] sm:$0xff] 0.0
          %396 = vst [vmem:[#allocation2 + $0x1f0] sm:$0xff] 0.0
          %397 = vst [vmem:[#allocation2 + $0x1f8] sm:$0xff] 0.0
        $region60: #{tpu_custom_call.1} parent=39 // pred_fallthru
          _
        %v398 = vld [vmem:[#allocation2] sm:$0xff]
        %v399 = vld [vmem:[#allocation2 + $0x8] sm:$0xff]
        %v400 = vld [vmem:[#allocation2 + $0x10] sm:$0xff]
        %v401 = vld [vmem:[#allocation2 + $0x18] sm:$0xff]
        %v402 = vld [vmem:[#allocation2 + $0x20] sm:$0xff]
        %v403 = vld [vmem:[#allocation2 + $0x28] sm:$0xff]
        %v404 = vld [vmem:[#allocation2 + $0x30] sm:$0xff]
        %v405 = vld [vmem:[#allocation2 + $0x38] sm:$0xff]
        %v406 = vld [vmem:[#allocation2 + $0x40] sm:$0xff]
        %v407 = vld [vmem:[#allocation2 + $0x48] sm:$0xff]
        %v408 = vld [vmem:[#allocation2 + $0x50] sm:$0xff]
        %v409 = vld [vmem:[#allocation2 + $0x58] sm:$0xff]
        %v410 = vld [vmem:[#allocation2 + $0x60] sm:$0xff]
        %v411 = vld [vmem:[#allocation2 + $0x68] sm:$0xff]
        %v412 = vld [vmem:[#allocation2 + $0x70] sm:$0xff]
        %v413 = vld [vmem:[#allocation2 + $0x78] sm:$0xff]
        %v414 = vld [vmem:[#allocation2 + $0x80] sm:$0xff]
        %v415 = vld [vmem:[#allocation2 + $0x88] sm:$0xff]
        %v416 = vld [vmem:[#allocation2 + $0x90] sm:$0xff]
        %v417 = vld [vmem:[#allocation2 + $0x98] sm:$0xff]
        %v418 = vld [vmem:[#allocation2 + $0xa0] sm:$0xff]
        %v419 = vld [vmem:[#allocation2 + $0xa8] sm:$0xff]
        %v420 = vld [vmem:[#allocation2 + $0xb0] sm:$0xff]
        %v421 = vld [vmem:[#allocation2 + $0xb8] sm:$0xff]
        %v422 = vld [vmem:[#allocation2 + $0xc0] sm:$0xff]
        %v423 = vld [vmem:[#allocation2 + $0xc8] sm:$0xff]
        %v424 = vld [vmem:[#allocation2 + $0xd0] sm:$0xff]
        %v425 = vld [vmem:[#allocation2 + $0xd8] sm:$0xff]
        %v426 = vld [vmem:[#allocation2 + $0xe0] sm:$0xff]
        %v427 = vld [vmem:[#allocation2 + $0xe8] sm:$0xff]
        %v428 = vld [vmem:[#allocation2 + $0xf0] sm:$0xff]
        %v429 = vld [vmem:[#allocation2 + $0xf8] sm:$0xff]
        %v430 = vld [vmem:[#allocation2 + $0x100] sm:$0xff]
        %v431 = vld [vmem:[#allocation2 + $0x108] sm:$0xff]
        %v432 = vld [vmem:[#allocation2 + $0x110] sm:$0xff]
        %v433 = vld [vmem:[#allocation2 + $0x118] sm:$0xff]
        %v434 = vld [vmem:[#allocation2 + $0x120] sm:$0xff]
        %v435 = vld [vmem:[#allocation2 + $0x128] sm:$0xff]
        %v436 = vld [vmem:[#allocation2 + $0x130] sm:$0xff]
        %v437 = vld [vmem:[#allocation2 + $0x138] sm:$0xff]
        %v438 = vld [vmem:[#allocation2 + $0x140] sm:$0xff]
        %v439 = vld [vmem:[#allocation2 + $0x148] sm:$0xff]
        %v440 = vld [vmem:[#allocation2 + $0x150] sm:$0xff]
        %v441 = vld [vmem:[#allocation2 + $0x158] sm:$0xff]
        %v442 = vld [vmem:[#allocation2 + $0x160] sm:$0xff]
        %v443 = vld [vmem:[#allocation2 + $0x168] sm:$0xff]
        %v444 = vld [vmem:[#allocation2 + $0x170] sm:$0xff]
        %v445 = vld [vmem:[#allocation2 + $0x178] sm:$0xff]
        %v446 = vld [vmem:[#allocation2 + $0x180] sm:$0xff]
        %v447 = vld [vmem:[#allocation2 + $0x188] sm:$0xff]
        %v448 = vld [vmem:[#allocation2 + $0x190] sm:$0xff]
        %v449 = vld [vmem:[#allocation2 + $0x198] sm:$0xff]
        %v450 = vld [vmem:[#allocation2 + $0x1a0] sm:$0xff]
        %v451 = vld [vmem:[#allocation2 + $0x1a8] sm:$0xff]
        %v452 = vld [vmem:[#allocation2 + $0x1b0] sm:$0xff]
        %v453 = vld [vmem:[#allocation2 + $0x1b8] sm:$0xff]
        %v454 = vld [vmem:[#allocation2 + $0x1c0] sm:$0xff]
        %v455 = vld [vmem:[#allocation2 + $0x1c8] sm:$0xff]
        %v456 = vld [vmem:[#allocation2 + $0x1d0] sm:$0xff]
        %v457 = vld [vmem:[#allocation2 + $0x1d8] sm:$0xff]
        %v458 = vld [vmem:[#allocation2 + $0x1e0] sm:$0xff]
        %v459 = vld [vmem:[#allocation2 + $0x1e8] sm:$0xff]
        %v460 = vld [vmem:[#allocation2 + $0x1f0] sm:$0xff]
        %v461 = vld [vmem:[#allocation2 + $0x1f8] sm:$0xff]
        %v462 = vld [vmem:[%s275] sm:$0xff]
        %v463 = vld [vmem:[%s275 + $0x8] sm:$0xff]
        %v464 = vld [vmem:[%s275 + $0x10] sm:$0xff]
        %v465 = vld [vmem:[%s275 + $0x18] sm:$0xff]
        %v466 = vld [vmem:[%s275 + $0x20] sm:$0xff]
        %v467 = vld [vmem:[%s275 + $0x28] sm:$0xff]
        %v468 = vld [vmem:[%s275 + $0x30] sm:$0xff]
        %v469 = vld [vmem:[%s275 + $0x38] sm:$0xff]
        %v470 = vld [vmem:[%s275 + $0x40] sm:$0xff]
        %v471 = vld [vmem:[%s275 + $0x48] sm:$0xff]
        %v472 = vld [vmem:[%s275 + $0x50] sm:$0xff]
        %v473 = vld [vmem:[%s275 + $0x58] sm:$0xff]
        %v474 = vld [vmem:[%s275 + $0x60] sm:$0xff]
        %v475 = vld [vmem:[%s275 + $0x68] sm:$0xff]
        %v476 = vld [vmem:[%s275 + $0x70] sm:$0xff]
        %v477 = vld [vmem:[%s275 + $0x78] sm:$0xff]
        %v478 = vld [vmem:[%s275 + $0x80] sm:$0xff]
        %v479 = vld [vmem:[%s275 + $0x88] sm:$0xff]
        %v480 = vld [vmem:[%s275 + $0x90] sm:$0xff]
        %v481 = vld [vmem:[%s275 + $0x98] sm:$0xff]
        %v482 = vld [vmem:[%s275 + $0xa0] sm:$0xff]
        %v483 = vld [vmem:[%s275 + $0xa8] sm:$0xff]
        %v484 = vld [vmem:[%s275 + $0xb0] sm:$0xff]
        %v485 = vld [vmem:[%s275 + $0xb8] sm:$0xff]
        %v486 = vld [vmem:[%s275 + $0xc0] sm:$0xff]
        %v487 = vld [vmem:[%s275 + $0xc8] sm:$0xff]
        %v488 = vld [vmem:[%s275 + $0xd0] sm:$0xff]
        %v489 = vld [vmem:[%s275 + $0xd8] sm:$0xff]
        %v490 = vld [vmem:[%s275 + $0xe0] sm:$0xff]
        %v491 = vld [vmem:[%s275 + $0xe8] sm:$0xff]
        %v492 = vld [vmem:[%s275 + $0xf0] sm:$0xff]
        %v493 = vld [vmem:[%s275 + $0xf8] sm:$0xff]
        %v494 = vld [vmem:[%s275 + $0x100] sm:$0xff]
        %v495 = vld [vmem:[%s275 + $0x108] sm:$0xff]
        %v496 = vld [vmem:[%s275 + $0x110] sm:$0xff]
        %v497 = vld [vmem:[%s275 + $0x118] sm:$0xff]
        %v498 = vld [vmem:[%s275 + $0x120] sm:$0xff]
        %v499 = vld [vmem:[%s275 + $0x128] sm:$0xff]
        %v500 = vld [vmem:[%s275 + $0x130] sm:$0xff]
        %v501 = vld [vmem:[%s275 + $0x138] sm:$0xff]
        %v502 = vld [vmem:[%s275 + $0x140] sm:$0xff]
        %v503 = vld [vmem:[%s275 + $0x148] sm:$0xff]
        %v504 = vld [vmem:[%s275 + $0x150] sm:$0xff]
        %v505 = vld [vmem:[%s275 + $0x158] sm:$0xff]
        %v506 = vld [vmem:[%s275 + $0x160] sm:$0xff]
        %v507 = vld [vmem:[%s275 + $0x168] sm:$0xff]
        %v508 = vld [vmem:[%s275 + $0x170] sm:$0xff]
        %v509 = vld [vmem:[%s275 + $0x178] sm:$0xff]
        %v510 = vld [vmem:[%s275 + $0x180] sm:$0xff]
        %v511 = vld [vmem:[%s275 + $0x188] sm:$0xff]
        %v512 = vld [vmem:[%s275 + $0x190] sm:$0xff]
        %v513 = vld [vmem:[%s275 + $0x198] sm:$0xff]
        %v514 = vld [vmem:[%s275 + $0x1a0] sm:$0xff]
        %v515 = vld [vmem:[%s275 + $0x1a8] sm:$0xff]
        %v516 = vld [vmem:[%s275 + $0x1b0] sm:$0xff]
        %v517 = vld [vmem:[%s275 + $0x1b8] sm:$0xff]
        %v518 = vld [vmem:[%s275 + $0x1c0] sm:$0xff]
        %v519 = vld [vmem:[%s275 + $0x1c8] sm:$0xff]
        %v520 = vld [vmem:[%s275 + $0x1d0] sm:$0xff]
        %v521 = vld [vmem:[%s275 + $0x1d8] sm:$0xff]
        %v522 = vld [vmem:[%s275 + $0x1e0] sm:$0xff]
        %v523 = vld [vmem:[%s275 + $0x1e8] sm:$0xff]
        %v524 = vld [vmem:[%s275 + $0x1f0] sm:$0xff]
        %v525 = vld [vmem:[%s275 + $0x1f8] sm:$0xff]
        %v526 = vld [vmem:[%s275 + $0x200] sm:$0xff]
        %v527 = vld [vmem:[%s275 + $0x208] sm:$0xff]
        %v528 = vld [vmem:[%s275 + $0x210] sm:$0xff]
        %v529 = vld [vmem:[%s275 + $0x218] sm:$0xff]
        %v530 = vld [vmem:[%s275 + $0x220] sm:$0xff]
        %v531 = vld [vmem:[%s275 + $0x228] sm:$0xff]
        %v532 = vld [vmem:[%s275 + $0x230] sm:$0xff]
        %v533 = vld [vmem:[%s275 + $0x238] sm:$0xff]
        %v534 = vld [vmem:[%s275 + $0x240] sm:$0xff]
        %v535 = vld [vmem:[%s275 + $0x248] sm:$0xff]
        %v536 = vld [vmem:[%s275 + $0x250] sm:$0xff]
        %v537 = vld [vmem:[%s275 + $0x258] sm:$0xff]
        %v538 = vld [vmem:[%s275 + $0x260] sm:$0xff]
        %v539 = vld [vmem:[%s275 + $0x268] sm:$0xff]
        %v540 = vld [vmem:[%s275 + $0x270] sm:$0xff]
        %v541 = vld [vmem:[%s275 + $0x278] sm:$0xff]
        %v542 = vld [vmem:[%s275 + $0x280] sm:$0xff]
        %v543 = vld [vmem:[%s275 + $0x288] sm:$0xff]
        %v544 = vld [vmem:[%s275 + $0x290] sm:$0xff]
        %v545 = vld [vmem:[%s275 + $0x298] sm:$0xff]
        %v546 = vld [vmem:[%s275 + $0x2a0] sm:$0xff]
        %v547 = vld [vmem:[%s275 + $0x2a8] sm:$0xff]
        %v548 = vld [vmem:[%s275 + $0x2b0] sm:$0xff]
        %v549 = vld [vmem:[%s275 + $0x2b8] sm:$0xff]
        %v550 = vld [vmem:[%s275 + $0x2c0] sm:$0xff]
        %v551 = vld [vmem:[%s275 + $0x2c8] sm:$0xff]
        %v552 = vld [vmem:[%s275 + $0x2d0] sm:$0xff]
        %v553 = vld [vmem:[%s275 + $0x2d8] sm:$0xff]
        %v554 = vld [vmem:[%s275 + $0x2e0] sm:$0xff]
        %v555 = vld [vmem:[%s275 + $0x2e8] sm:$0xff]
        %v556 = vld [vmem:[%s275 + $0x2f0] sm:$0xff]
        %v557 = vld [vmem:[%s275 + $0x2f8] sm:$0xff]
        %v558 = vld [vmem:[%s275 + $0x300] sm:$0xff]
        %v559 = vld [vmem:[%s275 + $0x308] sm:$0xff]
        %v560 = vld [vmem:[%s275 + $0x310] sm:$0xff]
        %v561 = vld [vmem:[%s275 + $0x318] sm:$0xff]
        %v562 = vld [vmem:[%s275 + $0x320] sm:$0xff]
        %v563 = vld [vmem:[%s275 + $0x328] sm:$0xff]
        %v564 = vld [vmem:[%s275 + $0x330] sm:$0xff]
        %v565 = vld [vmem:[%s275 + $0x338] sm:$0xff]
        %v566 = vld [vmem:[%s275 + $0x340] sm:$0xff]
        %v567 = vld [vmem:[%s275 + $0x348] sm:$0xff]
        %v568 = vld [vmem:[%s275 + $0x350] sm:$0xff]
        %v569 = vld [vmem:[%s275 + $0x358] sm:$0xff]
        %v570 = vld [vmem:[%s275 + $0x360] sm:$0xff]
        %v571 = vld [vmem:[%s275 + $0x368] sm:$0xff]
        %v572 = vld [vmem:[%s275 + $0x370] sm:$0xff]
        %v573 = vld [vmem:[%s275 + $0x378] sm:$0xff]
        %v574 = vld [vmem:[%s275 + $0x380] sm:$0xff]
        %v575 = vld [vmem:[%s275 + $0x388] sm:$0xff]
        %v576 = vld [vmem:[%s275 + $0x390] sm:$0xff]
        %v577 = vld [vmem:[%s275 + $0x398] sm:$0xff]
        %v578 = vld [vmem:[%s275 + $0x3a0] sm:$0xff]
        %v579 = vld [vmem:[%s275 + $0x3a8] sm:$0xff]
        %v580 = vld [vmem:[%s275 + $0x3b0] sm:$0xff]
        %v581 = vld [vmem:[%s275 + $0x3b8] sm:$0xff]
        %v582 = vld [vmem:[%s275 + $0x3c0] sm:$0xff]
        %v583 = vld [vmem:[%s275 + $0x3c8] sm:$0xff]
        %v584 = vld [vmem:[%s275 + $0x3d0] sm:$0xff]
        %v585 = vld [vmem:[%s275 + $0x3d8] sm:$0xff]
        %v586 = vld [vmem:[%s275 + $0x3e0] sm:$0xff]
        %v587 = vld [vmem:[%s275 + $0x3e8] sm:$0xff]
        %v588 = vld [vmem:[%s275 + $0x3f0] sm:$0xff]
        %v589 = vld [vmem:[%s275 + $0x3f8] sm:$0xff]
        %v590 = vpack.c.bf16 %v466, %v462
        %v591 = vpack.c.bf16 %v467, %v463
        %v592 = vpack.c.bf16 %v468, %v464
        %v593 = vpack.c.bf16 %v469, %v465
        %v594 = vpack.c.bf16 %v474, %v470
        %v595 = vpack.c.bf16 %v475, %v471
        %v596 = vpack.c.bf16 %v476, %v472
        %v597 = vpack.c.bf16 %v477, %v473
        %v598 = vpack.c.bf16 %v482, %v478
        %v599 = vpack.c.bf16 %v483, %v479
        %v600 = vpack.c.bf16 %v484, %v480
        %v601 = vpack.c.bf16 %v485, %v481
        %v602 = vpack.c.bf16 %v490, %v486
        %v603 = vpack.c.bf16 %v491, %v487
        %v604 = vpack.c.bf16 %v492, %v488
        %v605 = vpack.c.bf16 %v493, %v489
        %v606 = vpack.c.bf16 %v498, %v494
        %v607 = vpack.c.bf16 %v499, %v495
        %v608 = vpack.c.bf16 %v500, %v496
        %v609 = vpack.c.bf16 %v501, %v497
        %v610 = vpack.c.bf16 %v506, %v502
        %v611 = vpack.c.bf16 %v507, %v503
        %v612 = vpack.c.bf16 %v508, %v504
        %v613 = vpack.c.bf16 %v509, %v505
        %v614 = vpack.c.bf16 %v514, %v510
        %v615 = vpack.c.bf16 %v515, %v511
        %v616 = vpack.c.bf16 %v516, %v512
        %v617 = vpack.c.bf16 %v517, %v513
        %v618 = vpack.c.bf16 %v522, %v518
        %v619 = vpack.c.bf16 %v523, %v519
        %v620 = vpack.c.bf16 %v524, %v520
        %v621 = vpack.c.bf16 %v525, %v521
        %v622 = vpack.c.bf16 %v530, %v526
        %v623 = vpack.c.bf16 %v531, %v527
        %v624 = vpack.c.bf16 %v532, %v528
        %v625 = vpack.c.bf16 %v533, %v529
        %v626 = vpack.c.bf16 %v538, %v534
        %v627 = vpack.c.bf16 %v539, %v535
        %v628 = vpack.c.bf16 %v540, %v536
        %v629 = vpack.c.bf16 %v541, %v537
        %v630 = vpack.c.bf16 %v546, %v542
        %v631 = vpack.c.bf16 %v547, %v543
        %v632 = vpack.c.bf16 %v548, %v544
        %v633 = vpack.c.bf16 %v549, %v545
        %v634 = vpack.c.bf16 %v554, %v550
        %v635 = vpack.c.bf16 %v555, %v551
        %v636 = vpack.c.bf16 %v556, %v552
        %v637 = vpack.c.bf16 %v557, %v553
        %v638 = vpack.c.bf16 %v562, %v558
        %v639 = vpack.c.bf16 %v563, %v559
        %v640 = vpack.c.bf16 %v564, %v560
        %v641 = vpack.c.bf16 %v565, %v561
        %v642 = vpack.c.bf16 %v570, %v566
        %v643 = vpack.c.bf16 %v571, %v567
        %v644 = vpack.c.bf16 %v572, %v568
        %v645 = vpack.c.bf16 %v573, %v569
        %v646 = vpack.c.bf16 %v578, %v574
        %v647 = vpack.c.bf16 %v579, %v575
        %v648 = vpack.c.bf16 %v580, %v576
        %v649 = vpack.c.bf16 %v581, %v577
        %v650 = vpack.c.bf16 %v586, %v582
        %v651 = vpack.c.bf16 %v587, %v583
        %v652 = vpack.c.bf16 %v588, %v584
        %v653 = vpack.c.bf16 %v589, %v585
        %v654 = vld [vmem:[#allocation6] sm:$0xff]
        %v655 = vld [vmem:[#allocation6 + $0x8] sm:$0xff]
        %v656 = vld [vmem:[#allocation6 + $0x10] sm:$0xff]
        %v657 = vld [vmem:[#allocation6 + $0x18] sm:$0xff]
        %v658 = vld [vmem:[#allocation6 + $0x20] sm:$0xff]
        %v659 = vld [vmem:[#allocation6 + $0x28] sm:$0xff]
        %v660 = vld [vmem:[#allocation6 + $0x30] sm:$0xff]
        %v661 = vld [vmem:[#allocation6 + $0x38] sm:$0xff]
        %v662 = vld [vmem:[#allocation6 + $0x40] sm:$0xff]
        %v663 = vld [vmem:[#allocation6 + $0x48] sm:$0xff]
        %v664 = vld [vmem:[#allocation6 + $0x50] sm:$0xff]
        %v665 = vld [vmem:[#allocation6 + $0x58] sm:$0xff]
        %v666 = vld [vmem:[#allocation6 + $0x60] sm:$0xff]
        %v667 = vld [vmem:[#allocation6 + $0x68] sm:$0xff]
        %v668 = vld [vmem:[#allocation6 + $0x70] sm:$0xff]
        %v669 = vld [vmem:[#allocation6 + $0x78] sm:$0xff]
        %v670 = vld [vmem:[#allocation6 + $0x80] sm:$0xff]
        %v671 = vld [vmem:[#allocation6 + $0x88] sm:$0xff]
        %v672 = vld [vmem:[#allocation6 + $0x90] sm:$0xff]
        %v673 = vld [vmem:[#allocation6 + $0x98] sm:$0xff]
        %v674 = vld [vmem:[#allocation6 + $0xa0] sm:$0xff]
        %v675 = vld [vmem:[#allocation6 + $0xa8] sm:$0xff]
        %v676 = vld [vmem:[#allocation6 + $0xb0] sm:$0xff]
        %v677 = vld [vmem:[#allocation6 + $0xb8] sm:$0xff]
        %v678 = vld [vmem:[#allocation6 + $0xc0] sm:$0xff]
        %v679 = vld [vmem:[#allocation6 + $0xc8] sm:$0xff]
        %v680 = vld [vmem:[#allocation6 + $0xd0] sm:$0xff]
        %v681 = vld [vmem:[#allocation6 + $0xd8] sm:$0xff]
        %v682 = vld [vmem:[#allocation6 + $0xe0] sm:$0xff]
        %v683 = vld [vmem:[#allocation6 + $0xe8] sm:$0xff]
        %v684 = vld [vmem:[#allocation6 + $0xf0] sm:$0xff]
        %v685 = vld [vmem:[#allocation6 + $0xf8] sm:$0xff]
        %v686 = vld [vmem:[#allocation6 + $0x100] sm:$0xff]
        %v687 = vld [vmem:[#allocation6 + $0x108] sm:$0xff]
        %v688 = vld [vmem:[#allocation6 + $0x110] sm:$0xff]
        %v689 = vld [vmem:[#allocation6 + $0x118] sm:$0xff]
        %v690 = vld [vmem:[#allocation6 + $0x120] sm:$0xff]
        %v691 = vld [vmem:[#allocation6 + $0x128] sm:$0xff]
        %v692 = vld [vmem:[#allocation6 + $0x130] sm:$0xff]
        %v693 = vld [vmem:[#allocation6 + $0x138] sm:$0xff]
        %v694 = vld [vmem:[#allocation6 + $0x140] sm:$0xff]
        %v695 = vld [vmem:[#allocation6 + $0x148] sm:$0xff]
        %v696 = vld [vmem:[#allocation6 + $0x150] sm:$0xff]
        %v697 = vld [vmem:[#allocation6 + $0x158] sm:$0xff]
        %v698 = vld [vmem:[#allocation6 + $0x160] sm:$0xff]
        %v699 = vld [vmem:[#allocation6 + $0x168] sm:$0xff]
        %v700 = vld [vmem:[#allocation6 + $0x170] sm:$0xff]
        %v701 = vld [vmem:[#allocation6 + $0x178] sm:$0xff]
        %v702 = vld [vmem:[#allocation6 + $0x180] sm:$0xff]
        %v703 = vld [vmem:[#allocation6 + $0x188] sm:$0xff]
        %v704 = vld [vmem:[#allocation6 + $0x190] sm:$0xff]
        %v705 = vld [vmem:[#allocation6 + $0x198] sm:$0xff]
        %v706 = vld [vmem:[#allocation6 + $0x1a0] sm:$0xff]
        %v707 = vld [vmem:[#allocation6 + $0x1a8] sm:$0xff]
        %v708 = vld [vmem:[#allocation6 + $0x1b0] sm:$0xff]
        %v709 = vld [vmem:[#allocation6 + $0x1b8] sm:$0xff]
        %v710 = vld [vmem:[#allocation6 + $0x1c0] sm:$0xff]
        %v711 = vld [vmem:[#allocation6 + $0x1c8] sm:$0xff]
        %v712 = vld [vmem:[#allocation6 + $0x1d0] sm:$0xff]
        %v713 = vld [vmem:[#allocation6 + $0x1d8] sm:$0xff]
        %v714 = vld [vmem:[#allocation6 + $0x1e0] sm:$0xff]
        %v715 = vld [vmem:[#allocation6 + $0x1e8] sm:$0xff]
        %v716 = vld [vmem:[#allocation6 + $0x1f0] sm:$0xff]
        %v717 = vld [vmem:[#allocation6 + $0x1f8] sm:$0xff]
        %v782 = vunpack.c.l.b16 %v654
        %v783 = vunpack.c.h.b16 %v654
        %v784 = vunpack.c.l.b16 %v655
        %v785 = vunpack.c.h.b16 %v655
        %v786 = vunpack.c.l.b16 %v656
        %v787 = vunpack.c.h.b16 %v656
        %v788 = vunpack.c.l.b16 %v657
        %v789 = vunpack.c.h.b16 %v657
        %v790 = vunpack.c.l.b16 %v658
        %v791 = vunpack.c.h.b16 %v658
        %v792 = vunpack.c.l.b16 %v659
        %v793 = vunpack.c.h.b16 %v659
        %v794 = vunpack.c.l.b16 %v660
        %v795 = vunpack.c.h.b16 %v660
        %v796 = vunpack.c.l.b16 %v661
        %v797 = vunpack.c.h.b16 %v661
        %v798 = vunpack.c.l.b16 %v662
        %v799 = vunpack.c.h.b16 %v662
        %v800 = vunpack.c.l.b16 %v663
        %v801 = vunpack.c.h.b16 %v663
        %v802 = vunpack.c.l.b16 %v664
        %v803 = vunpack.c.h.b16 %v664
        %v804 = vunpack.c.l.b16 %v665
        %v805 = vunpack.c.h.b16 %v665
        %v806 = vunpack.c.l.b16 %v666
        %v807 = vunpack.c.h.b16 %v666
        %v808 = vunpack.c.l.b16 %v667
        %v809 = vunpack.c.h.b16 %v667
        %v810 = vunpack.c.l.b16 %v668
        %v811 = vunpack.c.h.b16 %v668
        %v812 = vunpack.c.l.b16 %v669
        %v813 = vunpack.c.h.b16 %v669
        %v814 = vunpack.c.l.b16 %v670
        %v815 = vunpack.c.h.b16 %v670
        %v816 = vunpack.c.l.b16 %v671
        %v817 = vunpack.c.h.b16 %v671
        %v818 = vunpack.c.l.b16 %v672
        %v819 = vunpack.c.h.b16 %v672
        %v820 = vunpack.c.l.b16 %v673
        %v821 = vunpack.c.h.b16 %v673
        %v822 = vunpack.c.l.b16 %v674
        %v823 = vunpack.c.h.b16 %v674
        %v824 = vunpack.c.l.b16 %v675
        %v825 = vunpack.c.h.b16 %v675
        %v826 = vunpack.c.l.b16 %v676
        %v827 = vunpack.c.h.b16 %v676
        %v828 = vunpack.c.l.b16 %v677
        %v829 = vunpack.c.h.b16 %v677
        %v830 = vunpack.c.l.b16 %v678
        %v831 = vunpack.c.h.b16 %v678
        %v832 = vunpack.c.l.b16 %v679
        %v833 = vunpack.c.h.b16 %v679
        %v834 = vunpack.c.l.b16 %v680
        %v835 = vunpack.c.h.b16 %v680
        %v836 = vunpack.c.l.b16 %v681
        %v837 = vunpack.c.h.b16 %v681
        %v838 = vunpack.c.l.b16 %v682
        %v839 = vunpack.c.h.b16 %v682
        %v840 = vunpack.c.l.b16 %v683
        %v841 = vunpack.c.h.b16 %v683
        %v842 = vunpack.c.l.b16 %v684
        %v843 = vunpack.c.h.b16 %v684
        %v844 = vunpack.c.l.b16 %v685
        %v845 = vunpack.c.h.b16 %v685
        %v846 = vunpack.c.l.b16 %v686
        %v847 = vunpack.c.h.b16 %v686
        %v848 = vunpack.c.l.b16 %v687
        %v849 = vunpack.c.h.b16 %v687
        %v850 = vunpack.c.l.b16 %v688
        %v851 = vunpack.c.h.b16 %v688
        %v852 = vunpack.c.l.b16 %v689
        %v853 = vunpack.c.h.b16 %v689
        %v854 = vunpack.c.l.b16 %v690
        %v855 = vunpack.c.h.b16 %v690
        %v856 = vunpack.c.l.b16 %v691
        %v857 = vunpack.c.h.b16 %v691
        %v858 = vunpack.c.l.b16 %v692
        %v859 = vunpack.c.h.b16 %v692
        %v860 = vunpack.c.l.b16 %v693
        %v861 = vunpack.c.h.b16 %v693
        %v862 = vunpack.c.l.b16 %v694
        %v863 = vunpack.c.h.b16 %v694
        %v864 = vunpack.c.l.b16 %v695
        %v865 = vunpack.c.h.b16 %v695
        %v866 = vunpack.c.l.b16 %v696
        %v867 = vunpack.c.h.b16 %v696
        %v868 = vunpack.c.l.b16 %v697
        %v869 = vunpack.c.h.b16 %v697
        %v870 = vunpack.c.l.b16 %v698
        %v871 = vunpack.c.h.b16 %v698
        %v872 = vunpack.c.l.b16 %v699
        %v873 = vunpack.c.h.b16 %v699
        %v874 = vunpack.c.l.b16 %v700
        %v875 = vunpack.c.h.b16 %v700
        %v876 = vunpack.c.l.b16 %v701
        %v877 = vunpack.c.h.b16 %v701
        %v878 = vunpack.c.l.b16 %v702
        %v879 = vunpack.c.h.b16 %v702
        %v880 = vunpack.c.l.b16 %v703
        %v881 = vunpack.c.h.b16 %v703
        %v882 = vunpack.c.l.b16 %v704
        %v883 = vunpack.c.h.b16 %v704
        %v884 = vunpack.c.l.b16 %v705
        %v885 = vunpack.c.h.b16 %v705
        %v886 = vunpack.c.l.b16 %v706
        %v887 = vunpack.c.h.b16 %v706
        %v888 = vunpack.c.l.b16 %v707
        %v889 = vunpack.c.h.b16 %v707
        %v890 = vunpack.c.l.b16 %v708
        %v891 = vunpack.c.h.b16 %v708
        %v892 = vunpack.c.l.b16 %v709
        %v893 = vunpack.c.h.b16 %v709
        %v894 = vunpack.c.l.b16 %v710
        %v895 = vunpack.c.h.b16 %v710
        %v896 = vunpack.c.l.b16 %v711
        %v897 = vunpack.c.h.b16 %v711
        %v898 = vunpack.c.l.b16 %v712
        %v899 = vunpack.c.h.b16 %v712
        %v900 = vunpack.c.l.b16 %v713
        %v901 = vunpack.c.h.b16 %v713
        %v902 = vunpack.c.l.b16 %v714
        %v903 = vunpack.c.h.b16 %v714
        %v904 = vunpack.c.l.b16 %v715
        %v905 = vunpack.c.h.b16 %v715
        %v906 = vunpack.c.l.b16 %v716
        %v907 = vunpack.c.h.b16 %v716
        %v908 = vunpack.c.l.b16 %v717
        %v909 = vunpack.c.h.b16 %v717
        %v910 = vpack.c.b16 %v784, %v782
        %v911 = vpack.c.b16 %v785, %v783
        %v912 = vpack.c.b16 %v788, %v786
        %v913 = vpack.c.b16 %v789, %v787
        %v914 = vpack.c.b16 %v792, %v790
        %v915 = vpack.c.b16 %v793, %v791
        %v916 = vpack.c.b16 %v796, %v794
        %v917 = vpack.c.b16 %v797, %v795
        %v918 = vpack.c.b16 %v800, %v798
        %v919 = vpack.c.b16 %v801, %v799
        %v920 = vpack.c.b16 %v804, %v802
        %v921 = vpack.c.b16 %v805, %v803
        %v922 = vpack.c.b16 %v808, %v806
        %v923 = vpack.c.b16 %v809, %v807
        %v924 = vpack.c.b16 %v812, %v810
        %v925 = vpack.c.b16 %v813, %v811
        %v926 = vpack.c.b16 %v816, %v814
        %v927 = vpack.c.b16 %v817, %v815
        %v928 = vpack.c.b16 %v820, %v818
        %v929 = vpack.c.b16 %v821, %v819
        %v930 = vpack.c.b16 %v824, %v822
        %v931 = vpack.c.b16 %v825, %v823
        %v932 = vpack.c.b16 %v828, %v826
        %v933 = vpack.c.b16 %v829, %v827
        %v934 = vpack.c.b16 %v832, %v830
        %v935 = vpack.c.b16 %v833, %v831
        %v936 = vpack.c.b16 %v836, %v834
        %v937 = vpack.c.b16 %v837, %v835
        %v938 = vpack.c.b16 %v840, %v838
        %v939 = vpack.c.b16 %v841, %v839
        %v940 = vpack.c.b16 %v844, %v842
        %v941 = vpack.c.b16 %v845, %v843
        %v942 = vpack.c.b16 %v848, %v846
        %v943 = vpack.c.b16 %v849, %v847
        %v944 = vpack.c.b16 %v852, %v850
        %v945 = vpack.c.b16 %v853, %v851
        %v946 = vpack.c.b16 %v856, %v854
        %v947 = vpack.c.b16 %v857, %v855
        %v948 = vpack.c.b16 %v860, %v858
        %v949 = vpack.c.b16 %v861, %v859
        %v950 = vpack.c.b16 %v864, %v862
        %v951 = vpack.c.b16 %v865, %v863
        %v952 = vpack.c.b16 %v868, %v866
        %v953 = vpack.c.b16 %v869, %v867
        %v954 = vpack.c.b16 %v872, %v870
        %v955 = vpack.c.b16 %v873, %v871
        %v956 = vpack.c.b16 %v876, %v874
        %v957 = vpack.c.b16 %v877, %v875
        %v958 = vpack.c.b16 %v880, %v878
        %v959 = vpack.c.b16 %v881, %v879
        %v960 = vpack.c.b16 %v884, %v882
        %v961 = vpack.c.b16 %v885, %v883
        %v962 = vpack.c.b16 %v888, %v886
        %v963 = vpack.c.b16 %v889, %v887
        %v964 = vpack.c.b16 %v892, %v890
        %v965 = vpack.c.b16 %v893, %v891
        %v966 = vpack.c.b16 %v896, %v894
        %v967 = vpack.c.b16 %v897, %v895
        %v968 = vpack.c.b16 %v900, %v898
        %v969 = vpack.c.b16 %v901, %v899
        %v970 = vpack.c.b16 %v904, %v902
        %v971 = vpack.c.b16 %v905, %v903
        %v972 = vpack.c.b16 %v908, %v906
        %v973 = vpack.c.b16 %v909, %v907
        %1038 = vmatpush.bf16.msra.mxu0 %v924
        %1039 = vmatpush.bf16.msra.mxu0 %v922
        %1040 = vmatpush.bf16.msra.mxu0 %v920
        %1041 = vmatpush.bf16.msra.mxu0 %v918
        %1042 = vmatpush.bf16.msra.mxu0 %v916
        %1043 = vmatpush.bf16.msra.mxu0 %v914
        %1044 = vmatpush.bf16.msra.mxu0 %v912
        %1045 = vmatpush.bf16.msra.mxu0 %v910
        %1046 = vmatmul.bf16.gmra.mxu0 %v590
        %v1047 = vpop.f32.mrf.mxu0
        %v1048 = vadd.f32 0.0, %v1047
        %v1049 = vpop.f32.mrf.mxu0
        %v1050 = vadd.f32 0.0, %v1049
        %1051 = vmatmul.bf16.gmra.mxu0 %v594
        %v1052 = vpop.f32.mrf.mxu0
        %v1053 = vadd.f32 0.0, %v1052
        %v1054 = vpop.f32.mrf.mxu0
        %v1055 = vadd.f32 0.0, %v1054
        %1056 = vmatmul.bf16.gmra.mxu0 %v598
        %v1057 = vpop.f32.mrf.mxu0
        %v1058 = vadd.f32 0.0, %v1057
        %v1059 = vpop.f32.mrf.mxu0
        %v1060 = vadd.f32 0.0, %v1059
        %1061 = vmatmul.bf16.gmra.mxu0 %v602
        %v1062 = vpop.f32.mrf.mxu0
        %v1063 = vadd.f32 0.0, %v1062
        %v1064 = vpop.f32.mrf.mxu0
        %v1065 = vadd.f32 0.0, %v1064
        %1066 = vmatmul.bf16.gmra.mxu0 %v606
        %v1067 = vpop.f32.mrf.mxu0
        %v1068 = vadd.f32 0.0, %v1067
        %v1069 = vpop.f32.mrf.mxu0
        %v1070 = vadd.f32 0.0, %v1069
        %1071 = vmatmul.bf16.gmra.mxu0 %v610
        %v1072 = vpop.f32.mrf.mxu0
        %v1073 = vadd.f32 0.0, %v1072
        %v1074 = vpop.f32.mrf.mxu0
        %v1075 = vadd.f32 0.0, %v1074
        %1076 = vmatmul.bf16.gmra.mxu0 %v614
        %v1077 = vpop.f32.mrf.mxu0
        %v1078 = vadd.f32 0.0, %v1077
        %v1079 = vpop.f32.mrf.mxu0
        %v1080 = vadd.f32 0.0, %v1079
        %1081 = vmatmul.bf16.gmra.mxu0 %v618
        %v1082 = vpop.f32.mrf.mxu0
        %v1083 = vadd.f32 0.0, %v1082
        %v1084 = vpop.f32.mrf.mxu0
        %v1085 = vadd.f32 0.0, %v1084
        %1086 = vmatmul.bf16.gmra.mxu0 %v622
        %v1087 = vpop.f32.mrf.mxu0
        %v1088 = vadd.f32 0.0, %v1087
        %v1089 = vpop.f32.mrf.mxu0
        %v1090 = vadd.f32 0.0, %v1089
        %1091 = vmatmul.bf16.gmra.mxu0 %v626
        %v1092 = vpop.f32.mrf.mxu0
        %v1093 = vadd.f32 0.0, %v1092
        %v1094 = vpop.f32.mrf.mxu0
        %v1095 = vadd.f32 0.0, %v1094
        %1096 = vmatmul.bf16.gmra.mxu0 %v630
        %v1097 = vpop.f32.mrf.mxu0
        %v1098 = vadd.f32 0.0, %v1097
        %v1099 = vpop.f32.mrf.mxu0
        %v1100 = vadd.f32 0.0, %v1099
        %1101 = vmatmul.bf16.gmra.mxu0 %v634
        %v1102 = vpop.f32.mrf.mxu0
        %v1103 = vadd.f32 0.0, %v1102
        %v1104 = vpop.f32.mrf.mxu0
        %v1105 = vadd.f32 0.0, %v1104
        %1106 = vmatmul.bf16.gmra.mxu0 %v638
        %v1107 = vpop.f32.mrf.mxu0
        %v1108 = vadd.f32 0.0, %v1107
        %v1109 = vpop.f32.mrf.mxu0
        %v1110 = vadd.f32 0.0, %v1109
        %1111 = vmatmul.bf16.gmra.mxu0 %v642
        %v1112 = vpop.f32.mrf.mxu0
        %v1113 = vadd.f32 0.0, %v1112
        %v1114 = vpop.f32.mrf.mxu0
        %v1115 = vadd.f32 0.0, %v1114
        %1116 = vmatmul.bf16.gmra.mxu0 %v646
        %v1117 = vpop.f32.mrf.mxu0
        %v1118 = vadd.f32 0.0, %v1117
        %v1119 = vpop.f32.mrf.mxu0
        %v1120 = vadd.f32 0.0, %v1119
        %1121 = vmatmul.bf16.gmra.mxu0 %v650
        %v1122 = vpop.f32.mrf.mxu0
        %v1123 = vadd.f32 0.0, %v1122
        %v1124 = vpop.f32.mrf.mxu0
        %v1125 = vadd.f32 0.0, %v1124
        %1126 = vdwg.mxu0
        %1127 = vmatpush.bf16.msra.mxu0 %v940
        %1128 = vmatpush.bf16.msra.mxu0 %v938
        %1129 = vmatpush.bf16.msra.mxu0 %v936
        %1130 = vmatpush.bf16.msra.mxu0 %v934
        %1131 = vmatpush.bf16.msra.mxu0 %v932
        %1132 = vmatpush.bf16.msra.mxu0 %v930
        %1133 = vmatpush.bf16.msra.mxu0 %v928
        %1134 = vmatpush.bf16.msra.mxu0 %v926
        %1135 = vmatmul.bf16.gmra.mxu0 %v591
        %v1136 = vpop.f32.mrf.mxu0
        %v1137 = vadd.f32 %v1048, %v1136
        %v1138 = vpop.f32.mrf.mxu0
        %v1139 = vadd.f32 %v1050, %v1138
        %1140 = vmatmul.bf16.gmra.mxu0 %v595
        %v1141 = vpop.f32.mrf.mxu0
        %v1142 = vadd.f32 %v1053, %v1141
        %v1143 = vpop.f32.mrf.mxu0
        %v1144 = vadd.f32 %v1055, %v1143
        %1145 = vmatmul.bf16.gmra.mxu0 %v599
        %v1146 = vpop.f32.mrf.mxu0
        %v1147 = vadd.f32 %v1058, %v1146
        %v1148 = vpop.f32.mrf.mxu0
        %v1149 = vadd.f32 %v1060, %v1148
        %1150 = vmatmul.bf16.gmra.mxu0 %v603
        %v1151 = vpop.f32.mrf.mxu0
        %v1152 = vadd.f32 %v1063, %v1151
        %v1153 = vpop.f32.mrf.mxu0
        %v1154 = vadd.f32 %v1065, %v1153
        %1155 = vmatmul.bf16.gmra.mxu0 %v607
        %v1156 = vpop.f32.mrf.mxu0
        %v1157 = vadd.f32 %v1068, %v1156
        %v1158 = vpop.f32.mrf.mxu0
        %v1159 = vadd.f32 %v1070, %v1158
        %1160 = vmatmul.bf16.gmra.mxu0 %v611
        %v1161 = vpop.f32.mrf.mxu0
        %v1162 = vadd.f32 %v1073, %v1161
        %v1163 = vpop.f32.mrf.mxu0
        %v1164 = vadd.f32 %v1075, %v1163
        %1165 = vmatmul.bf16.gmra.mxu0 %v615
        %v1166 = vpop.f32.mrf.mxu0
        %v1167 = vadd.f32 %v1078, %v1166
        %v1168 = vpop.f32.mrf.mxu0
        %v1169 = vadd.f32 %v1080, %v1168
        %1170 = vmatmul.bf16.gmra.mxu0 %v619
        %v1171 = vpop.f32.mrf.mxu0
        %v1172 = vadd.f32 %v1083, %v1171
        %v1173 = vpop.f32.mrf.mxu0
        %v1174 = vadd.f32 %v1085, %v1173
        %1175 = vmatmul.bf16.gmra.mxu0 %v623
        %v1176 = vpop.f32.mrf.mxu0
        %v1177 = vadd.f32 %v1088, %v1176
        %v1178 = vpop.f32.mrf.mxu0
        %v1179 = vadd.f32 %v1090, %v1178
        %1180 = vmatmul.bf16.gmra.mxu0 %v627
        %v1181 = vpop.f32.mrf.mxu0
        %v1182 = vadd.f32 %v1093, %v1181
        %v1183 = vpop.f32.mrf.mxu0
        %v1184 = vadd.f32 %v1095, %v1183
        %1185 = vmatmul.bf16.gmra.mxu0 %v631
        %v1186 = vpop.f32.mrf.mxu0
        %v1187 = vadd.f32 %v1098, %v1186
        %v1188 = vpop.f32.mrf.mxu0
        %v1189 = vadd.f32 %v1100, %v1188
        %1190 = vmatmul.bf16.gmra.mxu0 %v635
        %v1191 = vpop.f32.mrf.mxu0
        %v1192 = vadd.f32 %v1103, %v1191
        %v1193 = vpop.f32.mrf.mxu0
        %v1194 = vadd.f32 %v1105, %v1193
        %1195 = vmatmul.bf16.gmra.mxu0 %v639
        %v1196 = vpop.f32.mrf.mxu0
        %v1197 = vadd.f32 %v1108, %v1196
        %v1198 = vpop.f32.mrf.mxu0
        %v1199 = vadd.f32 %v1110, %v1198
        %1200 = vmatmul.bf16.gmra.mxu0 %v643
        %v1201 = vpop.f32.mrf.mxu0
        %v1202 = vadd.f32 %v1113, %v1201
        %v1203 = vpop.f32.mrf.mxu0
        %v1204 = vadd.f32 %v1115, %v1203
        %1205 = vmatmul.bf16.gmra.mxu0 %v647
        %v1206 = vpop.f32.mrf.mxu0
        %v1207 = vadd.f32 %v1118, %v1206
        %v1208 = vpop.f32.mrf.mxu0
        %v1209 = vadd.f32 %v1120, %v1208
        %1210 = vmatmul.bf16.gmra.mxu0 %v651
        %v1211 = vpop.f32.mrf.mxu0
        %v1212 = vadd.f32 %v1123, %v1211
        %v1213 = vpop.f32.mrf.mxu0
        %v1214 = vadd.f32 %v1125, %v1213
        %1215 = vdwg.mxu0
        %1216 = vmatpush.bf16.msra.mxu0 %v956
        %1217 = vmatpush.bf16.msra.mxu0 %v954
        %1218 = vmatpush.bf16.msra.mxu0 %v952
        %1219 = vmatpush.bf16.msra.mxu0 %v950
        %1220 = vmatpush.bf16.msra.mxu0 %v948
        %1221 = vmatpush.bf16.msra.mxu0 %v946
        %1222 = vmatpush.bf16.msra.mxu0 %v944
        %1223 = vmatpush.bf16.msra.mxu0 %v942
        %1224 = vmatmul.bf16.gmra.mxu0 %v592
        %v1225 = vpop.f32.mrf.mxu0
        %v1226 = vadd.f32 %v1137, %v1225
        %v1227 = vpop.f32.mrf.mxu0
        %v1228 = vadd.f32 %v1139, %v1227
        %1229 = vmatmul.bf16.gmra.mxu0 %v596
        %v1230 = vpop.f32.mrf.mxu0
        %v1231 = vadd.f32 %v1142, %v1230
        %v1232 = vpop.f32.mrf.mxu0
        %v1233 = vadd.f32 %v1144, %v1232
        %1234 = vmatmul.bf16.gmra.mxu0 %v600
        %v1235 = vpop.f32.mrf.mxu0
        %v1236 = vadd.f32 %v1147, %v1235
        %v1237 = vpop.f32.mrf.mxu0
        %v1238 = vadd.f32 %v1149, %v1237
        %1239 = vmatmul.bf16.gmra.mxu0 %v604
        %v1240 = vpop.f32.mrf.mxu0
        %v1241 = vadd.f32 %v1152, %v1240
        %v1242 = vpop.f32.mrf.mxu0
        %v1243 = vadd.f32 %v1154, %v1242
        %1244 = vmatmul.bf16.gmra.mxu0 %v608
        %v1245 = vpop.f32.mrf.mxu0
        %v1246 = vadd.f32 %v1157, %v1245
        %v1247 = vpop.f32.mrf.mxu0
        %v1248 = vadd.f32 %v1159, %v1247
        %1249 = vmatmul.bf16.gmra.mxu0 %v612
        %v1250 = vpop.f32.mrf.mxu0
        %v1251 = vadd.f32 %v1162, %v1250
        %v1252 = vpop.f32.mrf.mxu0
        %v1253 = vadd.f32 %v1164, %v1252
        %1254 = vmatmul.bf16.gmra.mxu0 %v616
        %v1255 = vpop.f32.mrf.mxu0
        %v1256 = vadd.f32 %v1167, %v1255
        %v1257 = vpop.f32.mrf.mxu0
        %v1258 = vadd.f32 %v1169, %v1257
        %1259 = vmatmul.bf16.gmra.mxu0 %v620
        %v1260 = vpop.f32.mrf.mxu0
        %v1261 = vadd.f32 %v1172, %v1260
        %v1262 = vpop.f32.mrf.mxu0
        %v1263 = vadd.f32 %v1174, %v1262
        %1264 = vmatmul.bf16.gmra.mxu0 %v624
        %v1265 = vpop.f32.mrf.mxu0
        %v1266 = vadd.f32 %v1177, %v1265
        %v1267 = vpop.f32.mrf.mxu0
        %v1268 = vadd.f32 %v1179, %v1267
        %1269 = vmatmul.bf16.gmra.mxu0 %v628
        %v1270 = vpop.f32.mrf.mxu0
        %v1271 = vadd.f32 %v1182, %v1270
        %v1272 = vpop.f32.mrf.mxu0
        %v1273 = vadd.f32 %v1184, %v1272
        %1274 = vmatmul.bf16.gmra.mxu0 %v632
        %v1275 = vpop.f32.mrf.mxu0
        %v1276 = vadd.f32 %v1187, %v1275
        %v1277 = vpop.f32.mrf.mxu0
        %v1278 = vadd.f32 %v1189, %v1277
        %1279 = vmatmul.bf16.gmra.mxu0 %v636
        %v1280 = vpop.f32.mrf.mxu0
        %v1281 = vadd.f32 %v1192, %v1280
        %v1282 = vpop.f32.mrf.mxu0
        %v1283 = vadd.f32 %v1194, %v1282
        %1284 = vmatmul.bf16.gmra.mxu0 %v640
        %v1285 = vpop.f32.mrf.mxu0
        %v1286 = vadd.f32 %v1197, %v1285
        %v1287 = vpop.f32.mrf.mxu0
        %v1288 = vadd.f32 %v1199, %v1287
        %1289 = vmatmul.bf16.gmra.mxu0 %v644
        %v1290 = vpop.f32.mrf.mxu0
        %v1291 = vadd.f32 %v1202, %v1290
        %v1292 = vpop.f32.mrf.mxu0
        %v1293 = vadd.f32 %v1204, %v1292
        %1294 = vmatmul.bf16.gmra.mxu0 %v648
        %v1295 = vpop.f32.mrf.mxu0
        %v1296 = vadd.f32 %v1207, %v1295
        %v1297 = vpop.f32.mrf.mxu0
        %v1298 = vadd.f32 %v1209, %v1297
        %1299 = vmatmul.bf16.gmra.mxu0 %v652
        %v1300 = vpop.f32.mrf.mxu0
        %v1301 = vadd.f32 %v1212, %v1300
        %v1302 = vpop.f32.mrf.mxu0
        %v1303 = vadd.f32 %v1214, %v1302
        %1304 = vdwg.mxu0
        %1305 = vmatpush.bf16.msra.mxu0 %v972
        %1306 = vmatpush.bf16.msra.mxu0 %v970
        %1307 = vmatpush.bf16.msra.mxu0 %v968
        %1308 = vmatpush.bf16.msra.mxu0 %v966
        %1309 = vmatpush.bf16.msra.mxu0 %v964
        %1310 = vmatpush.bf16.msra.mxu0 %v962
        %1311 = vmatpush.bf16.msra.mxu0 %v960
        %1312 = vmatpush.bf16.msra.mxu0 %v958
        %1313 = vmatmul.bf16.gmra.mxu0 %v593
        %v1314 = vpop.f32.mrf.mxu0
        %v1315 = vadd.f32 %v1226, %v1314
        %v1316 = vpop.f32.mrf.mxu0
        %v1317 = vadd.f32 %v1228, %v1316
        %1318 = vmatmul.bf16.gmra.mxu0 %v597
        %v1319 = vpop.f32.mrf.mxu0
        %v1320 = vadd.f32 %v1231, %v1319
        %v1321 = vpop.f32.mrf.mxu0
        %v1322 = vadd.f32 %v1233, %v1321
        %1323 = vmatmul.bf16.gmra.mxu0 %v601
        %v1324 = vpop.f32.mrf.mxu0
        %v1325 = vadd.f32 %v1236, %v1324
        %v1326 = vpop.f32.mrf.mxu0
        %v1327 = vadd.f32 %v1238, %v1326
        %1328 = vmatmul.bf16.gmra.mxu0 %v605
        %v1329 = vpop.f32.mrf.mxu0
        %v1330 = vadd.f32 %v1241, %v1329
        %v1331 = vpop.f32.mrf.mxu0
        %v1332 = vadd.f32 %v1243, %v1331
        %1333 = vmatmul.bf16.gmra.mxu0 %v609
        %v1334 = vpop.f32.mrf.mxu0
        %v1335 = vadd.f32 %v1246, %v1334
        %v1336 = vpop.f32.mrf.mxu0
        %v1337 = vadd.f32 %v1248, %v1336
        %1338 = vmatmul.bf16.gmra.mxu0 %v613
        %v1339 = vpop.f32.mrf.mxu0
        %v1340 = vadd.f32 %v1251, %v1339
        %v1341 = vpop.f32.mrf.mxu0
        %v1342 = vadd.f32 %v1253, %v1341
        %1343 = vmatmul.bf16.gmra.mxu0 %v617
        %v1344 = vpop.f32.mrf.mxu0
        %v1345 = vadd.f32 %v1256, %v1344
        %v1346 = vpop.f32.mrf.mxu0
        %v1347 = vadd.f32 %v1258, %v1346
        %1348 = vmatmul.bf16.gmra.mxu0 %v621
        %v1349 = vpop.f32.mrf.mxu0
        %v1350 = vadd.f32 %v1261, %v1349
        %v1351 = vpop.f32.mrf.mxu0
        %v1352 = vadd.f32 %v1263, %v1351
        %1353 = vmatmul.bf16.gmra.mxu0 %v625
        %v1354 = vpop.f32.mrf.mxu0
        %v1355 = vadd.f32 %v1266, %v1354
        %v1356 = vpop.f32.mrf.mxu0
        %v1357 = vadd.f32 %v1268, %v1356
        %1358 = vmatmul.bf16.gmra.mxu0 %v629
        %v1359 = vpop.f32.mrf.mxu0
        %v1360 = vadd.f32 %v1271, %v1359
        %v1361 = vpop.f32.mrf.mxu0
        %v1362 = vadd.f32 %v1273, %v1361
        %1363 = vmatmul.bf16.gmra.mxu0 %v633
        %v1364 = vpop.f32.mrf.mxu0
        %v1365 = vadd.f32 %v1276, %v1364
        %v1366 = vpop.f32.mrf.mxu0
        %v1367 = vadd.f32 %v1278, %v1366
        %1368 = vmatmul.bf16.gmra.mxu0 %v637
        %v1369 = vpop.f32.mrf.mxu0
        %v1370 = vadd.f32 %v1281, %v1369
        %v1371 = vpop.f32.mrf.mxu0
        %v1372 = vadd.f32 %v1283, %v1371
        %1373 = vmatmul.bf16.gmra.mxu0 %v641
        %v1374 = vpop.f32.mrf.mxu0
        %v1375 = vadd.f32 %v1286, %v1374
        %v1376 = vpop.f32.mrf.mxu0
        %v1377 = vadd.f32 %v1288, %v1376
        %1378 = vmatmul.bf16.gmra.mxu0 %v645
        %v1379 = vpop.f32.mrf.mxu0
        %v1380 = vadd.f32 %v1291, %v1379
        %v1381 = vpop.f32.mrf.mxu0
        %v1382 = vadd.f32 %v1293, %v1381
        %1383 = vmatmul.bf16.gmra.mxu0 %v649
        %v1384 = vpop.f32.mrf.mxu0
        %v1385 = vadd.f32 %v1296, %v1384
        %v1386 = vpop.f32.mrf.mxu0
        %v1387 = vadd.f32 %v1298, %v1386
        %1388 = vmatmul.bf16.gmra.mxu0 %v653
        %v1389 = vpop.f32.mrf.mxu0
        %v1390 = vadd.f32 %v1301, %v1389
        %v1391 = vpop.f32.mrf.mxu0
        %v1392 = vadd.f32 %v1303, %v1391
        %1393 = vdwg.mxu0
        %1394 = vmatpush.bf16.msra.mxu0 %v925
        %1395 = vmatpush.bf16.msra.mxu0 %v923
        %1396 = vmatpush.bf16.msra.mxu0 %v921
        %1397 = vmatpush.bf16.msra.mxu0 %v919
        %1398 = vmatpush.bf16.msra.mxu0 %v917
        %1399 = vmatpush.bf16.msra.mxu0 %v915
        %1400 = vmatpush.bf16.msra.mxu0 %v913
        %1401 = vmatpush.bf16.msra.mxu0 %v911
        %1402 = vmatmul.bf16.gmra.mxu0 %v590
        %v1403 = vpop.f32.mrf.mxu0
        %v1404 = vadd.f32 0.0, %v1403
        %v1405 = vpop.f32.mrf.mxu0
        %v1406 = vadd.f32 0.0, %v1405
        %1407 = vmatmul.bf16.gmra.mxu0 %v594
        %v1408 = vpop.f32.mrf.mxu0
        %v1409 = vadd.f32 0.0, %v1408
        %v1410 = vpop.f32.mrf.mxu0
        %v1411 = vadd.f32 0.0, %v1410
        %1412 = vmatmul.bf16.gmra.mxu0 %v598
        %v1413 = vpop.f32.mrf.mxu0
        %v1414 = vadd.f32 0.0, %v1413
        %v1415 = vpop.f32.mrf.mxu0
        %v1416 = vadd.f32 0.0, %v1415
        %1417 = vmatmul.bf16.gmra.mxu0 %v602
        %v1418 = vpop.f32.mrf.mxu0
        %v1419 = vadd.f32 0.0, %v1418
        %v1420 = vpop.f32.mrf.mxu0
        %v1421 = vadd.f32 0.0, %v1420
        %1422 = vmatmul.bf16.gmra.mxu0 %v606
        %v1423 = vpop.f32.mrf.mxu0
        %v1424 = vadd.f32 0.0, %v1423
        %v1425 = vpop.f32.mrf.mxu0
        %v1426 = vadd.f32 0.0, %v1425
        %1427 = vmatmul.bf16.gmra.mxu0 %v610
        %v1428 = vpop.f32.mrf.mxu0
        %v1429 = vadd.f32 0.0, %v1428
        %v1430 = vpop.f32.mrf.mxu0
        %v1431 = vadd.f32 0.0, %v1430
        %1432 = vmatmul.bf16.gmra.mxu0 %v614
        %v1433 = vpop.f32.mrf.mxu0
        %v1434 = vadd.f32 0.0, %v1433
        %v1435 = vpop.f32.mrf.mxu0
        %v1436 = vadd.f32 0.0, %v1435
        %1437 = vmatmul.bf16.gmra.mxu0 %v618
        %v1438 = vpop.f32.mrf.mxu0
        %v1439 = vadd.f32 0.0, %v1438
        %v1440 = vpop.f32.mrf.mxu0
        %v1441 = vadd.f32 0.0, %v1440
        %1442 = vmatmul.bf16.gmra.mxu0 %v622
        %v1443 = vpop.f32.mrf.mxu0
        %v1444 = vadd.f32 0.0, %v1443
        %v1445 = vpop.f32.mrf.mxu0
        %v1446 = vadd.f32 0.0, %v1445
        %1447 = vmatmul.bf16.gmra.mxu0 %v626
        %v1448 = vpop.f32.mrf.mxu0
        %v1449 = vadd.f32 0.0, %v1448
        %v1450 = vpop.f32.mrf.mxu0
        %v1451 = vadd.f32 0.0, %v1450
        %1452 = vmatmul.bf16.gmra.mxu0 %v630
        %v1453 = vpop.f32.mrf.mxu0
        %v1454 = vadd.f32 0.0, %v1453
        %v1455 = vpop.f32.mrf.mxu0
        %v1456 = vadd.f32 0.0, %v1455
        %1457 = vmatmul.bf16.gmra.mxu0 %v634
        %v1458 = vpop.f32.mrf.mxu0
        %v1459 = vadd.f32 0.0, %v1458
        %v1460 = vpop.f32.mrf.mxu0
        %v1461 = vadd.f32 0.0, %v1460
        %1462 = vmatmul.bf16.gmra.mxu0 %v638
        %v1463 = vpop.f32.mrf.mxu0
        %v1464 = vadd.f32 0.0, %v1463
        %v1465 = vpop.f32.mrf.mxu0
        %v1466 = vadd.f32 0.0, %v1465
        %1467 = vmatmul.bf16.gmra.mxu0 %v642
        %v1468 = vpop.f32.mrf.mxu0
        %v1469 = vadd.f32 0.0, %v1468
        %v1470 = vpop.f32.mrf.mxu0
        %v1471 = vadd.f32 0.0, %v1470
        %1472 = vmatmul.bf16.gmra.mxu0 %v646
        %v1473 = vpop.f32.mrf.mxu0
        %v1474 = vadd.f32 0.0, %v1473
        %v1475 = vpop.f32.mrf.mxu0
        %v1476 = vadd.f32 0.0, %v1475
        %1477 = vmatmul.bf16.gmra.mxu0 %v650
        %v1478 = vpop.f32.mrf.mxu0
        %v1479 = vadd.f32 0.0, %v1478
        %v1480 = vpop.f32.mrf.mxu0
        %v1481 = vadd.f32 0.0, %v1480
        %1482 = vdwg.mxu0
        %1483 = vmatpush.bf16.msra.mxu0 %v941
        %1484 = vmatpush.bf16.msra.mxu0 %v939
        %1485 = vmatpush.bf16.msra.mxu0 %v937
        %1486 = vmatpush.bf16.msra.mxu0 %v935
        %1487 = vmatpush.bf16.msra.mxu0 %v933
        %1488 = vmatpush.bf16.msra.mxu0 %v931
        %1489 = vmatpush.bf16.msra.mxu0 %v929
        %1490 = vmatpush.bf16.msra.mxu0 %v927
        %1491 = vmatmul.bf16.gmra.mxu0 %v591
        %v1492 = vpop.f32.mrf.mxu0
        %v1493 = vadd.f32 %v1404, %v1492
        %v1494 = vpop.f32.mrf.mxu0
        %v1495 = vadd.f32 %v1406, %v1494
        %1496 = vmatmul.bf16.gmra.mxu0 %v595
        %v1497 = vpop.f32.mrf.mxu0
        %v1498 = vadd.f32 %v1409, %v1497
        %v1499 = vpop.f32.mrf.mxu0
        %v1500 = vadd.f32 %v1411, %v1499
        %1501 = vmatmul.bf16.gmra.mxu0 %v599
        %v1502 = vpop.f32.mrf.mxu0
        %v1503 = vadd.f32 %v1414, %v1502
        %v1504 = vpop.f32.mrf.mxu0
        %v1505 = vadd.f32 %v1416, %v1504
        %1506 = vmatmul.bf16.gmra.mxu0 %v603
        %v1507 = vpop.f32.mrf.mxu0
        %v1508 = vadd.f32 %v1419, %v1507
        %v1509 = vpop.f32.mrf.mxu0
        %v1510 = vadd.f32 %v1421, %v1509
        %1511 = vmatmul.bf16.gmra.mxu0 %v607
        %v1512 = vpop.f32.mrf.mxu0
        %v1513 = vadd.f32 %v1424, %v1512
        %v1514 = vpop.f32.mrf.mxu0
        %v1515 = vadd.f32 %v1426, %v1514
        %1516 = vmatmul.bf16.gmra.mxu0 %v611
        %v1517 = vpop.f32.mrf.mxu0
        %v1518 = vadd.f32 %v1429, %v1517
        %v1519 = vpop.f32.mrf.mxu0
        %v1520 = vadd.f32 %v1431, %v1519
        %1521 = vmatmul.bf16.gmra.mxu0 %v615
        %v1522 = vpop.f32.mrf.mxu0
        %v1523 = vadd.f32 %v1434, %v1522
        %v1524 = vpop.f32.mrf.mxu0
        %v1525 = vadd.f32 %v1436, %v1524
        %1526 = vmatmul.bf16.gmra.mxu0 %v619
        %v1527 = vpop.f32.mrf.mxu0
        %v1528 = vadd.f32 %v1439, %v1527
        %v1529 = vpop.f32.mrf.mxu0
        %v1530 = vadd.f32 %v1441, %v1529
        %1531 = vmatmul.bf16.gmra.mxu0 %v623
        %v1532 = vpop.f32.mrf.mxu0
        %v1533 = vadd.f32 %v1444, %v1532
        %v1534 = vpop.f32.mrf.mxu0
        %v1535 = vadd.f32 %v1446, %v1534
        %1536 = vmatmul.bf16.gmra.mxu0 %v627
        %v1537 = vpop.f32.mrf.mxu0
        %v1538 = vadd.f32 %v1449, %v1537
        %v1539 = vpop.f32.mrf.mxu0
        %v1540 = vadd.f32 %v1451, %v1539
        %1541 = vmatmul.bf16.gmra.mxu0 %v631
        %v1542 = vpop.f32.mrf.mxu0
        %v1543 = vadd.f32 %v1454, %v1542
        %v1544 = vpop.f32.mrf.mxu0
        %v1545 = vadd.f32 %v1456, %v1544
        %1546 = vmatmul.bf16.gmra.mxu0 %v635
        %v1547 = vpop.f32.mrf.mxu0
        %v1548 = vadd.f32 %v1459, %v1547
        %v1549 = vpop.f32.mrf.mxu0
        %v1550 = vadd.f32 %v1461, %v1549
        %1551 = vmatmul.bf16.gmra.mxu0 %v639
        %v1552 = vpop.f32.mrf.mxu0
        %v1553 = vadd.f32 %v1464, %v1552
        %v1554 = vpop.f32.mrf.mxu0
        %v1555 = vadd.f32 %v1466, %v1554
        %1556 = vmatmul.bf16.gmra.mxu0 %v643
        %v1557 = vpop.f32.mrf.mxu0
        %v1558 = vadd.f32 %v1469, %v1557
        %v1559 = vpop.f32.mrf.mxu0
        %v1560 = vadd.f32 %v1471, %v1559
        %1561 = vmatmul.bf16.gmra.mxu0 %v647
        %v1562 = vpop.f32.mrf.mxu0
        %v1563 = vadd.f32 %v1474, %v1562
        %v1564 = vpop.f32.mrf.mxu0
        %v1565 = vadd.f32 %v1476, %v1564
        %1566 = vmatmul.bf16.gmra.mxu0 %v651
        %v1567 = vpop.f32.mrf.mxu0
        %v1568 = vadd.f32 %v1479, %v1567
        %v1569 = vpop.f32.mrf.mxu0
        %v1570 = vadd.f32 %v1481, %v1569
        %1571 = vdwg.mxu0
        %1572 = vmatpush.bf16.msra.mxu0 %v957
        %1573 = vmatpush.bf16.msra.mxu0 %v955
        %1574 = vmatpush.bf16.msra.mxu0 %v953
        %1575 = vmatpush.bf16.msra.mxu0 %v951
        %1576 = vmatpush.bf16.msra.mxu0 %v949
        %1577 = vmatpush.bf16.msra.mxu0 %v947
        %1578 = vmatpush.bf16.msra.mxu0 %v945
        %1579 = vmatpush.bf16.msra.mxu0 %v943
        %1580 = vmatmul.bf16.gmra.mxu0 %v592
        %v1581 = vpop.f32.mrf.mxu0
        %v1582 = vadd.f32 %v1493, %v1581
        %v1583 = vpop.f32.mrf.mxu0
        %v1584 = vadd.f32 %v1495, %v1583
        %1585 = vmatmul.bf16.gmra.mxu0 %v596
        %v1586 = vpop.f32.mrf.mxu0
        %v1587 = vadd.f32 %v1498, %v1586
        %v1588 = vpop.f32.mrf.mxu0
        %v1589 = vadd.f32 %v1500, %v1588
        %1590 = vmatmul.bf16.gmra.mxu0 %v600
        %v1591 = vpop.f32.mrf.mxu0
        %v1592 = vadd.f32 %v1503, %v1591
        %v1593 = vpop.f32.mrf.mxu0
        %v1594 = vadd.f32 %v1505, %v1593
        %1595 = vmatmul.bf16.gmra.mxu0 %v604
        %v1596 = vpop.f32.mrf.mxu0
        %v1597 = vadd.f32 %v1508, %v1596
        %v1598 = vpop.f32.mrf.mxu0
        %v1599 = vadd.f32 %v1510, %v1598
        %1600 = vmatmul.bf16.gmra.mxu0 %v608
        %v1601 = vpop.f32.mrf.mxu0
        %v1602 = vadd.f32 %v1513, %v1601
        %v1603 = vpop.f32.mrf.mxu0
        %v1604 = vadd.f32 %v1515, %v1603
        %1605 = vmatmul.bf16.gmra.mxu0 %v612
        %v1606 = vpop.f32.mrf.mxu0
        %v1607 = vadd.f32 %v1518, %v1606
        %v1608 = vpop.f32.mrf.mxu0
        %v1609 = vadd.f32 %v1520, %v1608
        %1610 = vmatmul.bf16.gmra.mxu0 %v616
        %v1611 = vpop.f32.mrf.mxu0
        %v1612 = vadd.f32 %v1523, %v1611
        %v1613 = vpop.f32.mrf.mxu0
        %v1614 = vadd.f32 %v1525, %v1613
        %1615 = vmatmul.bf16.gmra.mxu0 %v620
        %v1616 = vpop.f32.mrf.mxu0
        %v1617 = vadd.f32 %v1528, %v1616
        %v1618 = vpop.f32.mrf.mxu0
        %v1619 = vadd.f32 %v1530, %v1618
        %1620 = vmatmul.bf16.gmra.mxu0 %v624
        %v1621 = vpop.f32.mrf.mxu0
        %v1622 = vadd.f32 %v1533, %v1621
        %v1623 = vpop.f32.mrf.mxu0
        %v1624 = vadd.f32 %v1535, %v1623
        %1625 = vmatmul.bf16.gmra.mxu0 %v628
        %v1626 = vpop.f32.mrf.mxu0
        %v1627 = vadd.f32 %v1538, %v1626
        %v1628 = vpop.f32.mrf.mxu0
        %v1629 = vadd.f32 %v1540, %v1628
        %1630 = vmatmul.bf16.gmra.mxu0 %v632
        %v1631 = vpop.f32.mrf.mxu0
        %v1632 = vadd.f32 %v1543, %v1631
        %v1633 = vpop.f32.mrf.mxu0
        %v1634 = vadd.f32 %v1545, %v1633
        %1635 = vmatmul.bf16.gmra.mxu0 %v636
        %v1636 = vpop.f32.mrf.mxu0
        %v1637 = vadd.f32 %v1548, %v1636
        %v1638 = vpop.f32.mrf.mxu0
        %v1639 = vadd.f32 %v1550, %v1638
        %1640 = vmatmul.bf16.gmra.mxu0 %v640
        %v1641 = vpop.f32.mrf.mxu0
        %v1642 = vadd.f32 %v1553, %v1641
        %v1643 = vpop.f32.mrf.mxu0
        %v1644 = vadd.f32 %v1555, %v1643
        %1645 = vmatmul.bf16.gmra.mxu0 %v644
        %v1646 = vpop.f32.mrf.mxu0
        %v1647 = vadd.f32 %v1558, %v1646
        %v1648 = vpop.f32.mrf.mxu0
        %v1649 = vadd.f32 %v1560, %v1648
        %1650 = vmatmul.bf16.gmra.mxu0 %v648
        %v1651 = vpop.f32.mrf.mxu0
        %v1652 = vadd.f32 %v1563, %v1651
        %v1653 = vpop.f32.mrf.mxu0
        %v1654 = vadd.f32 %v1565, %v1653
        %1655 = vmatmul.bf16.gmra.mxu0 %v652
        %v1656 = vpop.f32.mrf.mxu0
        %v1657 = vadd.f32 %v1568, %v1656
        %v1658 = vpop.f32.mrf.mxu0
        %v1659 = vadd.f32 %v1570, %v1658
        %1660 = vdwg.mxu0
        %1661 = vmatpush.bf16.msra.mxu0 %v973
        %1662 = vmatpush.bf16.msra.mxu0 %v971
        %1663 = vmatpush.bf16.msra.mxu0 %v969
        %1664 = vmatpush.bf16.msra.mxu0 %v967
        %1665 = vmatpush.bf16.msra.mxu0 %v965
        %1666 = vmatpush.bf16.msra.mxu0 %v963
        %1667 = vmatpush.bf16.msra.mxu0 %v961
        %1668 = vmatpush.bf16.msra.mxu0 %v959
        %1669 = vmatmul.bf16.gmra.mxu0 %v593
        %v1670 = vpop.f32.mrf.mxu0
        %v1671 = vadd.f32 %v1582, %v1670
        %v1672 = vpop.f32.mrf.mxu0
        %v1673 = vadd.f32 %v1584, %v1672
        %1674 = vmatmul.bf16.gmra.mxu0 %v597
        %v1675 = vpop.f32.mrf.mxu0
        %v1676 = vadd.f32 %v1587, %v1675
        %v1677 = vpop.f32.mrf.mxu0
        %v1678 = vadd.f32 %v1589, %v1677
        %1679 = vmatmul.bf16.gmra.mxu0 %v601
        %v1680 = vpop.f32.mrf.mxu0
        %v1681 = vadd.f32 %v1592, %v1680
        %v1682 = vpop.f32.mrf.mxu0
        %v1683 = vadd.f32 %v1594, %v1682
        %1684 = vmatmul.bf16.gmra.mxu0 %v605
        %v1685 = vpop.f32.mrf.mxu0
        %v1686 = vadd.f32 %v1597, %v1685
        %v1687 = vpop.f32.mrf.mxu0
        %v1688 = vadd.f32 %v1599, %v1687
        %1689 = vmatmul.bf16.gmra.mxu0 %v609
        %v1690 = vpop.f32.mrf.mxu0
        %v1691 = vadd.f32 %v1602, %v1690
        %v1692 = vpop.f32.mrf.mxu0
        %v1693 = vadd.f32 %v1604, %v1692
        %1694 = vmatmul.bf16.gmra.mxu0 %v613
        %v1695 = vpop.f32.mrf.mxu0
        %v1696 = vadd.f32 %v1607, %v1695
        %v1697 = vpop.f32.mrf.mxu0
        %v1698 = vadd.f32 %v1609, %v1697
        %1699 = vmatmul.bf16.gmra.mxu0 %v617
        %v1700 = vpop.f32.mrf.mxu0
        %v1701 = vadd.f32 %v1612, %v1700
        %v1702 = vpop.f32.mrf.mxu0
        %v1703 = vadd.f32 %v1614, %v1702
        %1704 = vmatmul.bf16.gmra.mxu0 %v621
        %v1705 = vpop.f32.mrf.mxu0
        %v1706 = vadd.f32 %v1617, %v1705
        %v1707 = vpop.f32.mrf.mxu0
        %v1708 = vadd.f32 %v1619, %v1707
        %1709 = vmatmul.bf16.gmra.mxu0 %v625
        %v1710 = vpop.f32.mrf.mxu0
        %v1711 = vadd.f32 %v1622, %v1710
        %v1712 = vpop.f32.mrf.mxu0
        %v1713 = vadd.f32 %v1624, %v1712
        %1714 = vmatmul.bf16.gmra.mxu0 %v629
        %v1715 = vpop.f32.mrf.mxu0
        %v1716 = vadd.f32 %v1627, %v1715
        %v1717 = vpop.f32.mrf.mxu0
        %v1718 = vadd.f32 %v1629, %v1717
        %1719 = vmatmul.bf16.gmra.mxu0 %v633
        %v1720 = vpop.f32.mrf.mxu0
        %v1721 = vadd.f32 %v1632, %v1720
        %v1722 = vpop.f32.mrf.mxu0
        %v1723 = vadd.f32 %v1634, %v1722
        %1724 = vmatmul.bf16.gmra.mxu0 %v637
        %v1725 = vpop.f32.mrf.mxu0
        %v1726 = vadd.f32 %v1637, %v1725
        %v1727 = vpop.f32.mrf.mxu0
        %v1728 = vadd.f32 %v1639, %v1727
        %1729 = vmatmul.bf16.gmra.mxu0 %v641
        %v1730 = vpop.f32.mrf.mxu0
        %v1731 = vadd.f32 %v1642, %v1730
        %v1732 = vpop.f32.mrf.mxu0
        %v1733 = vadd.f32 %v1644, %v1732
        %1734 = vmatmul.bf16.gmra.mxu0 %v645
        %v1735 = vpop.f32.mrf.mxu0
        %v1736 = vadd.f32 %v1647, %v1735
        %v1737 = vpop.f32.mrf.mxu0
        %v1738 = vadd.f32 %v1649, %v1737
        %1739 = vmatmul.bf16.gmra.mxu0 %v649
        %v1740 = vpop.f32.mrf.mxu0
        %v1741 = vadd.f32 %v1652, %v1740
        %v1742 = vpop.f32.mrf.mxu0
        %v1743 = vadd.f32 %v1654, %v1742
        %1744 = vmatmul.bf16.gmra.mxu0 %v653
        %v1745 = vpop.f32.mrf.mxu0
        %v1746 = vadd.f32 %v1657, %v1745
        %v1747 = vpop.f32.mrf.mxu0
        %v1748 = vadd.f32 %v1659, %v1747
        %1749 = vdwg.mxu0
        %v1750 = vadd.f32 %v398, %v1315
        %v1751 = vadd.f32 %v399, %v1671
        %v1752 = vadd.f32 %v400, %v1317
        %v1753 = vadd.f32 %v401, %v1673
        %v1754 = vadd.f32 %v402, %v1320
        %v1755 = vadd.f32 %v403, %v1676
        %v1756 = vadd.f32 %v404, %v1322
        %v1757 = vadd.f32 %v405, %v1678
        %v1758 = vadd.f32 %v406, %v1325
        %v1759 = vadd.f32 %v407, %v1681
        %v1760 = vadd.f32 %v408, %v1327
        %v1761 = vadd.f32 %v409, %v1683
        %v1762 = vadd.f32 %v410, %v1330
        %v1763 = vadd.f32 %v411, %v1686
        %v1764 = vadd.f32 %v412, %v1332
        %v1765 = vadd.f32 %v413, %v1688
        %v1766 = vadd.f32 %v414, %v1335
        %v1767 = vadd.f32 %v415, %v1691
        %v1768 = vadd.f32 %v416, %v1337
        %v1769 = vadd.f32 %v417, %v1693
        %v1770 = vadd.f32 %v418, %v1340
        %v1771 = vadd.f32 %v419, %v1696
        %v1772 = vadd.f32 %v420, %v1342
        %v1773 = vadd.f32 %v421, %v1698
        %v1774 = vadd.f32 %v422, %v1345
        %v1775 = vadd.f32 %v423, %v1701
        %v1776 = vadd.f32 %v424, %v1347
        %v1777 = vadd.f32 %v425, %v1703
        %v1778 = vadd.f32 %v426, %v1350
        %v1779 = vadd.f32 %v427, %v1706
        %v1780 = vadd.f32 %v428, %v1352
        %v1781 = vadd.f32 %v429, %v1708
        %v1782 = vadd.f32 %v430, %v1355
        %v1783 = vadd.f32 %v431, %v1711
        %v1784 = vadd.f32 %v432, %v1357
        %v1785 = vadd.f32 %v433, %v1713
        %v1786 = vadd.f32 %v434, %v1360
        %v1787 = vadd.f32 %v435, %v1716
        %v1788 = vadd.f32 %v436, %v1362
        %v1789 = vadd.f32 %v437, %v1718
        %v1790 = vadd.f32 %v438, %v1365
        %v1791 = vadd.f32 %v439, %v1721
        %v1792 = vadd.f32 %v440, %v1367
        %v1793 = vadd.f32 %v441, %v1723
        %v1794 = vadd.f32 %v442, %v1370
        %v1795 = vadd.f32 %v443, %v1726
        %v1796 = vadd.f32 %v444, %v1372
        %v1797 = vadd.f32 %v445, %v1728
        %v1798 = vadd.f32 %v446, %v1375
        %v1799 = vadd.f32 %v447, %v1731
        %v1800 = vadd.f32 %v448, %v1377
        %v1801 = vadd.f32 %v449, %v1733
        %v1802 = vadd.f32 %v450, %v1380
        %v1803 = vadd.f32 %v451, %v1736
        %v1804 = vadd.f32 %v452, %v1382
        %v1805 = vadd.f32 %v453, %v1738
        %v1806 = vadd.f32 %v454, %v1385
        %v1807 = vadd.f32 %v455, %v1741
        %v1808 = vadd.f32 %v456, %v1387
        %v1809 = vadd.f32 %v457, %v1743
        %v1810 = vadd.f32 %v458, %v1390
        %v1811 = vadd.f32 %v459, %v1746
        %v1812 = vadd.f32 %v460, %v1392
        %v1813 = vadd.f32 %v461, %v1748
        %1814 = vst [vmem:[#allocation2] sm:$0xff] %v1750
        %1815 = vst [vmem:[#allocation2 + $0x8] sm:$0xff] %v1751
        %1816 = vst [vmem:[#allocation2 + $0x10] sm:$0xff] %v1752
        %1817 = vst [vmem:[#allocation2 + $0x18] sm:$0xff] %v1753
        %1818 = vst [vmem:[#allocation2 + $0x20] sm:$0xff] %v1754
        %1819 = vst [vmem:[#allocation2 + $0x28] sm:$0xff] %v1755
        %1820 = vst [vmem:[#allocation2 + $0x30] sm:$0xff] %v1756
        %1821 = vst [vmem:[#allocation2 + $0x38] sm:$0xff] %v1757
        %1822 = vst [vmem:[#allocation2 + $0x40] sm:$0xff] %v1758
        %1823 = vst [vmem:[#allocation2 + $0x48] sm:$0xff] %v1759
        %1824 = vst [vmem:[#allocation2 + $0x50] sm:$0xff] %v1760
        %1825 = vst [vmem:[#allocation2 + $0x58] sm:$0xff] %v1761
        %1826 = vst [vmem:[#allocation2 + $0x60] sm:$0xff] %v1762
        %1827 = vst [vmem:[#allocation2 + $0x68] sm:$0xff] %v1763
        %1828 = vst [vmem:[#allocation2 + $0x70] sm:$0xff] %v1764
        %1829 = vst [vmem:[#allocation2 + $0x78] sm:$0xff] %v1765
        %1830 = vst [vmem:[#allocation2 + $0x80] sm:$0xff] %v1766
        %1831 = vst [vmem:[#allocation2 + $0x88] sm:$0xff] %v1767
        %1832 = vst [vmem:[#allocation2 + $0x90] sm:$0xff] %v1768
        %1833 = vst [vmem:[#allocation2 + $0x98] sm:$0xff] %v1769
        %1834 = vst [vmem:[#allocation2 + $0xa0] sm:$0xff] %v1770
        %1835 = vst [vmem:[#allocation2 + $0xa8] sm:$0xff] %v1771
        %1836 = vst [vmem:[#allocation2 + $0xb0] sm:$0xff] %v1772
        %1837 = vst [vmem:[#allocation2 + $0xb8] sm:$0xff] %v1773
        %1838 = vst [vmem:[#allocation2 + $0xc0] sm:$0xff] %v1774
        %1839 = vst [vmem:[#allocation2 + $0xc8] sm:$0xff] %v1775
        %1840 = vst [vmem:[#allocation2 + $0xd0] sm:$0xff] %v1776
        %1841 = vst [vmem:[#allocation2 + $0xd8] sm:$0xff] %v1777
        %1842 = vst [vmem:[#allocation2 + $0xe0] sm:$0xff] %v1778
        %1843 = vst [vmem:[#allocation2 + $0xe8] sm:$0xff] %v1779
        %1844 = vst [vmem:[#allocation2 + $0xf0] sm:$0xff] %v1780
        %1845 = vst [vmem:[#allocation2 + $0xf8] sm:$0xff] %v1781
        %1846 = vst [vmem:[#allocation2 + $0x100] sm:$0xff] %v1782
        %1847 = vst [vmem:[#allocation2 + $0x108] sm:$0xff] %v1783
        %1848 = vst [vmem:[#allocation2 + $0x110] sm:$0xff] %v1784
        %1849 = vst [vmem:[#allocation2 + $0x118] sm:$0xff] %v1785
        %1850 = vst [vmem:[#allocation2 + $0x120] sm:$0xff] %v1786
        %1851 = vst [vmem:[#allocation2 + $0x128] sm:$0xff] %v1787
        %1852 = vst [vmem:[#allocation2 + $0x130] sm:$0xff] %v1788
        %1853 = vst [vmem:[#allocation2 + $0x138] sm:$0xff] %v1789
        %1854 = vst [vmem:[#allocation2 + $0x140] sm:$0xff] %v1790
        %1855 = vst [vmem:[#allocation2 + $0x148] sm:$0xff] %v1791
        %1856 = vst [vmem:[#allocation2 + $0x150] sm:$0xff] %v1792
        %1857 = vst [vmem:[#allocation2 + $0x158] sm:$0xff] %v1793
        %1858 = vst [vmem:[#allocation2 + $0x160] sm:$0xff] %v1794
        %1859 = vst [vmem:[#allocation2 + $0x168] sm:$0xff] %v1795
        %1860 = vst [vmem:[#allocation2 + $0x170] sm:$0xff] %v1796
        %1861 = vst [vmem:[#allocation2 + $0x178] sm:$0xff] %v1797
        %1862 = vst [vmem:[#allocation2 + $0x180] sm:$0xff] %v1798
        %1863 = vst [vmem:[#allocation2 + $0x188] sm:$0xff] %v1799
        %1864 = vst [vmem:[#allocation2 + $0x190] sm:$0xff] %v1800
        %1865 = vst [vmem:[#allocation2 + $0x198] sm:$0xff] %v1801
        %1866 = vst [vmem:[#allocation2 + $0x1a0] sm:$0xff] %v1802
        %1867 = vst [vmem:[#allocation2 + $0x1a8] sm:$0xff] %v1803
        %1868 = vst [vmem:[#allocation2 + $0x1b0] sm:$0xff] %v1804
        %1869 = vst [vmem:[#allocation2 + $0x1b8] sm:$0xff] %v1805
        %1870 = vst [vmem:[#allocation2 + $0x1c0] sm:$0xff] %v1806
        %1871 = vst [vmem:[#allocation2 + $0x1c8] sm:$0xff] %v1807
        %1872 = vst [vmem:[#allocation2 + $0x1d0] sm:$0xff] %v1808
        %1873 = vst [vmem:[#allocation2 + $0x1d8] sm:$0xff] %v1809
        %1874 = vst [vmem:[#allocation2 + $0x1e0] sm:$0xff] %v1810
        %1875 = vst [vmem:[#allocation2 + $0x1e8] sm:$0xff] %v1811
        %1876 = vst [vmem:[#allocation2 + $0x1f0] sm:$0xff] %v1812
        %1877 = vst [vmem:[#allocation2 + $0x1f8] sm:$0xff] %v1813
        // Predicated region
        $region61: #{tpu_custom_call.1} parent=39 // pred_check
          %p1878 = pneg %p330
        $region62: #{tpu_custom_call.1} parent=39 // pred_check_branch
          %1880 = sbr.rel (%p1878) target = $region64
        $region63: #{tpu_custom_call.1} parent=39 // pred_region
          %v1881 = vld [vmem:[#allocation2] sm:$0xff]
          %v1882 = vld [vmem:[#allocation2 + $0x8] sm:$0xff]
          %v1883 = vld [vmem:[#allocation2 + $0x10] sm:$0xff]
          %v1884 = vld [vmem:[#allocation2 + $0x18] sm:$0xff]
          %v1885 = vld [vmem:[#allocation2 + $0x20] sm:$0xff]
          %v1886 = vld [vmem:[#allocation2 + $0x28] sm:$0xff]
          %v1887 = vld [vmem:[#allocation2 + $0x30] sm:$0xff]
          %v1888 = vld [vmem:[#allocation2 + $0x38] sm:$0xff]
          %v1889 = vld [vmem:[#allocation2 + $0x40] sm:$0xff]
          %v1890 = vld [vmem:[#allocation2 + $0x48] sm:$0xff]
          %v1891 = vld [vmem:[#allocation2 + $0x50] sm:$0xff]
          %v1892 = vld [vmem:[#allocation2 + $0x58] sm:$0xff]
          %v1893 = vld [vmem:[#allocation2 + $0x60] sm:$0xff]
          %v1894 = vld [vmem:[#allocation2 + $0x68] sm:$0xff]
          %v1895 = vld [vmem:[#allocation2 + $0x70] sm:$0xff]
          %v1896 = vld [vmem:[#allocation2 + $0x78] sm:$0xff]
          %v1897 = vld [vmem:[#allocation2 + $0x80] sm:$0xff]
          %v1898 = vld [vmem:[#allocation2 + $0x88] sm:$0xff]
          %v1899 = vld [vmem:[#allocation2 + $0x90] sm:$0xff]
          %v1900 = vld [vmem:[#allocation2 + $0x98] sm:$0xff]
          %v1901 = vld [vmem:[#allocation2 + $0xa0] sm:$0xff]
          %v1902 = vld [vmem:[#allocation2 + $0xa8] sm:$0xff]
          %v1903 = vld [vmem:[#allocation2 + $0xb0] sm:$0xff]
          %v1904 = vld [vmem:[#allocation2 + $0xb8] sm:$0xff]
          %v1905 = vld [vmem:[#allocation2 + $0xc0] sm:$0xff]
          %v1906 = vld [vmem:[#allocation2 + $0xc8] sm:$0xff]
          %v1907 = vld [vmem:[#allocation2 + $0xd0] sm:$0xff]
          %v1908 = vld [vmem:[#allocation2 + $0xd8] sm:$0xff]
          %v1909 = vld [vmem:[#allocation2 + $0xe0] sm:$0xff]
          %v1910 = vld [vmem:[#allocation2 + $0xe8] sm:$0xff]
          %v1911 = vld [vmem:[#allocation2 + $0xf0] sm:$0xff]
          %v1912 = vld [vmem:[#allocation2 + $0xf8] sm:$0xff]
          %v1913 = vld [vmem:[#allocation2 + $0x100] sm:$0xff]
          %v1914 = vld [vmem:[#allocation2 + $0x108] sm:$0xff]
          %v1915 = vld [vmem:[#allocation2 + $0x110] sm:$0xff]
          %v1916 = vld [vmem:[#allocation2 + $0x118] sm:$0xff]
          %v1917 = vld [vmem:[#allocation2 + $0x120] sm:$0xff]
          %v1918 = vld [vmem:[#allocation2 + $0x128] sm:$0xff]
          %v1919 = vld [vmem:[#allocation2 + $0x130] sm:$0xff]
          %v1920 = vld [vmem:[#allocation2 + $0x138] sm:$0xff]
          %v1921 = vld [vmem:[#allocation2 + $0x140] sm:$0xff]
          %v1922 = vld [vmem:[#allocation2 + $0x148] sm:$0xff]
          %v1923 = vld [vmem:[#allocation2 + $0x150] sm:$0xff]
          %v1924 = vld [vmem:[#allocation2 + $0x158] sm:$0xff]
          %v1925 = vld [vmem:[#allocation2 + $0x160] sm:$0xff]
          %v1926 = vld [vmem:[#allocation2 + $0x168] sm:$0xff]
          %v1927 = vld [vmem:[#allocation2 + $0x170] sm:$0xff]
          %v1928 = vld [vmem:[#allocation2 + $0x178] sm:$0xff]
          %v1929 = vld [vmem:[#allocation2 + $0x180] sm:$0xff]
          %v1930 = vld [vmem:[#allocation2 + $0x188] sm:$0xff]
          %v1931 = vld [vmem:[#allocation2 + $0x190] sm:$0xff]
          %v1932 = vld [vmem:[#allocation2 + $0x198] sm:$0xff]
          %v1933 = vld [vmem:[#allocation2 + $0x1a0] sm:$0xff]
          %v1934 = vld [vmem:[#allocation2 + $0x1a8] sm:$0xff]
          %v1935 = vld [vmem:[#allocation2 + $0x1b0] sm:$0xff]
          %v1936 = vld [vmem:[#allocation2 + $0x1b8] sm:$0xff]
          %v1937 = vld [vmem:[#allocation2 + $0x1c0] sm:$0xff]
          %v1938 = vld [vmem:[#allocation2 + $0x1c8] sm:$0xff]
          %v1939 = vld [vmem:[#allocation2 + $0x1d0] sm:$0xff]
          %v1940 = vld [vmem:[#allocation2 + $0x1d8] sm:$0xff]
          %v1941 = vld [vmem:[#allocation2 + $0x1e0] sm:$0xff]
          %v1942 = vld [vmem:[#allocation2 + $0x1e8] sm:$0xff]
          %v1943 = vld [vmem:[#allocation2 + $0x1f0] sm:$0xff]
          %v1944 = vld [vmem:[#allocation2 + $0x1f8] sm:$0xff]
          %v1945 = vld [vmem:[#allocation8] sm:$0x3]
          %v1947 = vperm.slane %v1945, 0
          %v1948 = vperm.slane %v1945, 1
          %v1951 = vadd.f32 %v1881, %v1947
          %v1952 = vadd.f32 %v1882, %v1948
          %v1953 = vadd.f32 %v1883, %v1947
          %v1954 = vadd.f32 %v1884, %v1948
          %v1955 = vadd.f32 %v1885, %v1947
          %v1956 = vadd.f32 %v1886, %v1948
          %v1957 = vadd.f32 %v1887, %v1947
          %v1958 = vadd.f32 %v1888, %v1948
          %v1959 = vadd.f32 %v1889, %v1947
          %v1960 = vadd.f32 %v1890, %v1948
          %v1961 = vadd.f32 %v1891, %v1947
          %v1962 = vadd.f32 %v1892, %v1948
          %v1963 = vadd.f32 %v1893, %v1947
          %v1964 = vadd.f32 %v1894, %v1948
          %v1965 = vadd.f32 %v1895, %v1947
          %v1966 = vadd.f32 %v1896, %v1948
          %v1967 = vadd.f32 %v1897, %v1947
          %v1968 = vadd.f32 %v1898, %v1948
          %v1969 = vadd.f32 %v1899, %v1947
          %v1970 = vadd.f32 %v1900, %v1948
          %v1971 = vadd.f32 %v1901, %v1947
          %v1972 = vadd.f32 %v1902, %v1948
          %v1973 = vadd.f32 %v1903, %v1947
          %v1974 = vadd.f32 %v1904, %v1948
          %v1975 = vadd.f32 %v1905, %v1947
          %v1976 = vadd.f32 %v1906, %v1948
          %v1977 = vadd.f32 %v1907, %v1947
          %v1978 = vadd.f32 %v1908, %v1948
          %v1979 = vadd.f32 %v1909, %v1947
          %v1980 = vadd.f32 %v1910, %v1948
          %v1981 = vadd.f32 %v1911, %v1947
          %v1982 = vadd.f32 %v1912, %v1948
          %v1983 = vadd.f32 %v1913, %v1947
          %v1984 = vadd.f32 %v1914, %v1948
          %v1985 = vadd.f32 %v1915, %v1947
          %v1986 = vadd.f32 %v1916, %v1948
          %v1987 = vadd.f32 %v1917, %v1947
          %v1988 = vadd.f32 %v1918, %v1948
          %v1989 = vadd.f32 %v1919, %v1947
          %v1990 = vadd.f32 %v1920, %v1948
          %v1991 = vadd.f32 %v1921, %v1947
          %v1992 = vadd.f32 %v1922, %v1948
          %v1993 = vadd.f32 %v1923, %v1947
          %v1994 = vadd.f32 %v1924, %v1948
          %v1995 = vadd.f32 %v1925, %v1947
          %v1996 = vadd.f32 %v1926, %v1948
          %v1997 = vadd.f32 %v1927, %v1947
          %v1998 = vadd.f32 %v1928, %v1948
          %v1999 = vadd.f32 %v1929, %v1947
          %v2000 = vadd.f32 %v1930, %v1948
          %v2001 = vadd.f32 %v1931, %v1947
          %v2002 = vadd.f32 %v1932, %v1948
          %v2003 = vadd.f32 %v1933, %v1947
          %v2004 = vadd.f32 %v1934, %v1948
          %v2005 = vadd.f32 %v1935, %v1947
          %v2006 = vadd.f32 %v1936, %v1948
          %v2007 = vadd.f32 %v1937, %v1947
          %v2008 = vadd.f32 %v1938, %v1948
          %v2009 = vadd.f32 %v1939, %v1947
          %v2010 = vadd.f32 %v1940, %v1948
          %v2011 = vadd.f32 %v1941, %v1947
          %v2012 = vadd.f32 %v1942, %v1948
          %v2013 = vadd.f32 %v1943, %v1947
          %v2014 = vadd.f32 %v1944, %v1948
          %v2015 = vmax.f32 %v1951, 0.0
          %v2016 = vmax.f32 %v1952, 0.0
          %v2017 = vmax.f32 %v1953, 0.0
          %v2018 = vmax.f32 %v1954, 0.0
          %v2019 = vmax.f32 %v1955, 0.0
          %v2020 = vmax.f32 %v1956, 0.0
          %v2021 = vmax.f32 %v1957, 0.0
          %v2022 = vmax.f32 %v1958, 0.0
          %v2023 = vmax.f32 %v1959, 0.0
          %v2024 = vmax.f32 %v1960, 0.0
          %v2025 = vmax.f32 %v1961, 0.0
          %v2026 = vmax.f32 %v1962, 0.0
          %v2027 = vmax.f32 %v1963, 0.0
          %v2028 = vmax.f32 %v1964, 0.0
          %v2029 = vmax.f32 %v1965, 0.0
          %v2030 = vmax.f32 %v1966, 0.0
          %v2031 = vmax.f32 %v1967, 0.0
          %v2032 = vmax.f32 %v1968, 0.0
          %v2033 = vmax.f32 %v1969, 0.0
          %v2034 = vmax.f32 %v1970, 0.0
          %v2035 = vmax.f32 %v1971, 0.0
          %v2036 = vmax.f32 %v1972, 0.0
          %v2037 = vmax.f32 %v1973, 0.0
          %v2038 = vmax.f32 %v1974, 0.0
          %v2039 = vmax.f32 %v1975, 0.0
          %v2040 = vmax.f32 %v1976, 0.0
          %v2041 = vmax.f32 %v1977, 0.0
          %v2042 = vmax.f32 %v1978, 0.0
          %v2043 = vmax.f32 %v1979, 0.0
          %v2044 = vmax.f32 %v1980, 0.0
          %v2045 = vmax.f32 %v1981, 0.0
          %v2046 = vmax.f32 %v1982, 0.0
          %v2047 = vmax.f32 %v1983, 0.0
          %v2048 = vmax.f32 %v1984, 0.0
          %v2049 = vmax.f32 %v1985, 0.0
          %v2050 = vmax.f32 %v1986, 0.0
          %v2051 = vmax.f32 %v1987, 0.0
          %v2052 = vmax.f32 %v1988, 0.0
          %v2053 = vmax.f32 %v1989, 0.0
          %v2054 = vmax.f32 %v1990, 0.0
          %v2055 = vmax.f32 %v1991, 0.0
          %v2056 = vmax.f32 %v1992, 0.0
          %v2057 = vmax.f32 %v1993, 0.0
          %v2058 = vmax.f32 %v1994, 0.0
          %v2059 = vmax.f32 %v1995, 0.0
          %v2060 = vmax.f32 %v1996, 0.0
          %v2061 = vmax.f32 %v1997, 0.0
          %v2062 = vmax.f32 %v1998, 0.0
          %v2063 = vmax.f32 %v1999, 0.0
          %v2064 = vmax.f32 %v2000, 0.0
          %v2065 = vmax.f32 %v2001, 0.0
          %v2066 = vmax.f32 %v2002, 0.0
          %v2067 = vmax.f32 %v2003, 0.0
          %v2068 = vmax.f32 %v2004, 0.0
          %v2069 = vmax.f32 %v2005, 0.0
          %v2070 = vmax.f32 %v2006, 0.0
          %v2071 = vmax.f32 %v2007, 0.0
          %v2072 = vmax.f32 %v2008, 0.0
          %v2073 = vmax.f32 %v2009, 0.0
          %v2074 = vmax.f32 %v2010, 0.0
          %v2075 = vmax.f32 %v2011, 0.0
          %v2076 = vmax.f32 %v2012, 0.0
          %v2077 = vmax.f32 %v2013, 0.0
          %v2078 = vmax.f32 %v2014, 0.0
          %v2079 = vand.u32 2147483647, %v1951
          %v2080 = vand.u32 2147483647, %v1952
          %v2081 = vand.u32 2147483647, %v1953
          %v2082 = vand.u32 2147483647, %v1954
          %v2083 = vand.u32 2147483647, %v1955
          %v2084 = vand.u32 2147483647, %v1956
          %v2085 = vand.u32 2147483647, %v1957
          %v2086 = vand.u32 2147483647, %v1958
          %v2087 = vand.u32 2147483647, %v1959
          %v2088 = vand.u32 2147483647, %v1960
          %v2089 = vand.u32 2147483647, %v1961
          %v2090 = vand.u32 2147483647, %v1962
          %v2091 = vand.u32 2147483647, %v1963
          %v2092 = vand.u32 2147483647, %v1964
          %v2093 = vand.u32 2147483647, %v1965
          %v2094 = vand.u32 2147483647, %v1966
          %v2095 = vand.u32 2147483647, %v1967
          %v2096 = vand.u32 2147483647, %v1968
          %v2097 = vand.u32 2147483647, %v1969
          %v2098 = vand.u32 2147483647, %v1970
          %v2099 = vand.u32 2147483647, %v1971
          %v2100 = vand.u32 2147483647, %v1972
          %v2101 = vand.u32 2147483647, %v1973
          %v2102 = vand.u32 2147483647, %v1974
          %v2103 = vand.u32 2147483647, %v1975
          %v2104 = vand.u32 2147483647, %v1976
          %v2105 = vand.u32 2147483647, %v1977
          %v2106 = vand.u32 2147483647, %v1978
          %v2107 = vand.u32 2147483647, %v1979
          %v2108 = vand.u32 2147483647, %v1980
          %v2109 = vand.u32 2147483647, %v1981
          %v2110 = vand.u32 2147483647, %v1982
          %v2111 = vand.u32 2147483647, %v1983
          %v2112 = vand.u32 2147483647, %v1984
          %v2113 = vand.u32 2147483647, %v1985
          %v2114 = vand.u32 2147483647, %v1986
          %v2115 = vand.u32 2147483647, %v1987
          %v2116 = vand.u32 2147483647, %v1988
          %v2117 = vand.u32 2147483647, %v1989
          %v2118 = vand.u32 2147483647, %v1990
          %v2119 = vand.u32 2147483647, %v1991
          %v2120 = vand.u32 2147483647, %v1992
          %v2121 = vand.u32 2147483647, %v1993
          %v2122 = vand.u32 2147483647, %v1994
          %v2123 = vand.u32 2147483647, %v1995
          %v2124 = vand.u32 2147483647, %v1996
          %v2125 = vand.u32 2147483647, %v1997
          %v2126 = vand.u32 2147483647, %v1998
          %v2127 = vand.u32 2147483647, %v1999
          %v2128 = vand.u32 2147483647, %v2000
          %v2129 = vand.u32 2147483647, %v2001
          %v2130 = vand.u32 2147483647, %v2002
          %v2131 = vand.u32 2147483647, %v2003
          %v2132 = vand.u32 2147483647, %v2004
          %v2133 = vand.u32 2147483647, %v2005
          %v2134 = vand.u32 2147483647, %v2006
          %v2135 = vand.u32 2147483647, %v2007
          %v2136 = vand.u32 2147483647, %v2008
          %v2137 = vand.u32 2147483647, %v2009
          %v2138 = vand.u32 2147483647, %v2010
          %v2139 = vand.u32 2147483647, %v2011
          %v2140 = vand.u32 2147483647, %v2012
          %v2141 = vand.u32 2147483647, %v2013
          %v2142 = vand.u32 2147483647, %v2014
          %v2143 = vsub.f32 0.0, %v2079
          %v2144 = vsub.f32 0.0, %v2080
          %v2145 = vsub.f32 0.0, %v2081
          %v2146 = vsub.f32 0.0, %v2082
          %v2147 = vsub.f32 0.0, %v2083
          %v2148 = vsub.f32 0.0, %v2084
          %v2149 = vsub.f32 0.0, %v2085
          %v2150 = vsub.f32 0.0, %v2086
          %v2151 = vsub.f32 0.0, %v2087
          %v2152 = vsub.f32 0.0, %v2088
          %v2153 = vsub.f32 0.0, %v2089
          %v2154 = vsub.f32 0.0, %v2090
          %v2155 = vsub.f32 0.0, %v2091
          %v2156 = vsub.f32 0.0, %v2092
          %v2157 = vsub.f32 0.0, %v2093
          %v2158 = vsub.f32 0.0, %v2094
          %v2159 = vsub.f32 0.0, %v2095
          %v2160 = vsub.f32 0.0, %v2096
          %v2161 = vsub.f32 0.0, %v2097
          %v2162 = vsub.f32 0.0, %v2098
          %v2163 = vsub.f32 0.0, %v2099
          %v2164 = vsub.f32 0.0, %v2100
          %v2165 = vsub.f32 0.0, %v2101
          %v2166 = vsub.f32 0.0, %v2102
          %v2167 = vsub.f32 0.0, %v2103
          %v2168 = vsub.f32 0.0, %v2104
          %v2169 = vsub.f32 0.0, %v2105
          %v2170 = vsub.f32 0.0, %v2106
          %v2171 = vsub.f32 0.0, %v2107
          %v2172 = vsub.f32 0.0, %v2108
          %v2173 = vsub.f32 0.0, %v2109
          %v2174 = vsub.f32 0.0, %v2110
          %v2175 = vsub.f32 0.0, %v2111
          %v2176 = vsub.f32 0.0, %v2112
          %v2177 = vsub.f32 0.0, %v2113
          %v2178 = vsub.f32 0.0, %v2114
          %v2179 = vsub.f32 0.0, %v2115
          %v2180 = vsub.f32 0.0, %v2116
          %v2181 = vsub.f32 0.0, %v2117
          %v2182 = vsub.f32 0.0, %v2118
          %v2183 = vsub.f32 0.0, %v2119
          %v2184 = vsub.f32 0.0, %v2120
          %v2185 = vsub.f32 0.0, %v2121
          %v2186 = vsub.f32 0.0, %v2122
          %v2187 = vsub.f32 0.0, %v2123
          %v2188 = vsub.f32 0.0, %v2124
          %v2189 = vsub.f32 0.0, %v2125
          %v2190 = vsub.f32 0.0, %v2126
          %v2191 = vsub.f32 0.0, %v2127
          %v2192 = vsub.f32 0.0, %v2128
          %v2193 = vsub.f32 0.0, %v2129
          %v2194 = vsub.f32 0.0, %v2130
          %v2195 = vsub.f32 0.0, %v2131
          %v2196 = vsub.f32 0.0, %v2132
          %v2197 = vsub.f32 0.0, %v2133
          %v2198 = vsub.f32 0.0, %v2134
          %v2199 = vsub.f32 0.0, %v2135
          %v2200 = vsub.f32 0.0, %v2136
          %v2201 = vsub.f32 0.0, %v2137
          %v2202 = vsub.f32 0.0, %v2138
          %v2203 = vsub.f32 0.0, %v2139
          %v2204 = vsub.f32 0.0, %v2140
          %v2205 = vsub.f32 0.0, %v2141
          %v2206 = vsub.f32 0.0, %v2142
          %v2207 = vmul.f32 %v2143, 1.442695
          %v2208 = vpow.pop %v2207
          %v2209 = vmul.f32 %v2144, 1.442695
          %v2210 = vpow.pop %v2209
          %v2211 = vmul.f32 %v2145, 1.442695
          %v2212 = vpow.pop %v2211
          %v2213 = vmul.f32 %v2146, 1.442695
          %v2214 = vpow.pop %v2213
          %v2215 = vmul.f32 %v2147, 1.442695
          %v2216 = vpow.pop %v2215
          %v2217 = vmul.f32 %v2148, 1.442695
          %v2218 = vpow.pop %v2217
          %v2219 = vmul.f32 %v2149, 1.442695
          %v2220 = vpow.pop %v2219
          %v2221 = vmul.f32 %v2150, 1.442695
          %v2222 = vpow.pop %v2221
          %v2223 = vmul.f32 %v2151, 1.442695
          %v2224 = vpow.pop %v2223
          %v2225 = vmul.f32 %v2152, 1.442695
          %v2226 = vpow.pop %v2225
          %v2227 = vmul.f32 %v2153, 1.442695
          %v2228 = vpow.pop %v2227
          %v2229 = vmul.f32 %v2154, 1.442695
          %v2230 = vpow.pop %v2229
          %v2231 = vmul.f32 %v2155, 1.442695
          %v2232 = vpow.pop %v2231
          %v2233 = vmul.f32 %v2156, 1.442695
          %v2234 = vpow.pop %v2233
          %v2235 = vmul.f32 %v2157, 1.442695
          %v2236 = vpow.pop %v2235
          %v2237 = vmul.f32 %v2158, 1.442695
          %v2238 = vpow.pop %v2237
          %v2239 = vmul.f32 %v2159, 1.442695
          %v2240 = vpow.pop %v2239
          %v2241 = vmul.f32 %v2160, 1.442695
          %v2242 = vpow.pop %v2241
          %v2243 = vmul.f32 %v2161, 1.442695
          %v2244 = vpow.pop %v2243
          %v2245 = vmul.f32 %v2162, 1.442695
          %v2246 = vpow.pop %v2245
          %v2247 = vmul.f32 %v2163, 1.442695
          %v2248 = vpow.pop %v2247
          %v2249 = vmul.f32 %v2164, 1.442695
          %v2250 = vpow.pop %v2249
          %v2251 = vmul.f32 %v2165, 1.442695
          %v2252 = vpow.pop %v2251
          %v2253 = vmul.f32 %v2166, 1.442695
          %v2254 = vpow.pop %v2253
          %v2255 = vmul.f32 %v2167, 1.442695
          %v2256 = vpow.pop %v2255
          %v2257 = vmul.f32 %v2168, 1.442695
          %v2258 = vpow.pop %v2257
          %v2259 = vmul.f32 %v2169, 1.442695
          %v2260 = vpow.pop %v2259
          %v2261 = vmul.f32 %v2170, 1.442695
          %v2262 = vpow.pop %v2261
          %v2263 = vmul.f32 %v2171, 1.442695
          %v2264 = vpow.pop %v2263
          %v2265 = vmul.f32 %v2172, 1.442695
          %v2266 = vpow.pop %v2265
          %v2267 = vmul.f32 %v2173, 1.442695
          %v2268 = vpow.pop %v2267
          %v2269 = vmul.f32 %v2174, 1.442695
          %v2270 = vpow.pop %v2269
          %v2271 = vmul.f32 %v2175, 1.442695
          %v2272 = vpow.pop %v2271
          %v2273 = vmul.f32 %v2176, 1.442695
          %v2274 = vpow.pop %v2273
          %v2275 = vmul.f32 %v2177, 1.442695
          %v2276 = vpow.pop %v2275
          %v2277 = vmul.f32 %v2178, 1.442695
          %v2278 = vpow.pop %v2277
          %v2279 = vmul.f32 %v2179, 1.442695
          %v2280 = vpow.pop %v2279
          %v2281 = vmul.f32 %v2180, 1.442695
          %v2282 = vpow.pop %v2281
          %v2283 = vmul.f32 %v2181, 1.442695
          %v2284 = vpow.pop %v2283
          %v2285 = vmul.f32 %v2182, 1.442695
          %v2286 = vpow.pop %v2285
          %v2287 = vmul.f32 %v2183, 1.442695
          %v2288 = vpow.pop %v2287
          %v2289 = vmul.f32 %v2184, 1.442695
          %v2290 = vpow.pop %v2289
          %v2291 = vmul.f32 %v2185, 1.442695
          %v2292 = vpow.pop %v2291
          %v2293 = vmul.f32 %v2186, 1.442695
          %v2294 = vpow.pop %v2293
          %v2295 = vmul.f32 %v2187, 1.442695
          %v2296 = vpow.pop %v2295
          %v2297 = vmul.f32 %v2188, 1.442695
          %v2298 = vpow.pop %v2297
          %v2299 = vmul.f32 %v2189, 1.442695
          %v2300 = vpow.pop %v2299
          %v2301 = vmul.f32 %v2190, 1.442695
          %v2302 = vpow.pop %v2301
          %v2303 = vmul.f32 %v2191, 1.442695
          %v2304 = vpow.pop %v2303
          %v2305 = vmul.f32 %v2192, 1.442695
          %v2306 = vpow.pop %v2305
          %v2307 = vmul.f32 %v2193, 1.442695
          %v2308 = vpow.pop %v2307
          %v2309 = vmul.f32 %v2194, 1.442695
          %v2310 = vpow.pop %v2309
          %v2311 = vmul.f32 %v2195, 1.442695
          %v2312 = vpow.pop %v2311
          %v2313 = vmul.f32 %v2196, 1.442695
          %v2314 = vpow.pop %v2313
          %v2315 = vmul.f32 %v2197, 1.442695
          %v2316 = vpow.pop %v2315
          %v2317 = vmul.f32 %v2198, 1.442695
          %v2318 = vpow.pop %v2317
          %v2319 = vmul.f32 %v2199, 1.442695
          %v2320 = vpow.pop %v2319
          %v2321 = vmul.f32 %v2200, 1.442695
          %v2322 = vpow.pop %v2321
          %v2323 = vmul.f32 %v2201, 1.442695
          %v2324 = vpow.pop %v2323
          %v2325 = vmul.f32 %v2202, 1.442695
          %v2326 = vpow.pop %v2325
          %v2327 = vmul.f32 %v2203, 1.442695
          %v2328 = vpow.pop %v2327
          %v2329 = vmul.f32 %v2204, 1.442695
          %v2330 = vpow.pop %v2329
          %v2331 = vmul.f32 %v2205, 1.442695
          %v2332 = vpow.pop %v2331
          %v2333 = vmul.f32 %v2206, 1.442695
          %v2334 = vpow.pop %v2333
          %v2335 = vadd.f32 %v2208, 1.0
          %v2336 = vlog2.pop %v2335
          %v2337 = vmul.f32 %v2336, 0.6931472
          %v2338 = vmul.f32 -0.5, %v2208
          %v2339 = vadd.f32 %v2338, 1.0
          %v2340 = vmul.f32 %v2339, %v2208
          %v2341 = vand.u32 2147483647, %v2208
          %vm2342 = vcmp.lt.f32.partialorder %v2341, 0.0004427343
          %v2343 = vsel %vm2342, %v2340, %v2337
          %v2344 = vadd.f32 %v2210, 1.0
          %v2345 = vlog2.pop %v2344
          %v2346 = vmul.f32 %v2345, 0.6931472
          %v2347 = vmul.f32 -0.5, %v2210
          %v2348 = vadd.f32 %v2347, 1.0
          %v2349 = vmul.f32 %v2348, %v2210
          %v2350 = vand.u32 2147483647, %v2210
          %vm2351 = vcmp.lt.f32.partialorder %v2350, 0.0004427343
          %v2352 = vsel %vm2351, %v2349, %v2346
          %v2353 = vadd.f32 %v2212, 1.0
          %v2354 = vlog2.pop %v2353
          %v2355 = vmul.f32 %v2354, 0.6931472
          %v2356 = vmul.f32 -0.5, %v2212
          %v2357 = vadd.f32 %v2356, 1.0
          %v2358 = vmul.f32 %v2357, %v2212
          %v2359 = vand.u32 2147483647, %v2212
          %vm2360 = vcmp.lt.f32.partialorder %v2359, 0.0004427343
          %v2361 = vsel %vm2360, %v2358, %v2355
          %v2362 = vadd.f32 %v2214, 1.0
          %v2363 = vlog2.pop %v2362
          %v2364 = vmul.f32 %v2363, 0.6931472
          %v2365 = vmul.f32 -0.5, %v2214
          %v2366 = vadd.f32 %v2365, 1.0
          %v2367 = vmul.f32 %v2366, %v2214
          %v2368 = vand.u32 2147483647, %v2214
          %vm2369 = vcmp.lt.f32.partialorder %v2368, 0.0004427343
          %v2370 = vsel %vm2369, %v2367, %v2364
          %v2371 = vadd.f32 %v2216, 1.0
          %v2372 = vlog2.pop %v2371
          %v2373 = vmul.f32 %v2372, 0.6931472
          %v2374 = vmul.f32 -0.5, %v2216
          %v2375 = vadd.f32 %v2374, 1.0
          %v2376 = vmul.f32 %v2375, %v2216
          %v2377 = vand.u32 2147483647, %v2216
          %vm2378 = vcmp.lt.f32.partialorder %v2377, 0.0004427343
          %v2379 = vsel %vm2378, %v2376, %v2373
          %v2380 = vadd.f32 %v2218, 1.0
          %v2381 = vlog2.pop %v2380
          %v2382 = vmul.f32 %v2381, 0.6931472
          %v2383 = vmul.f32 -0.5, %v2218
          %v2384 = vadd.f32 %v2383, 1.0
          %v2385 = vmul.f32 %v2384, %v2218
          %v2386 = vand.u32 2147483647, %v2218
          %vm2387 = vcmp.lt.f32.partialorder %v2386, 0.0004427343
          %v2388 = vsel %vm2387, %v2385, %v2382
          %v2389 = vadd.f32 %v2220, 1.0
          %v2390 = vlog2.pop %v2389
          %v2391 = vmul.f32 %v2390, 0.6931472
          %v2392 = vmul.f32 -0.5, %v2220
          %v2393 = vadd.f32 %v2392, 1.0
          %v2394 = vmul.f32 %v2393, %v2220
          %v2395 = vand.u32 2147483647, %v2220
          %vm2396 = vcmp.lt.f32.partialorder %v2395, 0.0004427343
          %v2397 = vsel %vm2396, %v2394, %v2391
          %v2398 = vadd.f32 %v2222, 1.0
          %v2399 = vlog2.pop %v2398
          %v2400 = vmul.f32 %v2399, 0.6931472
          %v2401 = vmul.f32 -0.5, %v2222
          %v2402 = vadd.f32 %v2401, 1.0
          %v2403 = vmul.f32 %v2402, %v2222
          %v2404 = vand.u32 2147483647, %v2222
          %vm2405 = vcmp.lt.f32.partialorder %v2404, 0.0004427343
          %v2406 = vsel %vm2405, %v2403, %v2400
          %v2407 = vadd.f32 %v2224, 1.0
          %v2408 = vlog2.pop %v2407
          %v2409 = vmul.f32 %v2408, 0.6931472
          %v2410 = vmul.f32 -0.5, %v2224
          %v2411 = vadd.f32 %v2410, 1.0
          %v2412 = vmul.f32 %v2411, %v2224
          %v2413 = vand.u32 2147483647, %v2224
          %vm2414 = vcmp.lt.f32.partialorder %v2413, 0.0004427343
          %v2415 = vsel %vm2414, %v2412, %v2409
          %v2416 = vadd.f32 %v2226, 1.0
          %v2417 = vlog2.pop %v2416
          %v2418 = vmul.f32 %v2417, 0.6931472
          %v2419 = vmul.f32 -0.5, %v2226
          %v2420 = vadd.f32 %v2419, 1.0
          %v2421 = vmul.f32 %v2420, %v2226
          %v2422 = vand.u32 2147483647, %v2226
          %vm2423 = vcmp.lt.f32.partialorder %v2422, 0.0004427343
          %v2424 = vsel %vm2423, %v2421, %v2418
          %v2425 = vadd.f32 %v2228, 1.0
          %v2426 = vlog2.pop %v2425
          %v2427 = vmul.f32 %v2426, 0.6931472
          %v2428 = vmul.f32 -0.5, %v2228
          %v2429 = vadd.f32 %v2428, 1.0
          %v2430 = vmul.f32 %v2429, %v2228
          %v2431 = vand.u32 2147483647, %v2228
          %vm2432 = vcmp.lt.f32.partialorder %v2431, 0.0004427343
          %v2433 = vsel %vm2432, %v2430, %v2427
          %v2434 = vadd.f32 %v2230, 1.0
          %v2435 = vlog2.pop %v2434
          %v2436 = vmul.f32 %v2435, 0.6931472
          %v2437 = vmul.f32 -0.5, %v2230
          %v2438 = vadd.f32 %v2437, 1.0
          %v2439 = vmul.f32 %v2438, %v2230
          %v2440 = vand.u32 2147483647, %v2230
          %vm2441 = vcmp.lt.f32.partialorder %v2440, 0.0004427343
          %v2442 = vsel %vm2441, %v2439, %v2436
          %v2443 = vadd.f32 %v2232, 1.0
          %v2444 = vlog2.pop %v2443
          %v2445 = vmul.f32 %v2444, 0.6931472
          %v2446 = vmul.f32 -0.5, %v2232
          %v2447 = vadd.f32 %v2446, 1.0
          %v2448 = vmul.f32 %v2447, %v2232
          %v2449 = vand.u32 2147483647, %v2232
          %vm2450 = vcmp.lt.f32.partialorder %v2449, 0.0004427343
          %v2451 = vsel %vm2450, %v2448, %v2445
          %v2452 = vadd.f32 %v2234, 1.0
          %v2453 = vlog2.pop %v2452
          %v2454 = vmul.f32 %v2453, 0.6931472
          %v2455 = vmul.f32 -0.5, %v2234
          %v2456 = vadd.f32 %v2455, 1.0
          %v2457 = vmul.f32 %v2456, %v2234
          %v2458 = vand.u32 2147483647, %v2234
          %vm2459 = vcmp.lt.f32.partialorder %v2458, 0.0004427343
          %v2460 = vsel %vm2459, %v2457, %v2454
          %v2461 = vadd.f32 %v2236, 1.0
          %v2462 = vlog2.pop %v2461
          %v2463 = vmul.f32 %v2462, 0.6931472
          %v2464 = vmul.f32 -0.5, %v2236
          %v2465 = vadd.f32 %v2464, 1.0
          %v2466 = vmul.f32 %v2465, %v2236
          %v2467 = vand.u32 2147483647, %v2236
          %vm2468 = vcmp.lt.f32.partialorder %v2467, 0.0004427343
          %v2469 = vsel %vm2468, %v2466, %v2463
          %v2470 = vadd.f32 %v2238, 1.0
          %v2471 = vlog2.pop %v2470
          %v2472 = vmul.f32 %v2471, 0.6931472
          %v2473 = vmul.f32 -0.5, %v2238
          %v2474 = vadd.f32 %v2473, 1.0
          %v2475 = vmul.f32 %v2474, %v2238
          %v2476 = vand.u32 2147483647, %v2238
          %vm2477 = vcmp.lt.f32.partialorder %v2476, 0.0004427343
          %v2478 = vsel %vm2477, %v2475, %v2472
          %v2479 = vadd.f32 %v2240, 1.0
          %v2480 = vlog2.pop %v2479
          %v2481 = vmul.f32 %v2480, 0.6931472
          %v2482 = vmul.f32 -0.5, %v2240
          %v2483 = vadd.f32 %v2482, 1.0
          %v2484 = vmul.f32 %v2483, %v2240
          %v2485 = vand.u32 2147483647, %v2240
          %vm2486 = vcmp.lt.f32.partialorder %v2485, 0.0004427343
          %v2487 = vsel %vm2486, %v2484, %v2481
          %v2488 = vadd.f32 %v2242, 1.0
          %v2489 = vlog2.pop %v2488
          %v2490 = vmul.f32 %v2489, 0.6931472
          %v2491 = vmul.f32 -0.5, %v2242
          %v2492 = vadd.f32 %v2491, 1.0
          %v2493 = vmul.f32 %v2492, %v2242
          %v2494 = vand.u32 2147483647, %v2242
          %vm2495 = vcmp.lt.f32.partialorder %v2494, 0.0004427343
          %v2496 = vsel %vm2495, %v2493, %v2490
          %v2497 = vadd.f32 %v2244, 1.0
          %v2498 = vlog2.pop %v2497
          %v2499 = vmul.f32 %v2498, 0.6931472
          %v2500 = vmul.f32 -0.5, %v2244
          %v2501 = vadd.f32 %v2500, 1.0
          %v2502 = vmul.f32 %v2501, %v2244
          %v2503 = vand.u32 2147483647, %v2244
          %vm2504 = vcmp.lt.f32.partialorder %v2503, 0.0004427343
          %v2505 = vsel %vm2504, %v2502, %v2499
          %v2506 = vadd.f32 %v2246, 1.0
          %v2507 = vlog2.pop %v2506
          %v2508 = vmul.f32 %v2507, 0.6931472
          %v2509 = vmul.f32 -0.5, %v2246
          %v2510 = vadd.f32 %v2509, 1.0
          %v2511 = vmul.f32 %v2510, %v2246
          %v2512 = vand.u32 2147483647, %v2246
          %vm2513 = vcmp.lt.f32.partialorder %v2512, 0.0004427343
          %v2514 = vsel %vm2513, %v2511, %v2508
          %v2515 = vadd.f32 %v2248, 1.0
          %v2516 = vlog2.pop %v2515
          %v2517 = vmul.f32 %v2516, 0.6931472
          %v2518 = vmul.f32 -0.5, %v2248
          %v2519 = vadd.f32 %v2518, 1.0
          %v2520 = vmul.f32 %v2519, %v2248
          %v2521 = vand.u32 2147483647, %v2248
          %vm2522 = vcmp.lt.f32.partialorder %v2521, 0.0004427343
          %v2523 = vsel %vm2522, %v2520, %v2517
          %v2524 = vadd.f32 %v2250, 1.0
          %v2525 = vlog2.pop %v2524
          %v2526 = vmul.f32 %v2525, 0.6931472
          %v2527 = vmul.f32 -0.5, %v2250
          %v2528 = vadd.f32 %v2527, 1.0
          %v2529 = vmul.f32 %v2528, %v2250
          %v2530 = vand.u32 2147483647, %v2250
          %vm2531 = vcmp.lt.f32.partialorder %v2530, 0.0004427343
          %v2532 = vsel %vm2531, %v2529, %v2526
          %v2533 = vadd.f32 %v2252, 1.0
          %v2534 = vlog2.pop %v2533
          %v2535 = vmul.f32 %v2534, 0.6931472
          %v2536 = vmul.f32 -0.5, %v2252
          %v2537 = vadd.f32 %v2536, 1.0
          %v2538 = vmul.f32 %v2537, %v2252
          %v2539 = vand.u32 2147483647, %v2252
          %vm2540 = vcmp.lt.f32.partialorder %v2539, 0.0004427343
          %v2541 = vsel %vm2540, %v2538, %v2535
          %v2542 = vadd.f32 %v2254, 1.0
          %v2543 = vlog2.pop %v2542
          %v2544 = vmul.f32 %v2543, 0.6931472
          %v2545 = vmul.f32 -0.5, %v2254
          %v2546 = vadd.f32 %v2545, 1.0
          %v2547 = vmul.f32 %v2546, %v2254
          %v2548 = vand.u32 2147483647, %v2254
          %vm2549 = vcmp.lt.f32.partialorder %v2548, 0.0004427343
          %v2550 = vsel %vm2549, %v2547, %v2544
          %v2551 = vadd.f32 %v2256, 1.0
          %v2552 = vlog2.pop %v2551
          %v2553 = vmul.f32 %v2552, 0.6931472
          %v2554 = vmul.f32 -0.5, %v2256
          %v2555 = vadd.f32 %v2554, 1.0
          %v2556 = vmul.f32 %v2555, %v2256
          %v2557 = vand.u32 2147483647, %v2256
          %vm2558 = vcmp.lt.f32.partialorder %v2557, 0.0004427343
          %v2559 = vsel %vm2558, %v2556, %v2553
          %v2560 = vadd.f32 %v2258, 1.0
          %v2561 = vlog2.pop %v2560
          %v2562 = vmul.f32 %v2561, 0.6931472
          %v2563 = vmul.f32 -0.5, %v2258
          %v2564 = vadd.f32 %v2563, 1.0
          %v2565 = vmul.f32 %v2564, %v2258
          %v2566 = vand.u32 2147483647, %v2258
          %vm2567 = vcmp.lt.f32.partialorder %v2566, 0.0004427343
          %v2568 = vsel %vm2567, %v2565, %v2562
          %v2569 = vadd.f32 %v2260, 1.0
          %v2570 = vlog2.pop %v2569
          %v2571 = vmul.f32 %v2570, 0.6931472
          %v2572 = vmul.f32 -0.5, %v2260
          %v2573 = vadd.f32 %v2572, 1.0
          %v2574 = vmul.f32 %v2573, %v2260
          %v2575 = vand.u32 2147483647, %v2260
          %vm2576 = vcmp.lt.f32.partialorder %v2575, 0.0004427343
          %v2577 = vsel %vm2576, %v2574, %v2571
          %v2578 = vadd.f32 %v2262, 1.0
          %v2579 = vlog2.pop %v2578
          %v2580 = vmul.f32 %v2579, 0.6931472
          %v2581 = vmul.f32 -0.5, %v2262
          %v2582 = vadd.f32 %v2581, 1.0
          %v2583 = vmul.f32 %v2582, %v2262
          %v2584 = vand.u32 2147483647, %v2262
          %vm2585 = vcmp.lt.f32.partialorder %v2584, 0.0004427343
          %v2586 = vsel %vm2585, %v2583, %v2580
          %v2587 = vadd.f32 %v2264, 1.0
          %v2588 = vlog2.pop %v2587
          %v2589 = vmul.f32 %v2588, 0.6931472
          %v2590 = vmul.f32 -0.5, %v2264
          %v2591 = vadd.f32 %v2590, 1.0
          %v2592 = vmul.f32 %v2591, %v2264
          %v2593 = vand.u32 2147483647, %v2264
          %vm2594 = vcmp.lt.f32.partialorder %v2593, 0.0004427343
          %v2595 = vsel %vm2594, %v2592, %v2589
          %v2596 = vadd.f32 %v2266, 1.0
          %v2597 = vlog2.pop %v2596
          %v2598 = vmul.f32 %v2597, 0.6931472
          %v2599 = vmul.f32 -0.5, %v2266
          %v2600 = vadd.f32 %v2599, 1.0
          %v2601 = vmul.f32 %v2600, %v2266
          %v2602 = vand.u32 2147483647, %v2266
          %vm2603 = vcmp.lt.f32.partialorder %v2602, 0.0004427343
          %v2604 = vsel %vm2603, %v2601, %v2598
          %v2605 = vadd.f32 %v2268, 1.0
          %v2606 = vlog2.pop %v2605
          %v2607 = vmul.f32 %v2606, 0.6931472
          %v2608 = vmul.f32 -0.5, %v2268
          %v2609 = vadd.f32 %v2608, 1.0
          %v2610 = vmul.f32 %v2609, %v2268
          %v2611 = vand.u32 2147483647, %v2268
          %vm2612 = vcmp.lt.f32.partialorder %v2611, 0.0004427343
          %v2613 = vsel %vm2612, %v2610, %v2607
          %v2614 = vadd.f32 %v2270, 1.0
          %v2615 = vlog2.pop %v2614
          %v2616 = vmul.f32 %v2615, 0.6931472
          %v2617 = vmul.f32 -0.5, %v2270
          %v2618 = vadd.f32 %v2617, 1.0
          %v2619 = vmul.f32 %v2618, %v2270
          %v2620 = vand.u32 2147483647, %v2270
          %vm2621 = vcmp.lt.f32.partialorder %v2620, 0.0004427343
          %v2622 = vsel %vm2621, %v2619, %v2616
          %v2623 = vadd.f32 %v2272, 1.0
          %v2624 = vlog2.pop %v2623
          %v2625 = vmul.f32 %v2624, 0.6931472
          %v2626 = vmul.f32 -0.5, %v2272
          %v2627 = vadd.f32 %v2626, 1.0
          %v2628 = vmul.f32 %v2627, %v2272
          %v2629 = vand.u32 2147483647, %v2272
          %vm2630 = vcmp.lt.f32.partialorder %v2629, 0.0004427343
          %v2631 = vsel %vm2630, %v2628, %v2625
          %v2632 = vadd.f32 %v2274, 1.0
          %v2633 = vlog2.pop %v2632
          %v2634 = vmul.f32 %v2633, 0.6931472
          %v2635 = vmul.f32 -0.5, %v2274
          %v2636 = vadd.f32 %v2635, 1.0
          %v2637 = vmul.f32 %v2636, %v2274
          %v2638 = vand.u32 2147483647, %v2274
          %vm2639 = vcmp.lt.f32.partialorder %v2638, 0.0004427343
          %v2640 = vsel %vm2639, %v2637, %v2634
          %v2641 = vadd.f32 %v2276, 1.0
          %v2642 = vlog2.pop %v2641
          %v2643 = vmul.f32 %v2642, 0.6931472
          %v2644 = vmul.f32 -0.5, %v2276
          %v2645 = vadd.f32 %v2644, 1.0
          %v2646 = vmul.f32 %v2645, %v2276
          %v2647 = vand.u32 2147483647, %v2276
          %vm2648 = vcmp.lt.f32.partialorder %v2647, 0.0004427343
          %v2649 = vsel %vm2648, %v2646, %v2643
          %v2650 = vadd.f32 %v2278, 1.0
          %v2651 = vlog2.pop %v2650
          %v2652 = vmul.f32 %v2651, 0.6931472
          %v2653 = vmul.f32 -0.5, %v2278
          %v2654 = vadd.f32 %v2653, 1.0
          %v2655 = vmul.f32 %v2654, %v2278
          %v2656 = vand.u32 2147483647, %v2278
          %vm2657 = vcmp.lt.f32.partialorder %v2656, 0.0004427343
          %v2658 = vsel %vm2657, %v2655, %v2652
          %v2659 = vadd.f32 %v2280, 1.0
          %v2660 = vlog2.pop %v2659
          %v2661 = vmul.f32 %v2660, 0.6931472
          %v2662 = vmul.f32 -0.5, %v2280
          %v2663 = vadd.f32 %v2662, 1.0
          %v2664 = vmul.f32 %v2663, %v2280
          %v2665 = vand.u32 2147483647, %v2280
          %vm2666 = vcmp.lt.f32.partialorder %v2665, 0.0004427343
          %v2667 = vsel %vm2666, %v2664, %v2661
          %v2668 = vadd.f32 %v2282, 1.0
          %v2669 = vlog2.pop %v2668
          %v2670 = vmul.f32 %v2669, 0.6931472
          %v2671 = vmul.f32 -0.5, %v2282
          %v2672 = vadd.f32 %v2671, 1.0
          %v2673 = vmul.f32 %v2672, %v2282
          %v2674 = vand.u32 2147483647, %v2282
          %vm2675 = vcmp.lt.f32.partialorder %v2674, 0.0004427343
          %v2676 = vsel %vm2675, %v2673, %v2670
          %v2677 = vadd.f32 %v2284, 1.0
          %v2678 = vlog2.pop %v2677
          %v2679 = vmul.f32 %v2678, 0.6931472
          %v2680 = vmul.f32 -0.5, %v2284
          %v2681 = vadd.f32 %v2680, 1.0
          %v2682 = vmul.f32 %v2681, %v2284
          %v2683 = vand.u32 2147483647, %v2284
          %vm2684 = vcmp.lt.f32.partialorder %v2683, 0.0004427343
          %v2685 = vsel %vm2684, %v2682, %v2679
          %v2686 = vadd.f32 %v2286, 1.0
          %v2687 = vlog2.pop %v2686
          %v2688 = vmul.f32 %v2687, 0.6931472
          %v2689 = vmul.f32 -0.5, %v2286
          %v2690 = vadd.f32 %v2689, 1.0
          %v2691 = vmul.f32 %v2690, %v2286
          %v2692 = vand.u32 2147483647, %v2286
          %vm2693 = vcmp.lt.f32.partialorder %v2692, 0.0004427343
          %v2694 = vsel %vm2693, %v2691, %v2688
          %v2695 = vadd.f32 %v2288, 1.0
          %v2696 = vlog2.pop %v2695
          %v2697 = vmul.f32 %v2696, 0.6931472
          %v2698 = vmul.f32 -0.5, %v2288
          %v2699 = vadd.f32 %v2698, 1.0
          %v2700 = vmul.f32 %v2699, %v2288
          %v2701 = vand.u32 2147483647, %v2288
          %vm2702 = vcmp.lt.f32.partialorder %v2701, 0.0004427343
          %v2703 = vsel %vm2702, %v2700, %v2697
          %v2704 = vadd.f32 %v2290, 1.0
          %v2705 = vlog2.pop %v2704
          %v2706 = vmul.f32 %v2705, 0.6931472
          %v2707 = vmul.f32 -0.5, %v2290
          %v2708 = vadd.f32 %v2707, 1.0
          %v2709 = vmul.f32 %v2708, %v2290
          %v2710 = vand.u32 2147483647, %v2290
          %vm2711 = vcmp.lt.f32.partialorder %v2710, 0.0004427343
          %v2712 = vsel %vm2711, %v2709, %v2706
          %v2713 = vadd.f32 %v2292, 1.0
          %v2714 = vlog2.pop %v2713
          %v2715 = vmul.f32 %v2714, 0.6931472
          %v2716 = vmul.f32 -0.5, %v2292
          %v2717 = vadd.f32 %v2716, 1.0
          %v2718 = vmul.f32 %v2717, %v2292
          %v2719 = vand.u32 2147483647, %v2292
          %vm2720 = vcmp.lt.f32.partialorder %v2719, 0.0004427343
          %v2721 = vsel %vm2720, %v2718, %v2715
          %v2722 = vadd.f32 %v2294, 1.0
          %v2723 = vlog2.pop %v2722
          %v2724 = vmul.f32 %v2723, 0.6931472
          %v2725 = vmul.f32 -0.5, %v2294
          %v2726 = vadd.f32 %v2725, 1.0
          %v2727 = vmul.f32 %v2726, %v2294
          %v2728 = vand.u32 2147483647, %v2294
          %vm2729 = vcmp.lt.f32.partialorder %v2728, 0.0004427343
          %v2730 = vsel %vm2729, %v2727, %v2724
          %v2731 = vadd.f32 %v2296, 1.0
          %v2732 = vlog2.pop %v2731
          %v2733 = vmul.f32 %v2732, 0.6931472
          %v2734 = vmul.f32 -0.5, %v2296
          %v2735 = vadd.f32 %v2734, 1.0
          %v2736 = vmul.f32 %v2735, %v2296
          %v2737 = vand.u32 2147483647, %v2296
          %vm2738 = vcmp.lt.f32.partialorder %v2737, 0.0004427343
          %v2739 = vsel %vm2738, %v2736, %v2733
          %v2740 = vadd.f32 %v2298, 1.0
          %v2741 = vlog2.pop %v2740
          %v2742 = vmul.f32 %v2741, 0.6931472
          %v2743 = vmul.f32 -0.5, %v2298
          %v2744 = vadd.f32 %v2743, 1.0
          %v2745 = vmul.f32 %v2744, %v2298
          %v2746 = vand.u32 2147483647, %v2298
          %vm2747 = vcmp.lt.f32.partialorder %v2746, 0.0004427343
          %v2748 = vsel %vm2747, %v2745, %v2742
          %v2749 = vadd.f32 %v2300, 1.0
          %v2750 = vlog2.pop %v2749
          %v2751 = vmul.f32 %v2750, 0.6931472
          %v2752 = vmul.f32 -0.5, %v2300
          %v2753 = vadd.f32 %v2752, 1.0
          %v2754 = vmul.f32 %v2753, %v2300
          %v2755 = vand.u32 2147483647, %v2300
          %vm2756 = vcmp.lt.f32.partialorder %v2755, 0.0004427343
          %v2757 = vsel %vm2756, %v2754, %v2751
          %v2758 = vadd.f32 %v2302, 1.0
          %v2759 = vlog2.pop %v2758
          %v2760 = vmul.f32 %v2759, 0.6931472
          %v2761 = vmul.f32 -0.5, %v2302
          %v2762 = vadd.f32 %v2761, 1.0
          %v2763 = vmul.f32 %v2762, %v2302
          %v2764 = vand.u32 2147483647, %v2302
          %vm2765 = vcmp.lt.f32.partialorder %v2764, 0.0004427343
          %v2766 = vsel %vm2765, %v2763, %v2760
          %v2767 = vadd.f32 %v2304, 1.0
          %v2768 = vlog2.pop %v2767
          %v2769 = vmul.f32 %v2768, 0.6931472
          %v2770 = vmul.f32 -0.5, %v2304
          %v2771 = vadd.f32 %v2770, 1.0
          %v2772 = vmul.f32 %v2771, %v2304
          %v2773 = vand.u32 2147483647, %v2304
          %vm2774 = vcmp.lt.f32.partialorder %v2773, 0.0004427343
          %v2775 = vsel %vm2774, %v2772, %v2769
          %v2776 = vadd.f32 %v2306, 1.0
          %v2777 = vlog2.pop %v2776
          %v2778 = vmul.f32 %v2777, 0.6931472
          %v2779 = vmul.f32 -0.5, %v2306
          %v2780 = vadd.f32 %v2779, 1.0
          %v2781 = vmul.f32 %v2780, %v2306
          %v2782 = vand.u32 2147483647, %v2306
          %vm2783 = vcmp.lt.f32.partialorder %v2782, 0.0004427343
          %v2784 = vsel %vm2783, %v2781, %v2778
          %v2785 = vadd.f32 %v2308, 1.0
          %v2786 = vlog2.pop %v2785
          %v2787 = vmul.f32 %v2786, 0.6931472
          %v2788 = vmul.f32 -0.5, %v2308
          %v2789 = vadd.f32 %v2788, 1.0
          %v2790 = vmul.f32 %v2789, %v2308
          %v2791 = vand.u32 2147483647, %v2308
          %vm2792 = vcmp.lt.f32.partialorder %v2791, 0.0004427343
          %v2793 = vsel %vm2792, %v2790, %v2787
          %v2794 = vadd.f32 %v2310, 1.0
          %v2795 = vlog2.pop %v2794
          %v2796 = vmul.f32 %v2795, 0.6931472
          %v2797 = vmul.f32 -0.5, %v2310
          %v2798 = vadd.f32 %v2797, 1.0
          %v2799 = vmul.f32 %v2798, %v2310
          %v2800 = vand.u32 2147483647, %v2310
          %vm2801 = vcmp.lt.f32.partialorder %v2800, 0.0004427343
          %v2802 = vsel %vm2801, %v2799, %v2796
          %v2803 = vadd.f32 %v2312, 1.0
          %v2804 = vlog2.pop %v2803
          %v2805 = vmul.f32 %v2804, 0.6931472
          %v2806 = vmul.f32 -0.5, %v2312
          %v2807 = vadd.f32 %v2806, 1.0
          %v2808 = vmul.f32 %v2807, %v2312
          %v2809 = vand.u32 2147483647, %v2312
          %vm2810 = vcmp.lt.f32.partialorder %v2809, 0.0004427343
          %v2811 = vsel %vm2810, %v2808, %v2805
          %v2812 = vadd.f32 %v2314, 1.0
          %v2813 = vlog2.pop %v2812
          %v2814 = vmul.f32 %v2813, 0.6931472
          %v2815 = vmul.f32 -0.5, %v2314
          %v2816 = vadd.f32 %v2815, 1.0
          %v2817 = vmul.f32 %v2816, %v2314
          %v2818 = vand.u32 2147483647, %v2314
          %vm2819 = vcmp.lt.f32.partialorder %v2818, 0.0004427343
          %v2820 = vsel %vm2819, %v2817, %v2814
          %v2821 = vadd.f32 %v2316, 1.0
          %v2822 = vlog2.pop %v2821
          %v2823 = vmul.f32 %v2822, 0.6931472
          %v2824 = vmul.f32 -0.5, %v2316
          %v2825 = vadd.f32 %v2824, 1.0
          %v2826 = vmul.f32 %v2825, %v2316
          %v2827 = vand.u32 2147483647, %v2316
          %vm2828 = vcmp.lt.f32.partialorder %v2827, 0.0004427343
          %v2829 = vsel %vm2828, %v2826, %v2823
          %v2830 = vadd.f32 %v2318, 1.0
          %v2831 = vlog2.pop %v2830
          %v2832 = vmul.f32 %v2831, 0.6931472
          %v2833 = vmul.f32 -0.5, %v2318
          %v2834 = vadd.f32 %v2833, 1.0
          %v2835 = vmul.f32 %v2834, %v2318
          %v2836 = vand.u32 2147483647, %v2318
          %vm2837 = vcmp.lt.f32.partialorder %v2836, 0.0004427343
          %v2838 = vsel %vm2837, %v2835, %v2832
          %v2839 = vadd.f32 %v2320, 1.0
          %v2840 = vlog2.pop %v2839
          %v2841 = vmul.f32 %v2840, 0.6931472
          %v2842 = vmul.f32 -0.5, %v2320
          %v2843 = vadd.f32 %v2842, 1.0
          %v2844 = vmul.f32 %v2843, %v2320
          %v2845 = vand.u32 2147483647, %v2320
          %vm2846 = vcmp.lt.f32.partialorder %v2845, 0.0004427343
          %v2847 = vsel %vm2846, %v2844, %v2841
          %v2848 = vadd.f32 %v2322, 1.0
          %v2849 = vlog2.pop %v2848
          %v2850 = vmul.f32 %v2849, 0.6931472
          %v2851 = vmul.f32 -0.5, %v2322
          %v2852 = vadd.f32 %v2851, 1.0
          %v2853 = vmul.f32 %v2852, %v2322
          %v2854 = vand.u32 2147483647, %v2322
          %vm2855 = vcmp.lt.f32.partialorder %v2854, 0.0004427343
          %v2856 = vsel %vm2855, %v2853, %v2850
          %v2857 = vadd.f32 %v2324, 1.0
          %v2858 = vlog2.pop %v2857
          %v2859 = vmul.f32 %v2858, 0.6931472
          %v2860 = vmul.f32 -0.5, %v2324
          %v2861 = vadd.f32 %v2860, 1.0
          %v2862 = vmul.f32 %v2861, %v2324
          %v2863 = vand.u32 2147483647, %v2324
          %vm2864 = vcmp.lt.f32.partialorder %v2863, 0.0004427343
          %v2865 = vsel %vm2864, %v2862, %v2859
          %v2866 = vadd.f32 %v2326, 1.0
          %v2867 = vlog2.pop %v2866
          %v2868 = vmul.f32 %v2867, 0.6931472
          %v2869 = vmul.f32 -0.5, %v2326
          %v2870 = vadd.f32 %v2869, 1.0
          %v2871 = vmul.f32 %v2870, %v2326
          %v2872 = vand.u32 2147483647, %v2326
          %vm2873 = vcmp.lt.f32.partialorder %v2872, 0.0004427343
          %v2874 = vsel %vm2873, %v2871, %v2868
          %v2875 = vadd.f32 %v2328, 1.0
          %v2876 = vlog2.pop %v2875
          %v2877 = vmul.f32 %v2876, 0.6931472
          %v2878 = vmul.f32 -0.5, %v2328
          %v2879 = vadd.f32 %v2878, 1.0
          %v2880 = vmul.f32 %v2879, %v2328
          %v2881 = vand.u32 2147483647, %v2328
          %vm2882 = vcmp.lt.f32.partialorder %v2881, 0.0004427343
          %v2883 = vsel %vm2882, %v2880, %v2877
          %v2884 = vadd.f32 %v2330, 1.0
          %v2885 = vlog2.pop %v2884
          %v2886 = vmul.f32 %v2885, 0.6931472
          %v2887 = vmul.f32 -0.5, %v2330
          %v2888 = vadd.f32 %v2887, 1.0
          %v2889 = vmul.f32 %v2888, %v2330
          %v2890 = vand.u32 2147483647, %v2330
          %vm2891 = vcmp.lt.f32.partialorder %v2890, 0.0004427343
          %v2892 = vsel %vm2891, %v2889, %v2886
          %v2893 = vadd.f32 %v2332, 1.0
          %v2894 = vlog2.pop %v2893
          %v2895 = vmul.f32 %v2894, 0.6931472
          %v2896 = vmul.f32 -0.5, %v2332
          %v2897 = vadd.f32 %v2896, 1.0
          %v2898 = vmul.f32 %v2897, %v2332
          %v2899 = vand.u32 2147483647, %v2332
          %vm2900 = vcmp.lt.f32.partialorder %v2899, 0.0004427343
          %v2901 = vsel %vm2900, %v2898, %v2895
          %v2902 = vadd.f32 %v2334, 1.0
          %v2903 = vlog2.pop %v2902
          %v2904 = vmul.f32 %v2903, 0.6931472
          %v2905 = vmul.f32 -0.5, %v2334
          %v2906 = vadd.f32 %v2905, 1.0
          %v2907 = vmul.f32 %v2906, %v2334
          %v2908 = vand.u32 2147483647, %v2334
          %vm2909 = vcmp.lt.f32.partialorder %v2908, 0.0004427343
          %v2910 = vsel %vm2909, %v2907, %v2904
          %v2911 = vadd.f32 %v2015, %v2343
          %v2912 = vadd.f32 %v2016, %v2352
          %v2913 = vadd.f32 %v2017, %v2361
          %v2914 = vadd.f32 %v2018, %v2370
          %v2915 = vadd.f32 %v2019, %v2379
          %v2916 = vadd.f32 %v2020, %v2388
          %v2917 = vadd.f32 %v2021, %v2397
          %v2918 = vadd.f32 %v2022, %v2406
          %v2919 = vadd.f32 %v2023, %v2415
          %v2920 = vadd.f32 %v2024, %v2424
          %v2921 = vadd.f32 %v2025, %v2433
          %v2922 = vadd.f32 %v2026, %v2442
          %v2923 = vadd.f32 %v2027, %v2451
          %v2924 = vadd.f32 %v2028, %v2460
          %v2925 = vadd.f32 %v2029, %v2469
          %v2926 = vadd.f32 %v2030, %v2478
          %v2927 = vadd.f32 %v2031, %v2487
          %v2928 = vadd.f32 %v2032, %v2496
          %v2929 = vadd.f32 %v2033, %v2505
          %v2930 = vadd.f32 %v2034, %v2514
          %v2931 = vadd.f32 %v2035, %v2523
          %v2932 = vadd.f32 %v2036, %v2532
          %v2933 = vadd.f32 %v2037, %v2541
          %v2934 = vadd.f32 %v2038, %v2550
          %v2935 = vadd.f32 %v2039, %v2559
          %v2936 = vadd.f32 %v2040, %v2568
          %v2937 = vadd.f32 %v2041, %v2577
          %v2938 = vadd.f32 %v2042, %v2586
          %v2939 = vadd.f32 %v2043, %v2595
          %v2940 = vadd.f32 %v2044, %v2604
          %v2941 = vadd.f32 %v2045, %v2613
          %v2942 = vadd.f32 %v2046, %v2622
          %v2943 = vadd.f32 %v2047, %v2631
          %v2944 = vadd.f32 %v2048, %v2640
          %v2945 = vadd.f32 %v2049, %v2649
          %v2946 = vadd.f32 %v2050, %v2658
          %v2947 = vadd.f32 %v2051, %v2667
          %v2948 = vadd.f32 %v2052, %v2676
          %v2949 = vadd.f32 %v2053, %v2685
          %v2950 = vadd.f32 %v2054, %v2694
          %v2951 = vadd.f32 %v2055, %v2703
          %v2952 = vadd.f32 %v2056, %v2712
          %v2953 = vadd.f32 %v2057, %v2721
          %v2954 = vadd.f32 %v2058, %v2730
          %v2955 = vadd.f32 %v2059, %v2739
          %v2956 = vadd.f32 %v2060, %v2748
          %v2957 = vadd.f32 %v2061, %v2757
          %v2958 = vadd.f32 %v2062, %v2766
          %v2959 = vadd.f32 %v2063, %v2775
          %v2960 = vadd.f32 %v2064, %v2784
          %v2961 = vadd.f32 %v2065, %v2793
          %v2962 = vadd.f32 %v2066, %v2802
          %v2963 = vadd.f32 %v2067, %v2811
          %v2964 = vadd.f32 %v2068, %v2820
          %v2965 = vadd.f32 %v2069, %v2829
          %v2966 = vadd.f32 %v2070, %v2838
          %v2967 = vadd.f32 %v2071, %v2847
          %v2968 = vadd.f32 %v2072, %v2856
          %v2969 = vadd.f32 %v2073, %v2865
          %v2970 = vadd.f32 %v2074, %v2874
          %v2971 = vadd.f32 %v2075, %v2883
          %v2972 = vadd.f32 %v2076, %v2892
          %v2973 = vadd.f32 %v2077, %v2901
          %v2974 = vadd.f32 %v2078, %v2910
          %v2975 = vpack.c.bf16 %v2913, %v2911
          %v2976 = vpack.c.bf16 %v2914, %v2912
          %v2977 = vpack.c.bf16 %v2917, %v2915
          %v2978 = vpack.c.bf16 %v2918, %v2916
          %v2979 = vpack.c.bf16 %v2921, %v2919
          %v2980 = vpack.c.bf16 %v2922, %v2920
          %v2981 = vpack.c.bf16 %v2925, %v2923
          %v2982 = vpack.c.bf16 %v2926, %v2924
          %v2983 = vpack.c.bf16 %v2929, %v2927
          %v2984 = vpack.c.bf16 %v2930, %v2928
          %v2985 = vpack.c.bf16 %v2933, %v2931
          %v2986 = vpack.c.bf16 %v2934, %v2932
          %v2987 = vpack.c.bf16 %v2937, %v2935
          %v2988 = vpack.c.bf16 %v2938, %v2936
          %v2989 = vpack.c.bf16 %v2941, %v2939
          %v2990 = vpack.c.bf16 %v2942, %v2940
          %v2991 = vpack.c.bf16 %v2945, %v2943
          %v2992 = vpack.c.bf16 %v2946, %v2944
          %v2993 = vpack.c.bf16 %v2949, %v2947
          %v2994 = vpack.c.bf16 %v2950, %v2948
          %v2995 = vpack.c.bf16 %v2953, %v2951
          %v2996 = vpack.c.bf16 %v2954, %v2952
          %v2997 = vpack.c.bf16 %v2957, %v2955
          %v2998 = vpack.c.bf16 %v2958, %v2956
          %v2999 = vpack.c.bf16 %v2961, %v2959
          %v3000 = vpack.c.bf16 %v2962, %v2960
          %v3001 = vpack.c.bf16 %v2965, %v2963
          %v3002 = vpack.c.bf16 %v2966, %v2964
          %v3003 = vpack.c.bf16 %v2969, %v2967
          %v3004 = vpack.c.bf16 %v2970, %v2968
          %v3005 = vpack.c.bf16 %v2973, %v2971
          %v3006 = vpack.c.bf16 %v2974, %v2972
          %v3007 = vld [vmem:[#allocation9] sm:$0xf]
          %v3008 = vld [vmem:[#allocation9 + $0x4] sm:$0xf]
          %v3009 = vld [vmem:[#allocation9 + $0x8] sm:$0xf]
          %v3010 = vld [vmem:[#allocation9 + $0xc] sm:$0xf]
          %v3011 = vld [vmem:[#allocation9 + $0x10] sm:$0xf]
          %v3012 = vld [vmem:[#allocation9 + $0x14] sm:$0xf]
          %v3013 = vld [vmem:[#allocation9 + $0x18] sm:$0xf]
          %v3014 = vld [vmem:[#allocation9 + $0x1c] sm:$0xf]
          %v3015 = vld [vmem:[#allocation9 + $0x20] sm:$0xf]
          %v3016 = vld [vmem:[#allocation9 + $0x24] sm:$0xf]
          %v3017 = vld [vmem:[#allocation9 + $0x28] sm:$0xf]
          %v3018 = vld [vmem:[#allocation9 + $0x2c] sm:$0xf]
          %v3019 = vld [vmem:[#allocation9 + $0x30] sm:$0xf]
          %v3020 = vld [vmem:[#allocation9 + $0x34] sm:$0xf]
          %v3021 = vld [vmem:[#allocation9 + $0x38] sm:$0xf]
          %v3022 = vld [vmem:[#allocation9 + $0x3c] sm:$0xf]
          %v3023 = vld [vmem:[#allocation9 + $0x40] sm:$0xf]
          %v3024 = vld [vmem:[#allocation9 + $0x44] sm:$0xf]
          %v3025 = vld [vmem:[#allocation9 + $0x48] sm:$0xf]
          %v3026 = vld [vmem:[#allocation9 + $0x4c] sm:$0xf]
          %v3027 = vld [vmem:[#allocation9 + $0x50] sm:$0xf]
          %v3028 = vld [vmem:[#allocation9 + $0x54] sm:$0xf]
          %v3029 = vld [vmem:[#allocation9 + $0x58] sm:$0xf]
          %v3030 = vld [vmem:[#allocation9 + $0x5c] sm:$0xf]
          %v3031 = vld [vmem:[#allocation9 + $0x60] sm:$0xf]
          %v3032 = vld [vmem:[#allocation9 + $0x64] sm:$0xf]
          %v3033 = vld [vmem:[#allocation9 + $0x68] sm:$0xf]
          %v3034 = vld [vmem:[#allocation9 + $0x6c] sm:$0xf]
          %v3035 = vld [vmem:[#allocation9 + $0x70] sm:$0xf]
          %v3036 = vld [vmem:[#allocation9 + $0x74] sm:$0xf]
          %v3037 = vld [vmem:[#allocation9 + $0x78] sm:$0xf]
          %v3038 = vld [vmem:[#allocation9 + $0x7c] sm:$0xf]
          %v3039 = vld [vmem:[%s4] sm:$0x1]
          %v3041 = vperm.slane %v3039, 0
          %v3075 = vunpack.c.l.b16 %v3007
          %v3076 = vunpack.c.l.b16 %v3008
          %v3077 = vunpack.c.l.b16 %v3009
          %v3078 = vunpack.c.l.b16 %v3010
          %v3079 = vunpack.c.l.b16 %v3011
          %v3080 = vunpack.c.l.b16 %v3012
          %v3081 = vunpack.c.l.b16 %v3013
          %v3082 = vunpack.c.l.b16 %v3014
          %v3083 = vunpack.c.l.b16 %v3015
          %v3084 = vunpack.c.l.b16 %v3016
          %v3085 = vunpack.c.l.b16 %v3017
          %v3086 = vunpack.c.l.b16 %v3018
          %v3087 = vunpack.c.l.b16 %v3019
          %v3088 = vunpack.c.l.b16 %v3020
          %v3089 = vunpack.c.l.b16 %v3021
          %v3090 = vunpack.c.l.b16 %v3022
          %v3091 = vunpack.c.l.b16 %v3023
          %v3092 = vunpack.c.l.b16 %v3024
          %v3093 = vunpack.c.l.b16 %v3025
          %v3094 = vunpack.c.l.b16 %v3026
          %v3095 = vunpack.c.l.b16 %v3027
          %v3096 = vunpack.c.l.b16 %v3028
          %v3097 = vunpack.c.l.b16 %v3029
          %v3098 = vunpack.c.l.b16 %v3030
          %v3099 = vunpack.c.l.b16 %v3031
          %v3100 = vunpack.c.l.b16 %v3032
          %v3101 = vunpack.c.l.b16 %v3033
          %v3102 = vunpack.c.l.b16 %v3034
          %v3103 = vunpack.c.l.b16 %v3035
          %v3104 = vunpack.c.l.b16 %v3036
          %v3105 = vunpack.c.l.b16 %v3037
          %v3106 = vunpack.c.l.b16 %v3038
          %v3107 = vpack.c.b16 %v3076, %v3075
          %v3108 = vpack.c.b16 %v3078, %v3077
          %v3109 = vpack.c.b16 %v3080, %v3079
          %v3110 = vpack.c.b16 %v3082, %v3081
          %v3111 = vpack.c.b16 %v3084, %v3083
          %v3112 = vpack.c.b16 %v3086, %v3085
          %v3113 = vpack.c.b16 %v3088, %v3087
          %v3114 = vpack.c.b16 %v3090, %v3089
          %v3115 = vpack.c.b16 %v3092, %v3091
          %v3116 = vpack.c.b16 %v3094, %v3093
          %v3117 = vpack.c.b16 %v3096, %v3095
          %v3118 = vpack.c.b16 %v3098, %v3097
          %v3119 = vpack.c.b16 %v3100, %v3099
          %v3120 = vpack.c.b16 %v3102, %v3101
          %v3121 = vpack.c.b16 %v3104, %v3103
          %v3122 = vpack.c.b16 %v3106, %v3105
          %3139 = vmatpush.bf16.msra.mxu0 %v3114
          %3140 = vmatpush.bf16.msra.mxu0 %v3113
          %3141 = vmatpush.bf16.msra.mxu0 %v3112
          %3142 = vmatpush.bf16.msra.mxu0 %v3111
          %3143 = vmatpush.bf16.msra.mxu0 %v3110
          %3144 = vmatpush.bf16.msra.mxu0 %v3109
          %3145 = vmatpush.bf16.msra.mxu0 %v3108
          %3146 = vmatpush.bf16.msra.mxu0 %v3107
          %3147 = vmatmul.bf16.gmra.mxu0 %v2975
          %v3148 = vpop.f32.mrf.mxu0
          %v3149 = vadd.f32 %v3041, %v3148
          %v3150 = vpop.f32.mrf.mxu0
          %v3151 = vadd.f32 %v3041, %v3150
          %3152 = vmatmul.bf16.gmra.mxu0 %v2977
          %v3153 = vpop.f32.mrf.mxu0
          %v3154 = vadd.f32 %v3041, %v3153
          %v3155 = vpop.f32.mrf.mxu0
          %v3156 = vadd.f32 %v3041, %v3155
          %3157 = vmatmul.bf16.gmra.mxu0 %v2979
          %v3158 = vpop.f32.mrf.mxu0
          %v3159 = vadd.f32 %v3041, %v3158
          %v3160 = vpop.f32.mrf.mxu0
          %v3161 = vadd.f32 %v3041, %v3160
          %3162 = vmatmul.bf16.gmra.mxu0 %v2981
          %v3163 = vpop.f32.mrf.mxu0
          %v3164 = vadd.f32 %v3041, %v3163
          %v3165 = vpop.f32.mrf.mxu0
          %v3166 = vadd.f32 %v3041, %v3165
          %3167 = vmatmul.bf16.gmra.mxu0 %v2983
          %v3168 = vpop.f32.mrf.mxu0
          %v3169 = vadd.f32 %v3041, %v3168
          %v3170 = vpop.f32.mrf.mxu0
          %v3171 = vadd.f32 %v3041, %v3170
          %3172 = vmatmul.bf16.gmra.mxu0 %v2985
          %v3173 = vpop.f32.mrf.mxu0
          %v3174 = vadd.f32 %v3041, %v3173
          %v3175 = vpop.f32.mrf.mxu0
          %v3176 = vadd.f32 %v3041, %v3175
          %3177 = vmatmul.bf16.gmra.mxu0 %v2987
          %v3178 = vpop.f32.mrf.mxu0
          %v3179 = vadd.f32 %v3041, %v3178
          %v3180 = vpop.f32.mrf.mxu0
          %v3181 = vadd.f32 %v3041, %v3180
          %3182 = vmatmul.bf16.gmra.mxu0 %v2989
          %v3183 = vpop.f32.mrf.mxu0
          %v3184 = vadd.f32 %v3041, %v3183
          %v3185 = vpop.f32.mrf.mxu0
          %v3186 = vadd.f32 %v3041, %v3185
          %3187 = vmatmul.bf16.gmra.mxu0 %v2991
          %v3188 = vpop.f32.mrf.mxu0
          %v3189 = vadd.f32 %v3041, %v3188
          %v3190 = vpop.f32.mrf.mxu0
          %v3191 = vadd.f32 %v3041, %v3190
          %3192 = vmatmul.bf16.gmra.mxu0 %v2993
          %v3193 = vpop.f32.mrf.mxu0
          %v3194 = vadd.f32 %v3041, %v3193
          %v3195 = vpop.f32.mrf.mxu0
          %v3196 = vadd.f32 %v3041, %v3195
          %3197 = vmatmul.bf16.gmra.mxu0 %v2995
          %v3198 = vpop.f32.mrf.mxu0
          %v3199 = vadd.f32 %v3041, %v3198
          %v3200 = vpop.f32.mrf.mxu0
          %v3201 = vadd.f32 %v3041, %v3200
          %3202 = vmatmul.bf16.gmra.mxu0 %v2997
          %v3203 = vpop.f32.mrf.mxu0
          %v3204 = vadd.f32 %v3041, %v3203
          %v3205 = vpop.f32.mrf.mxu0
          %v3206 = vadd.f32 %v3041, %v3205
          %3207 = vmatmul.bf16.gmra.mxu0 %v2999
          %v3208 = vpop.f32.mrf.mxu0
          %v3209 = vadd.f32 %v3041, %v3208
          %v3210 = vpop.f32.mrf.mxu0
          %v3211 = vadd.f32 %v3041, %v3210
          %3212 = vmatmul.bf16.gmra.mxu0 %v3001
          %v3213 = vpop.f32.mrf.mxu0
          %v3214 = vadd.f32 %v3041, %v3213
          %v3215 = vpop.f32.mrf.mxu0
          %v3216 = vadd.f32 %v3041, %v3215
          %3217 = vmatmul.bf16.gmra.mxu0 %v3003
          %v3218 = vpop.f32.mrf.mxu0
          %v3219 = vadd.f32 %v3041, %v3218
          %v3220 = vpop.f32.mrf.mxu0
          %v3221 = vadd.f32 %v3041, %v3220
          %3222 = vmatmul.bf16.gmra.mxu0 %v3005
          %v3223 = vpop.f32.mrf.mxu0
          %v3224 = vadd.f32 %v3041, %v3223
          %v3225 = vpop.f32.mrf.mxu0
          %v3226 = vadd.f32 %v3041, %v3225
          %3227 = vdwg.mxu0
          %3228 = vmatpush.bf16.msra.mxu0 %v3122
          %3229 = vmatpush.bf16.msra.mxu0 %v3121
          %3230 = vmatpush.bf16.msra.mxu0 %v3120
          %3231 = vmatpush.bf16.msra.mxu0 %v3119
          %3232 = vmatpush.bf16.msra.mxu0 %v3118
          %3233 = vmatpush.bf16.msra.mxu0 %v3117
          %3234 = vmatpush.bf16.msra.mxu0 %v3116
          %3235 = vmatpush.bf16.msra.mxu0 %v3115
          %3236 = vmatmul.bf16.gmra.mxu0 %v2976
          %v3237 = vpop.f32.mrf.mxu0
          %v3238 = vadd.f32 %v3149, %v3237
          %v3239 = vpop.f32.mrf.mxu0
          %v3240 = vadd.f32 %v3151, %v3239
          %3241 = vmatmul.bf16.gmra.mxu0 %v2978
          %v3242 = vpop.f32.mrf.mxu0
          %v3243 = vadd.f32 %v3154, %v3242
          %v3244 = vpop.f32.mrf.mxu0
          %v3245 = vadd.f32 %v3156, %v3244
          %3246 = vmatmul.bf16.gmra.mxu0 %v2980
          %v3247 = vpop.f32.mrf.mxu0
          %v3248 = vadd.f32 %v3159, %v3247
          %v3249 = vpop.f32.mrf.mxu0
          %v3250 = vadd.f32 %v3161, %v3249
          %3251 = vmatmul.bf16.gmra.mxu0 %v2982
          %v3252 = vpop.f32.mrf.mxu0
          %v3253 = vadd.f32 %v3164, %v3252
          %v3254 = vpop.f32.mrf.mxu0
          %v3255 = vadd.f32 %v3166, %v3254
          %3256 = vmatmul.bf16.gmra.mxu0 %v2984
          %v3257 = vpop.f32.mrf.mxu0
          %v3258 = vadd.f32 %v3169, %v3257
          %v3259 = vpop.f32.mrf.mxu0
          %v3260 = vadd.f32 %v3171, %v3259
          %3261 = vmatmul.bf16.gmra.mxu0 %v2986
          %v3262 = vpop.f32.mrf.mxu0
          %v3263 = vadd.f32 %v3174, %v3262
          %v3264 = vpop.f32.mrf.mxu0
          %v3265 = vadd.f32 %v3176, %v3264
          %3266 = vmatmul.bf16.gmra.mxu0 %v2988
          %v3267 = vpop.f32.mrf.mxu0
          %v3268 = vadd.f32 %v3179, %v3267
          %v3269 = vpop.f32.mrf.mxu0
          %v3270 = vadd.f32 %v3181, %v3269
          %3271 = vmatmul.bf16.gmra.mxu0 %v2990
          %v3272 = vpop.f32.mrf.mxu0
          %v3273 = vadd.f32 %v3184, %v3272
          %v3274 = vpop.f32.mrf.mxu0
          %v3275 = vadd.f32 %v3186, %v3274
          %3276 = vmatmul.bf16.gmra.mxu0 %v2992
          %v3277 = vpop.f32.mrf.mxu0
          %v3278 = vadd.f32 %v3189, %v3277
          %v3279 = vpop.f32.mrf.mxu0
          %v3280 = vadd.f32 %v3191, %v3279
          %3281 = vmatmul.bf16.gmra.mxu0 %v2994
          %v3282 = vpop.f32.mrf.mxu0
          %v3283 = vadd.f32 %v3194, %v3282
          %v3284 = vpop.f32.mrf.mxu0
          %v3285 = vadd.f32 %v3196, %v3284
          %3286 = vmatmul.bf16.gmra.mxu0 %v2996
          %v3287 = vpop.f32.mrf.mxu0
          %v3288 = vadd.f32 %v3199, %v3287
          %v3289 = vpop.f32.mrf.mxu0
          %v3290 = vadd.f32 %v3201, %v3289
          %3291 = vmatmul.bf16.gmra.mxu0 %v2998
          %v3292 = vpop.f32.mrf.mxu0
          %v3293 = vadd.f32 %v3204, %v3292
          %v3294 = vpop.f32.mrf.mxu0
          %v3295 = vadd.f32 %v3206, %v3294
          %3296 = vmatmul.bf16.gmra.mxu0 %v3000
          %v3297 = vpop.f32.mrf.mxu0
          %v3298 = vadd.f32 %v3209, %v3297
          %v3299 = vpop.f32.mrf.mxu0
          %v3300 = vadd.f32 %v3211, %v3299
          %3301 = vmatmul.bf16.gmra.mxu0 %v3002
          %v3302 = vpop.f32.mrf.mxu0
          %v3303 = vadd.f32 %v3214, %v3302
          %v3304 = vpop.f32.mrf.mxu0
          %v3305 = vadd.f32 %v3216, %v3304
          %3306 = vmatmul.bf16.gmra.mxu0 %v3004
          %v3307 = vpop.f32.mrf.mxu0
          %v3308 = vadd.f32 %v3219, %v3307
          %v3309 = vpop.f32.mrf.mxu0
          %v3310 = vadd.f32 %v3221, %v3309
          %3311 = vmatmul.bf16.gmra.mxu0 %v3006
          %v3312 = vpop.f32.mrf.mxu0
          %v3313 = vadd.f32 %v3224, %v3312
          %v3314 = vpop.f32.mrf.mxu0
          %v3315 = vadd.f32 %v3226, %v3314
          %3316 = vdwg.mxu0
          %v3317 = vmax.f32 %v3238, 0.0
          %v3318 = vmax.f32 %v3240, 0.0
          %v3319 = vmax.f32 %v3243, 0.0
          %v3320 = vmax.f32 %v3245, 0.0
          %v3321 = vmax.f32 %v3248, 0.0
          %v3322 = vmax.f32 %v3250, 0.0
          %v3323 = vmax.f32 %v3253, 0.0
          %v3324 = vmax.f32 %v3255, 0.0
          %v3325 = vmax.f32 %v3258, 0.0
          %v3326 = vmax.f32 %v3260, 0.0
          %v3327 = vmax.f32 %v3263, 0.0
          %v3328 = vmax.f32 %v3265, 0.0
          %v3329 = vmax.f32 %v3268, 0.0
          %v3330 = vmax.f32 %v3270, 0.0
          %v3331 = vmax.f32 %v3273, 0.0
          %v3332 = vmax.f32 %v3275, 0.0
          %v3333 = vmax.f32 %v3278, 0.0
          %v3334 = vmax.f32 %v3280, 0.0
          %v3335 = vmax.f32 %v3283, 0.0
          %v3336 = vmax.f32 %v3285, 0.0
          %v3337 = vmax.f32 %v3288, 0.0
          %v3338 = vmax.f32 %v3290, 0.0
          %v3339 = vmax.f32 %v3293, 0.0
          %v3340 = vmax.f32 %v3295, 0.0
          %v3341 = vmax.f32 %v3298, 0.0
          %v3342 = vmax.f32 %v3300, 0.0
          %v3343 = vmax.f32 %v3303, 0.0
          %v3344 = vmax.f32 %v3305, 0.0
          %v3345 = vmax.f32 %v3308, 0.0
          %v3346 = vmax.f32 %v3310, 0.0
          %v3347 = vmax.f32 %v3313, 0.0
          %v3348 = vmax.f32 %v3315, 0.0
          %v3349 = vand.u32 2147483647, %v3238
          %v3350 = vand.u32 2147483647, %v3240
          %v3351 = vand.u32 2147483647, %v3243
          %v3352 = vand.u32 2147483647, %v3245
          %v3353 = vand.u32 2147483647, %v3248
          %v3354 = vand.u32 2147483647, %v3250
          %v3355 = vand.u32 2147483647, %v3253
          %v3356 = vand.u32 2147483647, %v3255
          %v3357 = vand.u32 2147483647, %v3258
          %v3358 = vand.u32 2147483647, %v3260
          %v3359 = vand.u32 2147483647, %v3263
          %v3360 = vand.u32 2147483647, %v3265
          %v3361 = vand.u32 2147483647, %v3268
          %v3362 = vand.u32 2147483647, %v3270
          %v3363 = vand.u32 2147483647, %v3273
          %v3364 = vand.u32 2147483647, %v3275
          %v3365 = vand.u32 2147483647, %v3278
          %v3366 = vand.u32 2147483647, %v3280
          %v3367 = vand.u32 2147483647, %v3283
          %v3368 = vand.u32 2147483647, %v3285
          %v3369 = vand.u32 2147483647, %v3288
          %v3370 = vand.u32 2147483647, %v3290
          %v3371 = vand.u32 2147483647, %v3293
          %v3372 = vand.u32 2147483647, %v3295
          %v3373 = vand.u32 2147483647, %v3298
          %v3374 = vand.u32 2147483647, %v3300
          %v3375 = vand.u32 2147483647, %v3303
          %v3376 = vand.u32 2147483647, %v3305
          %v3377 = vand.u32 2147483647, %v3308
          %v3378 = vand.u32 2147483647, %v3310
          %v3379 = vand.u32 2147483647, %v3313
          %v3380 = vand.u32 2147483647, %v3315
          %v3381 = vsub.f32 0.0, %v3349
          %v3382 = vsub.f32 0.0, %v3350
          %v3383 = vsub.f32 0.0, %v3351
          %v3384 = vsub.f32 0.0, %v3352
          %v3385 = vsub.f32 0.0, %v3353
          %v3386 = vsub.f32 0.0, %v3354
          %v3387 = vsub.f32 0.0, %v3355
          %v3388 = vsub.f32 0.0, %v3356
          %v3389 = vsub.f32 0.0, %v3357
          %v3390 = vsub.f32 0.0, %v3358
          %v3391 = vsub.f32 0.0, %v3359
          %v3392 = vsub.f32 0.0, %v3360
          %v3393 = vsub.f32 0.0, %v3361
          %v3394 = vsub.f32 0.0, %v3362
          %v3395 = vsub.f32 0.0, %v3363
          %v3396 = vsub.f32 0.0, %v3364
          %v3397 = vsub.f32 0.0, %v3365
          %v3398 = vsub.f32 0.0, %v3366
          %v3399 = vsub.f32 0.0, %v3367
          %v3400 = vsub.f32 0.0, %v3368
          %v3401 = vsub.f32 0.0, %v3369
          %v3402 = vsub.f32 0.0, %v3370
          %v3403 = vsub.f32 0.0, %v3371
          %v3404 = vsub.f32 0.0, %v3372
          %v3405 = vsub.f32 0.0, %v3373
          %v3406 = vsub.f32 0.0, %v3374
          %v3407 = vsub.f32 0.0, %v3375
          %v3408 = vsub.f32 0.0, %v3376
          %v3409 = vsub.f32 0.0, %v3377
          %v3410 = vsub.f32 0.0, %v3378
          %v3411 = vsub.f32 0.0, %v3379
          %v3412 = vsub.f32 0.0, %v3380
          %v3413 = vmul.f32 %v3381, 1.442695
          %v3414 = vpow.pop %v3413
          %v3415 = vmul.f32 %v3382, 1.442695
          %v3416 = vpow.pop %v3415
          %v3417 = vmul.f32 %v3383, 1.442695
          %v3418 = vpow.pop %v3417
          %v3419 = vmul.f32 %v3384, 1.442695
          %v3420 = vpow.pop %v3419
          %v3421 = vmul.f32 %v3385, 1.442695
          %v3422 = vpow.pop %v3421
          %v3423 = vmul.f32 %v3386, 1.442695
          %v3424 = vpow.pop %v3423
          %v3425 = vmul.f32 %v3387, 1.442695
          %v3426 = vpow.pop %v3425
          %v3427 = vmul.f32 %v3388, 1.442695
          %v3428 = vpow.pop %v3427
          %v3429 = vmul.f32 %v3389, 1.442695
          %v3430 = vpow.pop %v3429
          %v3431 = vmul.f32 %v3390, 1.442695
          %v3432 = vpow.pop %v3431
          %v3433 = vmul.f32 %v3391, 1.442695
          %v3434 = vpow.pop %v3433
          %v3435 = vmul.f32 %v3392, 1.442695
          %v3436 = vpow.pop %v3435
          %v3437 = vmul.f32 %v3393, 1.442695
          %v3438 = vpow.pop %v3437
          %v3439 = vmul.f32 %v3394, 1.442695
          %v3440 = vpow.pop %v3439
          %v3441 = vmul.f32 %v3395, 1.442695
          %v3442 = vpow.pop %v3441
          %v3443 = vmul.f32 %v3396, 1.442695
          %v3444 = vpow.pop %v3443
          %v3445 = vmul.f32 %v3397, 1.442695
          %v3446 = vpow.pop %v3445
          %v3447 = vmul.f32 %v3398, 1.442695
          %v3448 = vpow.pop %v3447
          %v3449 = vmul.f32 %v3399, 1.442695
          %v3450 = vpow.pop %v3449
          %v3451 = vmul.f32 %v3400, 1.442695
          %v3452 = vpow.pop %v3451
          %v3453 = vmul.f32 %v3401, 1.442695
          %v3454 = vpow.pop %v3453
          %v3455 = vmul.f32 %v3402, 1.442695
          %v3456 = vpow.pop %v3455
          %v3457 = vmul.f32 %v3403, 1.442695
          %v3458 = vpow.pop %v3457
          %v3459 = vmul.f32 %v3404, 1.442695
          %v3460 = vpow.pop %v3459
          %v3461 = vmul.f32 %v3405, 1.442695
          %v3462 = vpow.pop %v3461
          %v3463 = vmul.f32 %v3406, 1.442695
          %v3464 = vpow.pop %v3463
          %v3465 = vmul.f32 %v3407, 1.442695
          %v3466 = vpow.pop %v3465
          %v3467 = vmul.f32 %v3408, 1.442695
          %v3468 = vpow.pop %v3467
          %v3469 = vmul.f32 %v3409, 1.442695
          %v3470 = vpow.pop %v3469
          %v3471 = vmul.f32 %v3410, 1.442695
          %v3472 = vpow.pop %v3471
          %v3473 = vmul.f32 %v3411, 1.442695
          %v3474 = vpow.pop %v3473
          %v3475 = vmul.f32 %v3412, 1.442695
          %v3476 = vpow.pop %v3475
          %v3477 = vadd.f32 %v3414, 1.0
          %v3478 = vlog2.pop %v3477
          %v3479 = vmul.f32 %v3478, 0.6931472
          %v3480 = vmul.f32 -0.5, %v3414
          %v3481 = vadd.f32 %v3480, 1.0
          %v3482 = vmul.f32 %v3481, %v3414
          %v3483 = vand.u32 2147483647, %v3414
          %vm3484 = vcmp.lt.f32.partialorder %v3483, 0.0004427343
          %v3485 = vsel %vm3484, %v3482, %v3479
          %v3486 = vadd.f32 %v3416, 1.0
          %v3487 = vlog2.pop %v3486
          %v3488 = vmul.f32 %v3487, 0.6931472
          %v3489 = vmul.f32 -0.5, %v3416
          %v3490 = vadd.f32 %v3489, 1.0
          %v3491 = vmul.f32 %v3490, %v3416
          %v3492 = vand.u32 2147483647, %v3416
          %vm3493 = vcmp.lt.f32.partialorder %v3492, 0.0004427343
          %v3494 = vsel %vm3493, %v3491, %v3488
          %v3495 = vadd.f32 %v3418, 1.0
          %v3496 = vlog2.pop %v3495
          %v3497 = vmul.f32 %v3496, 0.6931472
          %v3498 = vmul.f32 -0.5, %v3418
          %v3499 = vadd.f32 %v3498, 1.0
          %v3500 = vmul.f32 %v3499, %v3418
          %v3501 = vand.u32 2147483647, %v3418
          %vm3502 = vcmp.lt.f32.partialorder %v3501, 0.0004427343
          %v3503 = vsel %vm3502, %v3500, %v3497
          %v3504 = vadd.f32 %v3420, 1.0
          %v3505 = vlog2.pop %v3504
          %v3506 = vmul.f32 %v3505, 0.6931472
          %v3507 = vmul.f32 -0.5, %v3420
          %v3508 = vadd.f32 %v3507, 1.0
          %v3509 = vmul.f32 %v3508, %v3420
          %v3510 = vand.u32 2147483647, %v3420
          %vm3511 = vcmp.lt.f32.partialorder %v3510, 0.0004427343
          %v3512 = vsel %vm3511, %v3509, %v3506
          %v3513 = vadd.f32 %v3422, 1.0
          %v3514 = vlog2.pop %v3513
          %v3515 = vmul.f32 %v3514, 0.6931472
          %v3516 = vmul.f32 -0.5, %v3422
          %v3517 = vadd.f32 %v3516, 1.0
          %v3518 = vmul.f32 %v3517, %v3422
          %v3519 = vand.u32 2147483647, %v3422
          %vm3520 = vcmp.lt.f32.partialorder %v3519, 0.0004427343
          %v3521 = vsel %vm3520, %v3518, %v3515
          %v3522 = vadd.f32 %v3424, 1.0
          %v3523 = vlog2.pop %v3522
          %v3524 = vmul.f32 %v3523, 0.6931472
          %v3525 = vmul.f32 -0.5, %v3424
          %v3526 = vadd.f32 %v3525, 1.0
          %v3527 = vmul.f32 %v3526, %v3424
          %v3528 = vand.u32 2147483647, %v3424
          %vm3529 = vcmp.lt.f32.partialorder %v3528, 0.0004427343
          %v3530 = vsel %vm3529, %v3527, %v3524
          %v3531 = vadd.f32 %v3426, 1.0
          %v3532 = vlog2.pop %v3531
          %v3533 = vmul.f32 %v3532, 0.6931472
          %v3534 = vmul.f32 -0.5, %v3426
          %v3535 = vadd.f32 %v3534, 1.0
          %v3536 = vmul.f32 %v3535, %v3426
          %v3537 = vand.u32 2147483647, %v3426
          %vm3538 = vcmp.lt.f32.partialorder %v3537, 0.0004427343
          %v3539 = vsel %vm3538, %v3536, %v3533
          %v3540 = vadd.f32 %v3428, 1.0
          %v3541 = vlog2.pop %v3540
          %v3542 = vmul.f32 %v3541, 0.6931472
          %v3543 = vmul.f32 -0.5, %v3428
          %v3544 = vadd.f32 %v3543, 1.0
          %v3545 = vmul.f32 %v3544, %v3428
          %v3546 = vand.u32 2147483647, %v3428
          %vm3547 = vcmp.lt.f32.partialorder %v3546, 0.0004427343
          %v3548 = vsel %vm3547, %v3545, %v3542
          %v3549 = vadd.f32 %v3430, 1.0
          %v3550 = vlog2.pop %v3549
          %v3551 = vmul.f32 %v3550, 0.6931472
          %v3552 = vmul.f32 -0.5, %v3430
          %v3553 = vadd.f32 %v3552, 1.0
          %v3554 = vmul.f32 %v3553, %v3430
          %v3555 = vand.u32 2147483647, %v3430
          %vm3556 = vcmp.lt.f32.partialorder %v3555, 0.0004427343
          %v3557 = vsel %vm3556, %v3554, %v3551
          %v3558 = vadd.f32 %v3432, 1.0
          %v3559 = vlog2.pop %v3558
          %v3560 = vmul.f32 %v3559, 0.6931472
          %v3561 = vmul.f32 -0.5, %v3432
          %v3562 = vadd.f32 %v3561, 1.0
          %v3563 = vmul.f32 %v3562, %v3432
          %v3564 = vand.u32 2147483647, %v3432
          %vm3565 = vcmp.lt.f32.partialorder %v3564, 0.0004427343
          %v3566 = vsel %vm3565, %v3563, %v3560
          %v3567 = vadd.f32 %v3434, 1.0
          %v3568 = vlog2.pop %v3567
          %v3569 = vmul.f32 %v3568, 0.6931472
          %v3570 = vmul.f32 -0.5, %v3434
          %v3571 = vadd.f32 %v3570, 1.0
          %v3572 = vmul.f32 %v3571, %v3434
          %v3573 = vand.u32 2147483647, %v3434
          %vm3574 = vcmp.lt.f32.partialorder %v3573, 0.0004427343
          %v3575 = vsel %vm3574, %v3572, %v3569
          %v3576 = vadd.f32 %v3436, 1.0
          %v3577 = vlog2.pop %v3576
          %v3578 = vmul.f32 %v3577, 0.6931472
          %v3579 = vmul.f32 -0.5, %v3436
          %v3580 = vadd.f32 %v3579, 1.0
          %v3581 = vmul.f32 %v3580, %v3436
          %v3582 = vand.u32 2147483647, %v3436
          %vm3583 = vcmp.lt.f32.partialorder %v3582, 0.0004427343
          %v3584 = vsel %vm3583, %v3581, %v3578
          %v3585 = vadd.f32 %v3438, 1.0
          %v3586 = vlog2.pop %v3585
          %v3587 = vmul.f32 %v3586, 0.6931472
          %v3588 = vmul.f32 -0.5, %v3438
          %v3589 = vadd.f32 %v3588, 1.0
          %v3590 = vmul.f32 %v3589, %v3438
          %v3591 = vand.u32 2147483647, %v3438
          %vm3592 = vcmp.lt.f32.partialorder %v3591, 0.0004427343
          %v3593 = vsel %vm3592, %v3590, %v3587
          %v3594 = vadd.f32 %v3440, 1.0
          %v3595 = vlog2.pop %v3594
          %v3596 = vmul.f32 %v3595, 0.6931472
          %v3597 = vmul.f32 -0.5, %v3440
          %v3598 = vadd.f32 %v3597, 1.0
          %v3599 = vmul.f32 %v3598, %v3440
          %v3600 = vand.u32 2147483647, %v3440
          %vm3601 = vcmp.lt.f32.partialorder %v3600, 0.0004427343
          %v3602 = vsel %vm3601, %v3599, %v3596
          %v3603 = vadd.f32 %v3442, 1.0
          %v3604 = vlog2.pop %v3603
          %v3605 = vmul.f32 %v3604, 0.6931472
          %v3606 = vmul.f32 -0.5, %v3442
          %v3607 = vadd.f32 %v3606, 1.0
          %v3608 = vmul.f32 %v3607, %v3442
          %v3609 = vand.u32 2147483647, %v3442
          %vm3610 = vcmp.lt.f32.partialorder %v3609, 0.0004427343
          %v3611 = vsel %vm3610, %v3608, %v3605
          %v3612 = vadd.f32 %v3444, 1.0
          %v3613 = vlog2.pop %v3612
          %v3614 = vmul.f32 %v3613, 0.6931472
          %v3615 = vmul.f32 -0.5, %v3444
          %v3616 = vadd.f32 %v3615, 1.0
          %v3617 = vmul.f32 %v3616, %v3444
          %v3618 = vand.u32 2147483647, %v3444
          %vm3619 = vcmp.lt.f32.partialorder %v3618, 0.0004427343
          %v3620 = vsel %vm3619, %v3617, %v3614
          %v3621 = vadd.f32 %v3446, 1.0
          %v3622 = vlog2.pop %v3621
          %v3623 = vmul.f32 %v3622, 0.6931472
          %v3624 = vmul.f32 -0.5, %v3446
          %v3625 = vadd.f32 %v3624, 1.0
          %v3626 = vmul.f32 %v3625, %v3446
          %v3627 = vand.u32 2147483647, %v3446
          %vm3628 = vcmp.lt.f32.partialorder %v3627, 0.0004427343
          %v3629 = vsel %vm3628, %v3626, %v3623
          %v3630 = vadd.f32 %v3448, 1.0
          %v3631 = vlog2.pop %v3630
          %v3632 = vmul.f32 %v3631, 0.6931472
          %v3633 = vmul.f32 -0.5, %v3448
          %v3634 = vadd.f32 %v3633, 1.0
          %v3635 = vmul.f32 %v3634, %v3448
          %v3636 = vand.u32 2147483647, %v3448
          %vm3637 = vcmp.lt.f32.partialorder %v3636, 0.0004427343
          %v3638 = vsel %vm3637, %v3635, %v3632
          %v3639 = vadd.f32 %v3450, 1.0
          %v3640 = vlog2.pop %v3639
          %v3641 = vmul.f32 %v3640, 0.6931472
          %v3642 = vmul.f32 -0.5, %v3450
          %v3643 = vadd.f32 %v3642, 1.0
          %v3644 = vmul.f32 %v3643, %v3450
          %v3645 = vand.u32 2147483647, %v3450
          %vm3646 = vcmp.lt.f32.partialorder %v3645, 0.0004427343
          %v3647 = vsel %vm3646, %v3644, %v3641
          %v3648 = vadd.f32 %v3452, 1.0
          %v3649 = vlog2.pop %v3648
          %v3650 = vmul.f32 %v3649, 0.6931472
          %v3651 = vmul.f32 -0.5, %v3452
          %v3652 = vadd.f32 %v3651, 1.0
          %v3653 = vmul.f32 %v3652, %v3452
          %v3654 = vand.u32 2147483647, %v3452
          %vm3655 = vcmp.lt.f32.partialorder %v3654, 0.0004427343
          %v3656 = vsel %vm3655, %v3653, %v3650
          %v3657 = vadd.f32 %v3454, 1.0
          %v3658 = vlog2.pop %v3657
          %v3659 = vmul.f32 %v3658, 0.6931472
          %v3660 = vmul.f32 -0.5, %v3454
          %v3661 = vadd.f32 %v3660, 1.0
          %v3662 = vmul.f32 %v3661, %v3454
          %v3663 = vand.u32 2147483647, %v3454
          %vm3664 = vcmp.lt.f32.partialorder %v3663, 0.0004427343
          %v3665 = vsel %vm3664, %v3662, %v3659
          %v3666 = vadd.f32 %v3456, 1.0
          %v3667 = vlog2.pop %v3666
          %v3668 = vmul.f32 %v3667, 0.6931472
          %v3669 = vmul.f32 -0.5, %v3456
          %v3670 = vadd.f32 %v3669, 1.0
          %v3671 = vmul.f32 %v3670, %v3456
          %v3672 = vand.u32 2147483647, %v3456
          %vm3673 = vcmp.lt.f32.partialorder %v3672, 0.0004427343
          %v3674 = vsel %vm3673, %v3671, %v3668
          %v3675 = vadd.f32 %v3458, 1.0
          %v3676 = vlog2.pop %v3675
          %v3677 = vmul.f32 %v3676, 0.6931472
          %v3678 = vmul.f32 -0.5, %v3458
          %v3679 = vadd.f32 %v3678, 1.0
          %v3680 = vmul.f32 %v3679, %v3458
          %v3681 = vand.u32 2147483647, %v3458
          %vm3682 = vcmp.lt.f32.partialorder %v3681, 0.0004427343
          %v3683 = vsel %vm3682, %v3680, %v3677
          %v3684 = vadd.f32 %v3460, 1.0
          %v3685 = vlog2.pop %v3684
          %v3686 = vmul.f32 %v3685, 0.6931472
          %v3687 = vmul.f32 -0.5, %v3460
          %v3688 = vadd.f32 %v3687, 1.0
          %v3689 = vmul.f32 %v3688, %v3460
          %v3690 = vand.u32 2147483647, %v3460
          %vm3691 = vcmp.lt.f32.partialorder %v3690, 0.0004427343
          %v3692 = vsel %vm3691, %v3689, %v3686
          %v3693 = vadd.f32 %v3462, 1.0
          %v3694 = vlog2.pop %v3693
          %v3695 = vmul.f32 %v3694, 0.6931472
          %v3696 = vmul.f32 -0.5, %v3462
          %v3697 = vadd.f32 %v3696, 1.0
          %v3698 = vmul.f32 %v3697, %v3462
          %v3699 = vand.u32 2147483647, %v3462
          %vm3700 = vcmp.lt.f32.partialorder %v3699, 0.0004427343
          %v3701 = vsel %vm3700, %v3698, %v3695
          %v3702 = vadd.f32 %v3464, 1.0
          %v3703 = vlog2.pop %v3702
          %v3704 = vmul.f32 %v3703, 0.6931472
          %v3705 = vmul.f32 -0.5, %v3464
          %v3706 = vadd.f32 %v3705, 1.0
          %v3707 = vmul.f32 %v3706, %v3464
          %v3708 = vand.u32 2147483647, %v3464
          %vm3709 = vcmp.lt.f32.partialorder %v3708, 0.0004427343
          %v3710 = vsel %vm3709, %v3707, %v3704
          %v3711 = vadd.f32 %v3466, 1.0
          %v3712 = vlog2.pop %v3711
          %v3713 = vmul.f32 %v3712, 0.6931472
          %v3714 = vmul.f32 -0.5, %v3466
          %v3715 = vadd.f32 %v3714, 1.0
          %v3716 = vmul.f32 %v3715, %v3466
          %v3717 = vand.u32 2147483647, %v3466
          %vm3718 = vcmp.lt.f32.partialorder %v3717, 0.0004427343
          %v3719 = vsel %vm3718, %v3716, %v3713
          %v3720 = vadd.f32 %v3468, 1.0
          %v3721 = vlog2.pop %v3720
          %v3722 = vmul.f32 %v3721, 0.6931472
          %v3723 = vmul.f32 -0.5, %v3468
          %v3724 = vadd.f32 %v3723, 1.0
          %v3725 = vmul.f32 %v3724, %v3468
          %v3726 = vand.u32 2147483647, %v3468
          %vm3727 = vcmp.lt.f32.partialorder %v3726, 0.0004427343
          %v3728 = vsel %vm3727, %v3725, %v3722
          %v3729 = vadd.f32 %v3470, 1.0
          %v3730 = vlog2.pop %v3729
          %v3731 = vmul.f32 %v3730, 0.6931472
          %v3732 = vmul.f32 -0.5, %v3470
          %v3733 = vadd.f32 %v3732, 1.0
          %v3734 = vmul.f32 %v3733, %v3470
          %v3735 = vand.u32 2147483647, %v3470
          %vm3736 = vcmp.lt.f32.partialorder %v3735, 0.0004427343
          %v3737 = vsel %vm3736, %v3734, %v3731
          %v3738 = vadd.f32 %v3472, 1.0
          %v3739 = vlog2.pop %v3738
          %v3740 = vmul.f32 %v3739, 0.6931472
          %v3741 = vmul.f32 -0.5, %v3472
          %v3742 = vadd.f32 %v3741, 1.0
          %v3743 = vmul.f32 %v3742, %v3472
          %v3744 = vand.u32 2147483647, %v3472
          %vm3745 = vcmp.lt.f32.partialorder %v3744, 0.0004427343
          %v3746 = vsel %vm3745, %v3743, %v3740
          %v3747 = vadd.f32 %v3474, 1.0
          %v3748 = vlog2.pop %v3747
          %v3749 = vmul.f32 %v3748, 0.6931472
          %v3750 = vmul.f32 -0.5, %v3474
          %v3751 = vadd.f32 %v3750, 1.0
          %v3752 = vmul.f32 %v3751, %v3474
          %v3753 = vand.u32 2147483647, %v3474
          %vm3754 = vcmp.lt.f32.partialorder %v3753, 0.0004427343
          %v3755 = vsel %vm3754, %v3752, %v3749
          %v3756 = vadd.f32 %v3476, 1.0
          %v3757 = vlog2.pop %v3756
          %v3758 = vmul.f32 %v3757, 0.6931472
          %v3759 = vmul.f32 -0.5, %v3476
          %v3760 = vadd.f32 %v3759, 1.0
          %v3761 = vmul.f32 %v3760, %v3476
          %v3762 = vand.u32 2147483647, %v3476
          %vm3763 = vcmp.lt.f32.partialorder %v3762, 0.0004427343
          %v3764 = vsel %vm3763, %v3761, %v3758
          %v3765 = vadd.f32 %v3317, %v3485
          %v3766 = vadd.f32 %v3318, %v3494
          %v3767 = vadd.f32 %v3319, %v3503
          %v3768 = vadd.f32 %v3320, %v3512
          %v3769 = vadd.f32 %v3321, %v3521
          %v3770 = vadd.f32 %v3322, %v3530
          %v3771 = vadd.f32 %v3323, %v3539
          %v3772 = vadd.f32 %v3324, %v3548
          %v3773 = vadd.f32 %v3325, %v3557
          %v3774 = vadd.f32 %v3326, %v3566
          %v3775 = vadd.f32 %v3327, %v3575
          %v3776 = vadd.f32 %v3328, %v3584
          %v3777 = vadd.f32 %v3329, %v3593
          %v3778 = vadd.f32 %v3330, %v3602
          %v3779 = vadd.f32 %v3331, %v3611
          %v3780 = vadd.f32 %v3332, %v3620
          %v3781 = vadd.f32 %v3333, %v3629
          %v3782 = vadd.f32 %v3334, %v3638
          %v3783 = vadd.f32 %v3335, %v3647
          %v3784 = vadd.f32 %v3336, %v3656
          %v3785 = vadd.f32 %v3337, %v3665
          %v3786 = vadd.f32 %v3338, %v3674
          %v3787 = vadd.f32 %v3339, %v3683
          %v3788 = vadd.f32 %v3340, %v3692
          %v3789 = vadd.f32 %v3341, %v3701
          %v3790 = vadd.f32 %v3342, %v3710
          %v3791 = vadd.f32 %v3343, %v3719
          %v3792 = vadd.f32 %v3344, %v3728
          %v3793 = vadd.f32 %v3345, %v3737
          %v3794 = vadd.f32 %v3346, %v3746
          %v3795 = vadd.f32 %v3347, %v3755
          %v3796 = vadd.f32 %v3348, %v3764
          %v3797 = vpack.c.bf16 %v3765, %v3765
          %v3798 = vpack.c.bf16 %v3766, %v3766
          %v3799 = vpack.c.bf16 %v3767, %v3767
          %v3800 = vpack.c.bf16 %v3768, %v3768
          %v3801 = vpack.c.bf16 %v3769, %v3769
          %v3802 = vpack.c.bf16 %v3770, %v3770
          %v3803 = vpack.c.bf16 %v3771, %v3771
          %v3804 = vpack.c.bf16 %v3772, %v3772
          %v3805 = vpack.c.bf16 %v3773, %v3773
          %v3806 = vpack.c.bf16 %v3774, %v3774
          %v3807 = vpack.c.bf16 %v3775, %v3775
          %v3808 = vpack.c.bf16 %v3776, %v3776
          %v3809 = vpack.c.bf16 %v3777, %v3777
          %v3810 = vpack.c.bf16 %v3778, %v3778
          %v3811 = vpack.c.bf16 %v3779, %v3779
          %v3812 = vpack.c.bf16 %v3780, %v3780
          %v3813 = vpack.c.bf16 %v3781, %v3781
          %v3814 = vpack.c.bf16 %v3782, %v3782
          %v3815 = vpack.c.bf16 %v3783, %v3783
          %v3816 = vpack.c.bf16 %v3784, %v3784
          %v3817 = vpack.c.bf16 %v3785, %v3785
          %v3818 = vpack.c.bf16 %v3786, %v3786
          %v3819 = vpack.c.bf16 %v3787, %v3787
          %v3820 = vpack.c.bf16 %v3788, %v3788
          %v3821 = vpack.c.bf16 %v3789, %v3789
          %v3822 = vpack.c.bf16 %v3790, %v3790
          %v3823 = vpack.c.bf16 %v3791, %v3791
          %v3824 = vpack.c.bf16 %v3792, %v3792
          %v3825 = vpack.c.bf16 %v3793, %v3793
          %v3826 = vpack.c.bf16 %v3794, %v3794
          %v3827 = vpack.c.bf16 %v3795, %v3795
          %v3828 = vpack.c.bf16 %v3796, %v3796
          %3829 = vst [vmem:[%s317] sm:$0xf] %v3797
          %3830 = vst [vmem:[%s317 + $0x4] sm:$0xf] %v3798
          %3831 = vst [vmem:[%s317 + $0x8] sm:$0xf] %v3799
          %3832 = vst [vmem:[%s317 + $0xc] sm:$0xf] %v3800
          %3833 = vst [vmem:[%s317 + $0x10] sm:$0xf] %v3801
          %3834 = vst [vmem:[%s317 + $0x14] sm:$0xf] %v3802
          %3835 = vst [vmem:[%s317 + $0x18] sm:$0xf] %v3803
          %3836 = vst [vmem:[%s317 + $0x1c] sm:$0xf] %v3804
          %3837 = vst [vmem:[%s317 + $0x20] sm:$0xf] %v3805
          %3838 = vst [vmem:[%s317 + $0x24] sm:$0xf] %v3806
          %3839 = vst [vmem:[%s317 + $0x28] sm:$0xf] %v3807
          %3840 = vst [vmem:[%s317 + $0x2c] sm:$0xf] %v3808
          %3841 = vst [vmem:[%s317 + $0x30] sm:$0xf] %v3809
          %3842 = vst [vmem:[%s317 + $0x34] sm:$0xf] %v3810
          %3843 = vst [vmem:[%s317 + $0x38] sm:$0xf] %v3811
          %3844 = vst [vmem:[%s317 + $0x3c] sm:$0xf] %v3812
          %3845 = vst [vmem:[%s317 + $0x40] sm:$0xf] %v3813
          %3846 = vst [vmem:[%s317 + $0x44] sm:$0xf] %v3814
          %3847 = vst [vmem:[%s317 + $0x48] sm:$0xf] %v3815
          %3848 = vst [vmem:[%s317 + $0x4c] sm:$0xf] %v3816
          %3849 = vst [vmem:[%s317 + $0x50] sm:$0xf] %v3817
          %3850 = vst [vmem:[%s317 + $0x54] sm:$0xf] %v3818
          %3851 = vst [vmem:[%s317 + $0x58] sm:$0xf] %v3819
          %3852 = vst [vmem:[%s317 + $0x5c] sm:$0xf] %v3820
          %3853 = vst [vmem:[%s317 + $0x60] sm:$0xf] %v3821
          %3854 = vst [vmem:[%s317 + $0x64] sm:$0xf] %v3822
          %3855 = vst [vmem:[%s317 + $0x68] sm:$0xf] %v3823
          %3856 = vst [vmem:[%s317 + $0x6c] sm:$0xf] %v3824
          %3857 = vst [vmem:[%s317 + $0x70] sm:$0xf] %v3825
          %3858 = vst [vmem:[%s317 + $0x74] sm:$0xf] %v3826
          %3859 = vst [vmem:[%s317 + $0x78] sm:$0xf] %v3827
          %3860 = vst [vmem:[%s317 + $0x7c] sm:$0xf] %v3828
        $region64: #{tpu_custom_call.1} parent=39 // pred_fallthru
          _
        %s3861 = sand.u32 %s156, 1
        %s3862 = scalar_lea.sflag [#allocation5], %s3861
        %s3863 = sand.u32 %s156, 1
        %s3864 = smul.addr %s3863, 128
        %s3865 = scalar_lea.vmem [#allocation11], %s3864
        // Predicated region
        $region65: #{tpu_custom_call.1} parent=39 // pred_check
          %p3866 = pneg %p166
        $region66: #{tpu_custom_call.1} parent=39 // pred_check_branch
          %3868 = sbr.rel (%p3866) target = $region68
        $region67: #{tpu_custom_call.1} parent=39 // pred_region
          %s3869 = smul.u32 32, %s28
          %s3870 = ssub.s32 63, %s3869
          %p3871 = scmp.lt.s32.totalorder %s3870, 32
          %s3872 = scalar_select %p3871, %s3870, 32
          %s3873 = smul.u32 4, %s3872
          %s3874 = ssub.s32 128, %s3873
          %s3875 = sshll.u32 %s3874, 4
          %3876 = vsyncadd %s3862, %s3875
          %p3877 = scmp.ne.s32.totalorder 0, %s3873
          %s3878 = smul.addr %s3869, 4
          %s3879 = scalar_lea.hbm %s5, %s3878
          %s3880 = smul.u32 4, %s3872
          %s3881 = sshll.u32 %s3865, 4
          %s3882 = int_to_ptr.vmem [resolvable:$true] %s3881
          %s3883 = sshll.u32 %s3879, 4
          %s3884 = int_to_ptr.hbm [resolvable:$true] %s3883
          %s3885 = sshll.u32 %s3880, 4
          %3889 = dma.vmem_to_hbm [thread:$0]  (%p3877), %s3882, %s3885, %s3884, %s3862, 64, 64, 4
        $region68: #{tpu_custom_call.1} parent=39 // pred_fallthru
          _
      $region40: #{tpu_custom_call.1} parent=5 // pred_fallthru
        _
      %p3890 = scmp.le.s32.totalorder 2, %s19
      // Predicated region
      $region69: #{tpu_custom_call.1} parent=5 // pred_check
        %p3891 = pneg %p3890
      $region70: #{tpu_custom_call.1} parent=5 // pred_check_branch
        %3893 = sbr.rel (%p3891) target = $region72
      $region71: #{tpu_custom_call.1} parent=5 // pred_region
        %s3894 = ssub.s32 %s19, 2
        // Predicated region
        $region73: #{tpu_custom_call.1} parent=71 // pred_check
          %p3895 = pneg %p172
        $region74: #{tpu_custom_call.1} parent=71 // pred_check_branch
          %3897 = sbr.rel (%p3895) target = $region76
        $region75: #{tpu_custom_call.1} parent=71 // pred_region
          %s3898 = sand.u32 %s157, 1
          %s3899 = scalar_lea.sflag [#allocation5], %s3898
          %s3900 = sand.u32 %s157, 1
          %s3901 = smul.addr %s3900, 128
          %s3902 = scalar_lea.vmem [#allocation11], %s3901
          %3904 = dma.done %s3899, 2048
        $region76: #{tpu_custom_call.1} parent=71 // pred_fallthru
          _
      $region72: #{tpu_custom_call.1} parent=5 // pred_fallthru
        _
    $region6: #{tpu_custom_call.1} parent=1 // loop_footer
      %s23 = sadd.s32 1, %s19
    $region7: #{tpu_custom_call.1} parent=1 // loop_footer_branch
      %18 = sbr.rel target = $region3
    $region8: #{tpu_custom_call.1} parent=1 // loop_exit
      _
    %3905 = vsyncpa [#allocation4], 1
    %s3906 = scalar_lea.sflag [#allocation4], 1
    %3907 = vsyncpa %s3906, 1
    %3908 = vsyncpa [#allocation7], 1
    %3909 = vsyncpa [#allocation10], 1
    %3910 = vsyncpa [#allocation5], 1
    %s3911 = scalar_lea.sflag [#allocation5], 1
    %3912 = vsyncpa %s3911, 1

</llo_original>
